<compile_context>
chip_gen: v7x
topology: tpu7x:2x2x1
jax: 0.10.0
libtpu: 0.0.40
codegen_flags: <defaults>
</compile_context>

<pallas_src>
import functools

import jax
import jax.numpy as jnp
from jax.experimental import pallas as pl
from jax.experimental.pallas import tpu as pltpu

D_IN = 784     # flattened MNIST feature dim (input & reconstruction)
H = 400        # logical hidden width
HP = 512       # hidden width padded to 4*128 lanes (zero-padded, numerically exact)
Z = 20         # latent width
ZP = 128       # [mu | logvar] output padded to one full 128-lane vreg (unmasked store)


def _round_up(n, m):
    return (n + m - 1) // m * m


def vae_kernel(x_ref, eps_ref,
               w1_ref, b1_ref, w2122_ref, b2122_ref,
               w3_ref, b3_ref, w4_ref, b4_ref,
               recon_ref, mulv_ref):
    bf16 = jnp.bfloat16
    x = x_ref[...].astype(bf16)                        # (TB, 784), cast in-kernel

    # encode: h1 = relu(x @ W1 + b1)   (MXU bf16 operands, f32 accumulate)
    h1 = jnp.dot(x, w1_ref[...], preferred_element_type=jnp.float32) + b1_ref[...]
    h1 = jnp.maximum(h1, 0.0)

    # fused latent projection: [mu | logvar | 0..] = h1 @ [W21 | W22 | 0] + [b21 | b22 | 0]
    mulv = jnp.dot(h1.astype(bf16), w2122_ref[...],
                   preferred_element_type=jnp.float32) + b2122_ref[...]
    mu = mulv[:, :Z]
    logvar = mulv[:, Z:2 * Z]

    # reparametrize: z = eps * exp(0.5 * logvar) + mu   (EUP exp, f32)
    z = eps_ref[...] * jnp.exp(0.5 * logvar) + mu

    # decode: sigmoid(relu(z @ W3 + b3) @ W4 + b4)
    h3 = jnp.dot(z.astype(bf16), w3_ref[...],
                 preferred_element_type=jnp.float32) + b3_ref[...]
    h3 = jnp.maximum(h3, 0.0)
    logits = jnp.dot(h3.astype(bf16), w4_ref[...],
                     preferred_element_type=jnp.float32) + b4_ref[...]
    # sigmoid on exactly the 784 real columns: EUP exp + EUP approx reciprocal
    recon_ref[...] = pl.reciprocal(1.0 + jnp.exp(-logits), approx=True)

    mulv_ref[...] = mulv


def prepare_params(params):
    """One-time packing of params into kernel layout (bf16 weights, padded dims).

    Call once and reuse the result; this must NOT be re-done per forward call.
    """
    (w1, b1, w21, b21, w22, b22, w3, b3, w4, b4) = params
    bf16 = jnp.bfloat16

    w1_p = jnp.zeros((D_IN, HP), bf16).at[:, :H].set(w1.astype(bf16))
    b1_p = jnp.zeros((1, HP), jnp.float32).at[:, :H].set(b1)

    w2122_p = (jnp.zeros((HP, ZP), bf16)
               .at[:H, :Z].set(w21.astype(bf16))
               .at[:H, Z:2 * Z].set(w22.astype(bf16)))
    b2122_p = (jnp.zeros((1, ZP), jnp.float32)
               .at[:, :Z].set(b21)
               .at[:, Z:2 * Z].set(b22))

    w3_p = jnp.zeros((Z, HP), bf16).at[:, :H].set(w3.astype(bf16))
    b3_p = jnp.zeros((1, HP), jnp.float32).at[:, :H].set(b3)

    w4_p = jnp.zeros((HP, D_IN), bf16).at[:H, :].set(w4.astype(bf16))
    b4_p = b4.astype(jnp.float32)                      # (1, 784)

    return (w1_p, b1_p, w2122_p, b2122_p, w3_p, b3_p, w4_p, b4_p)


@functools.partial(jax.jit, static_argnames=("tb",))
def vae_forward(x, eps, packed, tb=None):
    """x: [B, 784] float32, eps: [B, 20] float32 standard-normal noise.

    `packed` is the output of prepare_params() (pre-packed bf16 weights).
    """
    B = x.shape[0]
    (w1_p, b1_p, w2122_p, b2122_p, w3_p, b3_p, w4_p, b4_p) = packed

    # Batch tile selection:
    #  * v5e: 128 (MXU rows are 128; larger tiles add VMEM without MXU benefit)
    #  * v6e: 256 fills the 256-wide MXU rows and halves per-step pipeline overhead
    #  * v7x: 256 keeps bp//tb >= 2 at B >= 512 so the "parallel" axis splits over 2 TCs
    #  * tiny batches: round up to 16 (bf16 sublane granule, avoids relayout/masking)
    if tb is None:
        if B >= 512:
            tb = 256
        elif B >= 128:
            tb = 128
        else:
            tb = _round_up(B, 16)
    bp = _round_up(B, tb)

    # Only the batch axis is ever padded (small); feature axes use natural sizes since
    # a last-dim block equal to the full array dim is legal.
    if bp != B:
        x_p = jnp.zeros((bp, D_IN), x.dtype).at[:B].set(x)
        eps_p = jnp.zeros((bp, Z), eps.dtype).at[:B].set(eps)
    else:
        x_p, eps_p = x, eps

    grid = (bp // tb,)

    def resident(shape):   # same block every grid step -> DMA'd once, stays in VMEM
        return pl.BlockSpec(shape, lambda i: (0, 0))

    flops = 2 * bp * (D_IN * HP + HP * ZP + Z * HP + HP * D_IN)
    transcendentals = bp * (Z + 2 * D_IN)              # exp(.5*logvar) + sigmoid exp/rcp
    bytes_accessed = (
        x_p.size * 4 + eps_p.size * 4
        + w1_p.size * 2 + b1_p.size * 4 + w2122_p.size * 2 + b2122_p.size * 4
        + w3_p.size * 2 + b3_p.size * 4 + w4_p.size * 2 + b4_p.size * 4
        + bp * D_IN * 4 + bp * ZP * 4)

    recon_p, mulv = pl.pallas_call(
        vae_kernel,
        grid=grid,
        in_specs=[
            pl.BlockSpec((tb, D_IN), lambda i: (i, 0)),    # x tile (f32, cast in kernel)
            pl.BlockSpec((tb, Z), lambda i: (i, 0)),       # eps tile
            resident((D_IN, HP)), resident((1, HP)),       # fc1
            resident((HP, ZP)), resident((1, ZP)),         # fused fc21/fc22 (lane-padded)
            resident((Z, HP)), resident((1, HP)),          # fc3
            resident((HP, D_IN)), resident((1, D_IN)),     # fc4
        ],
        out_specs=(
            pl.BlockSpec((tb, D_IN), lambda i: (i, 0)),    # reconstruction (natural 784)
            pl.BlockSpec((tb, ZP), lambda i: (i, 0)),      # [mu | logvar | 0] full-vreg
        ),
        out_shape=(
            jax.ShapeDtypeStruct((bp, D_IN), jnp.float32),
            jax.ShapeDtypeStruct((bp, ZP), jnp.float32),
        ),
        compiler_params=pltpu.CompilerParams(
            dimension_semantics=("parallel",)),            # shard batch tiles over TCs
        cost_estimate=pl.CostEstimate(
            flops=flops, transcendentals=transcendentals,
            bytes_accessed=bytes_accessed),
    )(x_p, eps_p, w1_p, b1_p, w2122_p, b2122_p, w3_p, b3_p, w4_p, b4_p)

    recon = recon_p[:B] if bp != B else recon_p
    mu = mulv[:B, :Z]
    logvar = mulv[:B, Z:2 * Z]
    return recon, mu, logvar


def init_params(key):
    """Deterministic parameter init (uniform in +-1/sqrt(fan_in), like torch default)."""
    def linear(key, fan_in, fan_out):
        kw, kb = jax.random.split(key)
        bound = 1.0 / jnp.sqrt(fan_in)
        # stored as [in, out] so kernel does x @ W (== torch x @ W.T with [out,in] layout)
        w = jax.random.uniform(kw, (fan_in, fan_out), jnp.float32, -bound, bound)
        b = jax.random.uniform(kb, (1, fan_out), jnp.float32, -bound, bound)
        return w, b

    keys = jax.random.split(key, 5)
    w1, b1 = linear(keys[0], 784, 400)    # fc1
    w21, b21 = linear(keys[1], 400, 20)   # fc21
    w22, b22 = linear(keys[2], 400, 20)   # fc22
    w3, b3 = linear(keys[3], 20, 400)     # fc3
    w4, b4 = linear(keys[4], 400, 784)    # fc4
    return (w1, b1, w21, b21, w22, b22, w3, b3, w4, b4)


def vae_ref(x, eps, params):
    """Pure-JAX reference with the same bf16-operand / f32-accumulate numerics."""
    (w1, b1, w21, b21, w22, b22, w3, b3, w4, b4) = params
    bf16 = jnp.bfloat16

    def mm(a, w):
        return jnp.dot(a.astype(bf16), w.astype(bf16),
                       preferred_element_type=jnp.float32)

    h1 = jnp.maximum(mm(x, w1) + b1, 0.0)
    mu = mm(h1, w21) + b21
    logvar = mm(h1, w22) + b22
    z = eps * jnp.exp(0.5 * logvar) + mu
    h3 = jnp.maximum(mm(z, w3) + b3, 0.0)
    recon = jax.nn.sigmoid(mm(h3, w4) + b4)
    return recon, mu, logvar


if __name__ == "__main__":
    key = jax.random.PRNGKey(0)
    k_param, k_x, k_eps = jax.random.split(key, 3)

    B = 8
    params = init_params(k_param)
    packed = prepare_params(params)                          # one-time weight packing
    x = jax.random.uniform(k_x, (B, 784), jnp.float32)       # e.g. flattened MNIST
    eps = jax.random.normal(k_eps, (B, 20), jnp.float32)     # reparametrization noise
    # TODO(synk): eps is sampled outside the kernel (torch samples it inside forward).

    recon, mu, logvar = vae_forward(x, eps, packed)
    jax.block_until_ready((recon, mu, logvar))

    r_ref, mu_r, lv_r = vae_ref(x, eps, params)
    assert recon.shape == (B, 784) and mu.shape == (B, 20) and logvar.shape == (B, 20)
    assert jnp.allclose(recon, r_ref, atol=1e-2, rtol=1e-2)
    assert jnp.allclose(mu, mu_r, atol=1e-2, rtol=1e-2)
    assert jnp.allclose(logvar, lv_r, atol=1e-2, rtol=1e-2)

    print("KERNEL_OK")
</pallas_src>

<mosaic_0001>
module attributes {stable_mosaic.version = 11 : i64} {
  func.func @vae_kernel(%arg0: i32, %arg1: memref<16x784xf32, #tpu.memory_space<vmem>>, %arg2: memref<16x20xf32, #tpu.memory_space<vmem>>, %arg3: memref<784x512xbf16, #tpu.memory_space<vmem>>, %arg4: memref<1x512xf32, #tpu.memory_space<vmem>>, %arg5: memref<512x128xbf16, #tpu.memory_space<vmem>>, %arg6: memref<1x128xf32, #tpu.memory_space<vmem>>, %arg7: memref<20x512xbf16, #tpu.memory_space<vmem>>, %arg8: memref<1x512xf32, #tpu.memory_space<vmem>>, %arg9: memref<512x784xbf16, #tpu.memory_space<vmem>>, %arg10: memref<1x784xf32, #tpu.memory_space<vmem>>, %arg11: memref<16x784xf32, #tpu.memory_space<vmem>>, %arg12: memref<16x128xf32, #tpu.memory_space<vmem>>) attributes {dimension_semantics = [#tpu.dimension_semantics<parallel>], iteration_bounds = array<i64: 1>, scalar_prefetch = 0 : i64, scratch_operands = 0 : i64, tpu.core_type = #tpu.core_type<tc>, window_params = [{transform_indices = @transform_0, window_bounds = array<i64: 16, 784>}, {transform_indices = @transform_1, window_bounds = array<i64: 16, 20>}, {pipeline_mode = #tpu.pipeline_mode<synchronous>, transform_indices = @transform_2, window_bounds = array<i64: 784, 512>}, {pipeline_mode = #tpu.pipeline_mode<synchronous>, transform_indices = @transform_3, window_bounds = array<i64: 1, 512>}, {pipeline_mode = #tpu.pipeline_mode<synchronous>, transform_indices = @transform_4, window_bounds = array<i64: 512, 128>}, {pipeline_mode = #tpu.pipeline_mode<synchronous>, transform_indices = @transform_5, window_bounds = array<i64: 1, 128>}, {pipeline_mode = #tpu.pipeline_mode<synchronous>, transform_indices = @transform_6, window_bounds = array<i64: 20, 512>}, {pipeline_mode = #tpu.pipeline_mode<synchronous>, transform_indices = @transform_7, window_bounds = array<i64: 1, 512>}, {pipeline_mode = #tpu.pipeline_mode<synchronous>, transform_indices = @transform_8, window_bounds = array<i64: 512, 784>}, {pipeline_mode = #tpu.pipeline_mode<synchronous>, transform_indices = @transform_9, window_bounds = array<i64: 1, 784>}, {transform_indices = @transform_10, window_bounds = array<i64: 16, 784>}, {transform_indices = @transform_11, window_bounds = array<i64: 16, 128>}]} {
    %c0 = arith.constant 0 : index
    %c0_0 = arith.constant 0 : index
    %0 = vector.load %arg1[%c0, %c0_0] : memref<16x784xf32, #tpu.memory_space<vmem>>, vector<16x784xf32>
    %1 = arith.truncf %0 : vector<16x784xf32> to vector<16x784xbf16>
    %c0_1 = arith.constant 0 : index
    %c0_2 = arith.constant 0 : index
    %2 = vector.load %arg3[%c0_1, %c0_2] : memref<784x512xbf16, #tpu.memory_space<vmem>>, vector<784x512xbf16>
    %cst = arith.constant dense<0.000000e+00> : vector<16x512xf32>
    %3 = tpu.matmul %1, %2, %cst {dimension_numbers = #tpu.dot_dimension_numbers<[1], [0], [0], [1], [0, 0, 1, 1], [], []>} : vector<16x784xbf16>, vector<784x512xbf16>, vector<16x512xf32> -> vector<16x512xf32>
    %c0_3 = arith.constant 0 : index
    %c0_4 = arith.constant 0 : index
    %4 = vector.load %arg4[%c0_3, %c0_4] : memref<1x512xf32, #tpu.memory_space<vmem>>, vector<1x512xf32>
    %5 = vector.broadcast %4 : vector<1x512xf32> to vector<16x512xf32>
    %6 = arith.addf %3, %5 : vector<16x512xf32>
    %cst_5 = arith.constant 0.000000e+00 : f32
    %7 = vector.broadcast %cst_5 : f32 to vector<16x512xf32>
    %8 = arith.maximumf %6, %7 : vector<16x512xf32>
    %9 = arith.truncf %8 : vector<16x512xf32> to vector<16x512xbf16>
    %c0_6 = arith.constant 0 : index
    %c0_7 = arith.constant 0 : index
    %10 = vector.load %arg5[%c0_6, %c0_7] : memref<512x128xbf16, #tpu.memory_space<vmem>>, vector<512x128xbf16>
    %cst_8 = arith.constant dense<0.000000e+00> : vector<16x128xf32>
    %11 = tpu.matmul %9, %10, %cst_8 {dimension_numbers = #tpu.dot_dimension_numbers<[1], [0], [0], [1], [0, 0, 1, 1], [], []>} : vector<16x512xbf16>, vector<512x128xbf16>, vector<16x128xf32> -> vector<16x128xf32>
    %c0_9 = arith.constant 0 : index
    %c0_10 = arith.constant 0 : index
    %12 = vector.load %arg6[%c0_9, %c0_10] : memref<1x128xf32, #tpu.memory_space<vmem>>, vector<1x128xf32>
    %13 = vector.broadcast %12 : vector<1x128xf32> to vector<16x128xf32>
    %14 = arith.addf %11, %13 : vector<16x128xf32>
    %15 = vector.extract_strided_slice %14 {offsets = [0, 0], sizes = [16, 20], strides = [1, 1]} : vector<16x128xf32> to vector<16x20xf32>
    %16 = vector.extract_strided_slice %14 {offsets = [0, 20], sizes = [16, 20], strides = [1, 1]} : vector<16x128xf32> to vector<16x20xf32>
    %c0_11 = arith.constant 0 : index
    %c0_12 = arith.constant 0 : index
    %17 = vector.load %arg2[%c0_11, %c0_12] : memref<16x20xf32, #tpu.memory_space<vmem>>, vector<16x20xf32>
    %cst_13 = arith.constant 5.000000e-01 : f32
    %18 = vector.broadcast %cst_13 : f32 to vector<16x20xf32>
    %19 = arith.mulf %18, %16 : vector<16x20xf32>
    %20 = math.exp %19 : vector<16x20xf32>
    %21 = arith.mulf %17, %20 : vector<16x20xf32>
    %22 = arith.addf %21, %15 : vector<16x20xf32>
    %23 = arith.truncf %22 : vector<16x20xf32> to vector<16x20xbf16>
    %c0_14 = arith.constant 0 : index
    %c0_15 = arith.constant 0 : index
    %24 = vector.load %arg7[%c0_14, %c0_15] : memref<20x512xbf16, #tpu.memory_space<vmem>>, vector<20x512xbf16>
    %cst_16 = arith.constant dense<0.000000e+00> : vector<16x512xf32>
    %25 = tpu.matmul %23, %24, %cst_16 {dimension_numbers = #tpu.dot_dimension_numbers<[1], [0], [0], [1], [0, 0, 1, 1], [], []>} : vector<16x20xbf16>, vector<20x512xbf16>, vector<16x512xf32> -> vector<16x512xf32>
    %c0_17 = arith.constant 0 : index
    %c0_18 = arith.constant 0 : index
    %26 = vector.load %arg8[%c0_17, %c0_18] : memref<1x512xf32, #tpu.memory_space<vmem>>, vector<1x512xf32>
    %27 = vector.broadcast %26 : vector<1x512xf32> to vector<16x512xf32>
    %28 = arith.addf %25, %27 : vector<16x512xf32>
    %cst_19 = arith.constant 0.000000e+00 : f32
    %29 = vector.broadcast %cst_19 : f32 to vector<16x512xf32>
    %30 = arith.maximumf %28, %29 : vector<16x512xf32>
    %31 = arith.truncf %30 : vector<16x512xf32> to vector<16x512xbf16>
    %c0_20 = arith.constant 0 : index
    %c0_21 = arith.constant 0 : index
    %32 = vector.load %arg9[%c0_20, %c0_21] : memref<512x784xbf16, #tpu.memory_space<vmem>>, vector<512x784xbf16>
    %cst_22 = arith.constant dense<0.000000e+00> : vector<16x784xf32>
    %33 = tpu.matmul %31, %32, %cst_22 {dimension_numbers = #tpu.dot_dimension_numbers<[1], [0], [0], [1], [0, 0, 1, 1], [], []>} : vector<16x512xbf16>, vector<512x784xbf16>, vector<16x784xf32> -> vector<16x784xf32>
    %c0_23 = arith.constant 0 : index
    %c0_24 = arith.constant 0 : index
    %34 = vector.load %arg10[%c0_23, %c0_24] : memref<1x784xf32, #tpu.memory_space<vmem>>, vector<1x784xf32>
    %35 = vector.broadcast %34 : vector<1x784xf32> to vector<16x784xf32>
    %36 = arith.addf %33, %35 : vector<16x784xf32>
    %cst_25 = arith.constant 0.000000e+00 : f32
    %37 = vector.broadcast %cst_25 : f32 to vector<16x784xf32>
    %38 = arith.subf %37, %36 : vector<16x784xf32>
    %39 = math.exp %38 : vector<16x784xf32>
    %cst_26 = arith.constant 1.000000e+00 : f32
    %40 = vector.broadcast %cst_26 : f32 to vector<16x784xf32>
    %41 = arith.addf %40, %39 : vector<16x784xf32>
    %42 = tpu.reciprocal %41 {approx = true} : vector<16x784xf32> -> vector<16x784xf32>
    %c0_27 = arith.constant 0 : index
    %c0_28 = arith.constant 0 : index
    %43 = vector.load %arg11[%c0_27, %c0_28] : memref<16x784xf32, #tpu.memory_space<vmem>>, vector<16x784xf32>
    tpu.vector_store %arg11[%c0_27, %c0_28], %42 {strides = array<i32>} : memref<16x784xf32, #tpu.memory_space<vmem>>, vector<16x784xf32>,
    %c0_29 = arith.constant 0 : index
    %c0_30 = arith.constant 0 : index
    %44 = vector.load %arg12[%c0_29, %c0_30] : memref<16x128xf32, #tpu.memory_space<vmem>>, vector<16x128xf32>
    tpu.vector_store %arg12[%c0_29, %c0_30], %14 {strides = array<i32>} : memref<16x128xf32, #tpu.memory_space<vmem>>, vector<16x128xf32>,
    return
  }
  func.func @transform_0(%arg0: i32) -> (i32, i32) {
    %c0_i32 = arith.constant 0 : i32
    %c0_i32_0 = arith.constant 0 : i32
    return %arg0, %c0_i32 : i32, i32
  }
  func.func @transform_1(%arg0: i32) -> (i32, i32) {
    %c0_i32 = arith.constant 0 : i32
    %c0_i32_0 = arith.constant 0 : i32
    return %arg0, %c0_i32 : i32, i32
  }
  func.func @transform_2(%arg0: i32) -> (i32, i32) {
    %c0_i32 = arith.constant 0 : i32
    %c0_i32_0 = arith.constant 0 : i32
    %c0_i32_1 = arith.constant 0 : i32
    return %c0_i32, %c0_i32_0 : i32, i32
  }
  func.func @transform_3(%arg0: i32) -> (i32, i32) {
    %c0_i32 = arith.constant 0 : i32
    %c0_i32_0 = arith.constant 0 : i32
    %c0_i32_1 = arith.constant 0 : i32
    return %c0_i32, %c0_i32_0 : i32, i32
  }
  func.func @transform_4(%arg0: i32) -> (i32, i32) {
    %c0_i32 = arith.constant 0 : i32
    %c0_i32_0 = arith.constant 0 : i32
    %c0_i32_1 = arith.constant 0 : i32
    return %c0_i32, %c0_i32_0 : i32, i32
  }
  func.func @transform_5(%arg0: i32) -> (i32, i32) {
    %c0_i32 = arith.constant 0 : i32
    %c0_i32_0 = arith.constant 0 : i32
    %c0_i32_1 = arith.constant 0 : i32
    return %c0_i32, %c0_i32_0 : i32, i32
  }
  func.func @transform_6(%arg0: i32) -> (i32, i32) {
    %c0_i32 = arith.constant 0 : i32
    %c0_i32_0 = arith.constant 0 : i32
    %c0_i32_1 = arith.constant 0 : i32
    return %c0_i32, %c0_i32_0 : i32, i32
  }
  func.func @transform_7(%arg0: i32) -> (i32, i32) {
    %c0_i32 = arith.constant 0 : i32
    %c0_i32_0 = arith.constant 0 : i32
    %c0_i32_1 = arith.constant 0 : i32
    return %c0_i32, %c0_i32_0 : i32, i32
  }
  func.func @transform_8(%arg0: i32) -> (i32, i32) {
    %c0_i32 = arith.constant 0 : i32
    %c0_i32_0 = arith.constant 0 : i32
    %c0_i32_1 = arith.constant 0 : i32
    return %c0_i32, %c0_i32_0 : i32, i32
  }
  func.func @transform_9(%arg0: i32) -> (i32, i32) {
    %c0_i32 = arith.constant 0 : i32
    %c0_i32_0 = arith.constant 0 : i32
    %c0_i32_1 = arith.constant 0 : i32
    return %c0_i32, %c0_i32_0 : i32, i32
  }
  func.func @transform_10(%arg0: i32) -> (i32, i32) {
    %c0_i32 = arith.constant 0 : i32
    %c0_i32_0 = arith.constant 0 : i32
    return %arg0, %c0_i32 : i32, i32
  }
  func.func @transform_11(%arg0: i32) -> (i32, i32) {
    %c0_i32 = arith.constant 0 : i32
    %c0_i32_0 = arith.constant 0 : i32
    return %arg0, %c0_i32 : i32, i32
  }
}

</mosaic_0001>

<llo_original>
// kernel: vae_forward.1
$region0: #{vae_forward.1}
  #allocation0 [shape = 'u32[]', space=smem, size = 0x4, offset = 0x4, fixed_abs, tag = 'smem constant byte address 0x4 - core index']
  #allocation1 [shape = 'u32[144,128]{1,0:T(1,128)}', space=vmem, size = 0x12000, scoped, tag = 'internal scratch']
  %s0 = inlined_call_operand.vmem [shape: f32[16,784], index: 0, kind: input, shape index: {}]
  %s1 = inlined_call_operand.vmem [shape: f32[16,20], index: 1, kind: input, shape index: {}]
  %s2 = inlined_call_operand.vmem [shape: bf16[784,512], index: 2, kind: input, shape index: {}]
  %s3 = inlined_call_operand.vmem [shape: f32[1,512], index: 3, kind: input, shape index: {}]
  %s4 = inlined_call_operand.vmem [shape: bf16[512,128], index: 4, kind: input, shape index: {}]
  %s5 = inlined_call_operand.vmem [shape: f32[1,128], index: 5, kind: input, shape index: {}]
  %s6 = inlined_call_operand.vmem [shape: bf16[20,512], index: 6, kind: input, shape index: {}]
  %s7 = inlined_call_operand.vmem [shape: f32[1,512], index: 7, kind: input, shape index: {}]
  %s8 = inlined_call_operand.vmem [shape: bf16[512,784], index: 8, kind: input, shape index: {}]
  %s9 = inlined_call_operand.vmem [shape: f32[1,784], index: 9, kind: input, shape index: {}]
  %s10 = inlined_call_operand.vmem [shape: f32[16,784], index: 10, kind: output, shape index: {0}]
  %s11 = inlined_call_operand.vmem [shape: f32[16,128], index: 11, kind: output, shape index: {1}]
  %12 = xla_tuple %s10, %s11
  %s13 = sld [smem:[#allocation0]]
  $region58: #{vae_forward.1} parent=0
    _
  %s15 = ssub.s32 1, %s13
  %s16 = scalar_select 0, %s15, %s13
  // Predicated region
  $region2: #{vae_forward.1} parent=0 // pred_check
    _
  $region3: #{vae_forward.1} parent=0 // pred_check_branch
    %18 = sbr.rel (0) target = $region5
  $region4: #{vae_forward.1} parent=0 // pred_region
    _
  $region5: #{vae_forward.1} parent=0 // pred_fallthru
    _
  // Predicated region
  $region6: #{vae_forward.1} parent=0 // pred_check
    _
  $region7: #{vae_forward.1} parent=0 // pred_check_branch
    %20 = sbr.rel (0) target = $region9
  $region8: #{vae_forward.1} parent=0 // pred_region
    _
  $region9: #{vae_forward.1} parent=0 // pred_fallthru
    _
  // Predicated region
  $region10: #{vae_forward.1} parent=0 // pred_check
    _
  $region11: #{vae_forward.1} parent=0 // pred_check_branch
    %22 = sbr.rel (0) target = $region13
  $region12: #{vae_forward.1} parent=0 // pred_region
    _
  $region13: #{vae_forward.1} parent=0 // pred_fallthru
    _
  // Predicated region
  $region14: #{vae_forward.1} parent=0 // pred_check
    _
  $region15: #{vae_forward.1} parent=0 // pred_check_branch
    %24 = sbr.rel (0) target = $region17
  $region16: #{vae_forward.1} parent=0 // pred_region
    _
  $region17: #{vae_forward.1} parent=0 // pred_fallthru
    _
  // Predicated region
  $region18: #{vae_forward.1} parent=0 // pred_check
    _
  $region19: #{vae_forward.1} parent=0 // pred_check_branch
    %26 = sbr.rel (0) target = $region21
  $region20: #{vae_forward.1} parent=0 // pred_region
    _
  $region21: #{vae_forward.1} parent=0 // pred_fallthru
    _
  // Predicated region
  $region22: #{vae_forward.1} parent=0 // pred_check
    _
  $region23: #{vae_forward.1} parent=0 // pred_check_branch
    %28 = sbr.rel (0) target = $region25
  $region24: #{vae_forward.1} parent=0 // pred_region
    _
  $region25: #{vae_forward.1} parent=0 // pred_fallthru
    _
  // Predicated region
  $region26: #{vae_forward.1} parent=0 // pred_check
    _
  $region27: #{vae_forward.1} parent=0 // pred_check_branch
    %30 = sbr.rel (0) target = $region29
  $region28: #{vae_forward.1} parent=0 // pred_region
    _
  $region29: #{vae_forward.1} parent=0 // pred_fallthru
    _
  // Predicated region
  $region30: #{vae_forward.1} parent=0 // pred_check
    _
  $region31: #{vae_forward.1} parent=0 // pred_check_branch
    %32 = sbr.rel (0) target = $region33
  $region32: #{vae_forward.1} parent=0 // pred_region
    _
  $region33: #{vae_forward.1} parent=0 // pred_fallthru
    _
  // Predicated region
  $region34: #{vae_forward.1} parent=0 // pred_check
    _
  $region35: #{vae_forward.1} parent=0 // pred_check_branch
    %34 = sbr.rel (0) target = $region37
  $region36: #{vae_forward.1} parent=0 // pred_region
    _
  $region37: #{vae_forward.1} parent=0 // pred_fallthru
    _
  // Predicated region
  $region38: #{vae_forward.1} parent=0 // pred_check
    _
  $region39: #{vae_forward.1} parent=0 // pred_check_branch
    %36 = sbr.rel (0) target = $region41
  $region40: #{vae_forward.1} parent=0 // pred_region
    _
  $region41: #{vae_forward.1} parent=0 // pred_fallthru
    _
  %v38 = vld [vmem:[%s0] sm:$0xff]
  %v39 = vld [vmem:[%s0 + $0x8] sm:$0xff]
  %v40 = vld [vmem:[%s0 + $0x10] sm:$0xff]
  %v41 = vld [vmem:[%s0 + $0x18] sm:$0xff]
  %v42 = vld [vmem:[%s0 + $0x20] sm:$0xff]
  %v43 = vld [vmem:[%s0 + $0x28] sm:$0xff]
  %v44 = vld [vmem:[%s0 + $0x30] sm:$0xff]
  %v45 = vld [vmem:[%s0 + $0x38] sm:$0xff]
  %v46 = vld [vmem:[%s0 + $0x40] sm:$0xff]
  %v47 = vld [vmem:[%s0 + $0x48] sm:$0xff]
  %v48 = vld [vmem:[%s0 + $0x50] sm:$0xff]
  %v49 = vld [vmem:[%s0 + $0x58] sm:$0xff]
  %v50 = vld [vmem:[%s0 + $0x60] sm:$0xff]
  %v51 = vld [vmem:[%s0 + $0x68] sm:$0xff]
  %v52 = vpack.c.bf16 %v45, %v38
  %v53 = vpack.c.bf16 %v46, %v39
  %v54 = vpack.c.bf16 %v47, %v40
  %v55 = vpack.c.bf16 %v48, %v41
  %v56 = vpack.c.bf16 %v49, %v42
  %v57 = vpack.c.bf16 %v50, %v43
  %v58 = vpack.c.bf16 %v51, %v44
  %v59 = vld [vmem:[%s2] sm:$0xff]
  %v60 = vld [vmem:[%s2 + $0x8] sm:$0xff]
  %v61 = vld [vmem:[%s2 + $0x10] sm:$0xff]
  %v62 = vld [vmem:[%s2 + $0x18] sm:$0xff]
  %v63 = vld [vmem:[%s2 + $0x20] sm:$0xff]
  %v64 = vld [vmem:[%s2 + $0x28] sm:$0xff]
  %v65 = vld [vmem:[%s2 + $0x30] sm:$0xff]
  %v66 = vld [vmem:[%s2 + $0x38] sm:$0xff]
  %v67 = vld [vmem:[%s2 + $0x40] sm:$0xff]
  %v68 = vld [vmem:[%s2 + $0x48] sm:$0xff]
  %v69 = vld [vmem:[%s2 + $0x50] sm:$0xff]
  %v70 = vld [vmem:[%s2 + $0x58] sm:$0xff]
  %v71 = vld [vmem:[%s2 + $0x60] sm:$0xff]
  %v72 = vld [vmem:[%s2 + $0x68] sm:$0xff]
  %v73 = vld [vmem:[%s2 + $0x70] sm:$0xff]
  %v74 = vld [vmem:[%s2 + $0x78] sm:$0xff]
  %v75 = vld [vmem:[%s2 + $0x80] sm:$0xff]
  %v76 = vld [vmem:[%s2 + $0x88] sm:$0xff]
  %v77 = vld [vmem:[%s2 + $0x90] sm:$0xff]
  %v78 = vld [vmem:[%s2 + $0x98] sm:$0xff]
  %v79 = vld [vmem:[%s2 + $0xa0] sm:$0xff]
  %v80 = vld [vmem:[%s2 + $0xa8] sm:$0xff]
  %v81 = vld [vmem:[%s2 + $0xb0] sm:$0xff]
  %v82 = vld [vmem:[%s2 + $0xb8] sm:$0xff]
  %v83 = vld [vmem:[%s2 + $0xc0] sm:$0xff]
  %v84 = vld [vmem:[%s2 + $0xc8] sm:$0xff]
  %v85 = vld [vmem:[%s2 + $0xd0] sm:$0xff]
  %v86 = vld [vmem:[%s2 + $0xd8] sm:$0xff]
  %v87 = vld [vmem:[%s2 + $0xe0] sm:$0xff]
  %v88 = vld [vmem:[%s2 + $0xe8] sm:$0xff]
  %v89 = vld [vmem:[%s2 + $0xf0] sm:$0xff]
  %v90 = vld [vmem:[%s2 + $0xf8] sm:$0xff]
  %v91 = vld [vmem:[%s2 + $0x100] sm:$0xff]
  %v92 = vld [vmem:[%s2 + $0x108] sm:$0xff]
  %v93 = vld [vmem:[%s2 + $0x110] sm:$0xff]
  %v94 = vld [vmem:[%s2 + $0x118] sm:$0xff]
  %v95 = vld [vmem:[%s2 + $0x120] sm:$0xff]
  %v96 = vld [vmem:[%s2 + $0x128] sm:$0xff]
  %v97 = vld [vmem:[%s2 + $0x130] sm:$0xff]
  %v98 = vld [vmem:[%s2 + $0x138] sm:$0xff]
  %v99 = vld [vmem:[%s2 + $0x140] sm:$0xff]
  %v100 = vld [vmem:[%s2 + $0x148] sm:$0xff]
  %v101 = vld [vmem:[%s2 + $0x150] sm:$0xff]
  %v102 = vld [vmem:[%s2 + $0x158] sm:$0xff]
  %v103 = vld [vmem:[%s2 + $0x160] sm:$0xff]
  %v104 = vld [vmem:[%s2 + $0x168] sm:$0xff]
  %v105 = vld [vmem:[%s2 + $0x170] sm:$0xff]
  %v106 = vld [vmem:[%s2 + $0x178] sm:$0xff]
  %v107 = vld [vmem:[%s2 + $0x180] sm:$0xff]
  %v108 = vld [vmem:[%s2 + $0x188] sm:$0xff]
  %v109 = vld [vmem:[%s2 + $0x190] sm:$0xff]
  %v110 = vld [vmem:[%s2 + $0x198] sm:$0xff]
  %v111 = vld [vmem:[%s2 + $0x1a0] sm:$0xff]
  %v112 = vld [vmem:[%s2 + $0x1a8] sm:$0xff]
  %v113 = vld [vmem:[%s2 + $0x1b0] sm:$0xff]
  %v114 = vld [vmem:[%s2 + $0x1b8] sm:$0xff]
  %v115 = vld [vmem:[%s2 + $0x1c0] sm:$0xff]
  %v116 = vld [vmem:[%s2 + $0x1c8] sm:$0xff]
  %v117 = vld [vmem:[%s2 + $0x1d0] sm:$0xff]
  %v118 = vld [vmem:[%s2 + $0x1d8] sm:$0xff]
  %v119 = vld [vmem:[%s2 + $0x1e0] sm:$0xff]
  %v120 = vld [vmem:[%s2 + $0x1e8] sm:$0xff]
  %v121 = vld [vmem:[%s2 + $0x1f0] sm:$0xff]
  %v122 = vld [vmem:[%s2 + $0x1f8] sm:$0xff]
  %v123 = vld [vmem:[%s2 + $0x200] sm:$0xff]
  %v124 = vld [vmem:[%s2 + $0x208] sm:$0xff]
  %v125 = vld [vmem:[%s2 + $0x210] sm:$0xff]
  %v126 = vld [vmem:[%s2 + $0x218] sm:$0xff]
  %v127 = vld [vmem:[%s2 + $0x220] sm:$0xff]
  %v128 = vld [vmem:[%s2 + $0x228] sm:$0xff]
  %v129 = vld [vmem:[%s2 + $0x230] sm:$0xff]
  %v130 = vld [vmem:[%s2 + $0x238] sm:$0xff]
  %v131 = vld [vmem:[%s2 + $0x240] sm:$0xff]
  %v132 = vld [vmem:[%s2 + $0x248] sm:$0xff]
  %v133 = vld [vmem:[%s2 + $0x250] sm:$0xff]
  %v134 = vld [vmem:[%s2 + $0x258] sm:$0xff]
  %v135 = vld [vmem:[%s2 + $0x260] sm:$0xff]
  %v136 = vld [vmem:[%s2 + $0x268] sm:$0xff]
  %v137 = vld [vmem:[%s2 + $0x270] sm:$0xff]
  %v138 = vld [vmem:[%s2 + $0x278] sm:$0xff]
  %v139 = vld [vmem:[%s2 + $0x280] sm:$0xff]
  %v140 = vld [vmem:[%s2 + $0x288] sm:$0xff]
  %v141 = vld [vmem:[%s2 + $0x290] sm:$0xff]
  %v142 = vld [vmem:[%s2 + $0x298] sm:$0xff]
  %v143 = vld [vmem:[%s2 + $0x2a0] sm:$0xff]
  %v144 = vld [vmem:[%s2 + $0x2a8] sm:$0xff]
  %v145 = vld [vmem:[%s2 + $0x2b0] sm:$0xff]
  %v146 = vld [vmem:[%s2 + $0x2b8] sm:$0xff]
  %v147 = vld [vmem:[%s2 + $0x2c0] sm:$0xff]
  %v148 = vld [vmem:[%s2 + $0x2c8] sm:$0xff]
  %v149 = vld [vmem:[%s2 + $0x2d0] sm:$0xff]
  %v150 = vld [vmem:[%s2 + $0x2d8] sm:$0xff]
  %v151 = vld [vmem:[%s2 + $0x2e0] sm:$0xff]
  %v152 = vld [vmem:[%s2 + $0x2e8] sm:$0xff]
  %v153 = vld [vmem:[%s2 + $0x2f0] sm:$0xff]
  %v154 = vld [vmem:[%s2 + $0x2f8] sm:$0xff]
  %v155 = vld [vmem:[%s2 + $0x300] sm:$0xff]
  %v156 = vld [vmem:[%s2 + $0x308] sm:$0xff]
  %v157 = vld [vmem:[%s2 + $0x310] sm:$0xff]
  %v158 = vld [vmem:[%s2 + $0x318] sm:$0xff]
  %v159 = vld [vmem:[%s2 + $0x320] sm:$0xff]
  %v160 = vld [vmem:[%s2 + $0x328] sm:$0xff]
  %v161 = vld [vmem:[%s2 + $0x330] sm:$0xff]
  %v162 = vld [vmem:[%s2 + $0x338] sm:$0xff]
  %v163 = vld [vmem:[%s2 + $0x340] sm:$0xff]
  %v164 = vld [vmem:[%s2 + $0x348] sm:$0xff]
  %v165 = vld [vmem:[%s2 + $0x350] sm:$0xff]
  %v166 = vld [vmem:[%s2 + $0x358] sm:$0xff]
  %v167 = vld [vmem:[%s2 + $0x360] sm:$0xff]
  %v168 = vld [vmem:[%s2 + $0x368] sm:$0xff]
  %v169 = vld [vmem:[%s2 + $0x370] sm:$0xff]
  %v170 = vld [vmem:[%s2 + $0x378] sm:$0xff]
  %v171 = vld [vmem:[%s2 + $0x380] sm:$0xff]
  %v172 = vld [vmem:[%s2 + $0x388] sm:$0xff]
  %v173 = vld [vmem:[%s2 + $0x390] sm:$0xff]
  %v174 = vld [vmem:[%s2 + $0x398] sm:$0xff]
  %v175 = vld [vmem:[%s2 + $0x3a0] sm:$0xff]
  %v176 = vld [vmem:[%s2 + $0x3a8] sm:$0xff]
  %v177 = vld [vmem:[%s2 + $0x3b0] sm:$0xff]
  %v178 = vld [vmem:[%s2 + $0x3b8] sm:$0xff]
  %v179 = vld [vmem:[%s2 + $0x3c0] sm:$0xff]
  %v180 = vld [vmem:[%s2 + $0x3c8] sm:$0xff]
  %v181 = vld [vmem:[%s2 + $0x3d0] sm:$0xff]
  %v182 = vld [vmem:[%s2 + $0x3d8] sm:$0xff]
  %v183 = vld [vmem:[%s2 + $0x3e0] sm:$0xff]
  %v184 = vld [vmem:[%s2 + $0x3e8] sm:$0xff]
  %v185 = vld [vmem:[%s2 + $0x3f0] sm:$0xff]
  %v186 = vld [vmem:[%s2 + $0x3f8] sm:$0xff]
  %v187 = vld [vmem:[%s2 + $0x400] sm:$0xff]
  %v188 = vld [vmem:[%s2 + $0x408] sm:$0xff]
  %v189 = vld [vmem:[%s2 + $0x410] sm:$0xff]
  %v190 = vld [vmem:[%s2 + $0x418] sm:$0xff]
  %v191 = vld [vmem:[%s2 + $0x420] sm:$0xff]
  %v192 = vld [vmem:[%s2 + $0x428] sm:$0xff]
  %v193 = vld [vmem:[%s2 + $0x430] sm:$0xff]
  %v194 = vld [vmem:[%s2 + $0x438] sm:$0xff]
  %v195 = vld [vmem:[%s2 + $0x440] sm:$0xff]
  %v196 = vld [vmem:[%s2 + $0x448] sm:$0xff]
  %v197 = vld [vmem:[%s2 + $0x450] sm:$0xff]
  %v198 = vld [vmem:[%s2 + $0x458] sm:$0xff]
  %v199 = vld [vmem:[%s2 + $0x460] sm:$0xff]
  %v200 = vld [vmem:[%s2 + $0x468] sm:$0xff]
  %v201 = vld [vmem:[%s2 + $0x470] sm:$0xff]
  %v202 = vld [vmem:[%s2 + $0x478] sm:$0xff]
  %v203 = vld [vmem:[%s2 + $0x480] sm:$0xff]
  %v204 = vld [vmem:[%s2 + $0x488] sm:$0xff]
  %v205 = vld [vmem:[%s2 + $0x490] sm:$0xff]
  %v206 = vld [vmem:[%s2 + $0x498] sm:$0xff]
  %v207 = vld [vmem:[%s2 + $0x4a0] sm:$0xff]
  %v208 = vld [vmem:[%s2 + $0x4a8] sm:$0xff]
  %v209 = vld [vmem:[%s2 + $0x4b0] sm:$0xff]
  %v210 = vld [vmem:[%s2 + $0x4b8] sm:$0xff]
  %v211 = vld [vmem:[%s2 + $0x4c0] sm:$0xff]
  %v212 = vld [vmem:[%s2 + $0x4c8] sm:$0xff]
  %v213 = vld [vmem:[%s2 + $0x4d0] sm:$0xff]
  %v214 = vld [vmem:[%s2 + $0x4d8] sm:$0xff]
  %v215 = vld [vmem:[%s2 + $0x4e0] sm:$0xff]
  %v216 = vld [vmem:[%s2 + $0x4e8] sm:$0xff]
  %v217 = vld [vmem:[%s2 + $0x4f0] sm:$0xff]
  %v218 = vld [vmem:[%s2 + $0x4f8] sm:$0xff]
  %v219 = vld [vmem:[%s2 + $0x500] sm:$0xff]
  %v220 = vld [vmem:[%s2 + $0x508] sm:$0xff]
  %v221 = vld [vmem:[%s2 + $0x510] sm:$0xff]
  %v222 = vld [vmem:[%s2 + $0x518] sm:$0xff]
  %v223 = vld [vmem:[%s2 + $0x520] sm:$0xff]
  %v224 = vld [vmem:[%s2 + $0x528] sm:$0xff]
  %v225 = vld [vmem:[%s2 + $0x530] sm:$0xff]
  %v226 = vld [vmem:[%s2 + $0x538] sm:$0xff]
  %v227 = vld [vmem:[%s2 + $0x540] sm:$0xff]
  %v228 = vld [vmem:[%s2 + $0x548] sm:$0xff]
  %v229 = vld [vmem:[%s2 + $0x550] sm:$0xff]
  %v230 = vld [vmem:[%s2 + $0x558] sm:$0xff]
  %v231 = vld [vmem:[%s2 + $0x560] sm:$0xff]
  %v232 = vld [vmem:[%s2 + $0x568] sm:$0xff]
  %v233 = vld [vmem:[%s2 + $0x570] sm:$0xff]
  %v234 = vld [vmem:[%s2 + $0x578] sm:$0xff]
  %v235 = vld [vmem:[%s2 + $0x580] sm:$0xff]
  %v236 = vld [vmem:[%s2 + $0x588] sm:$0xff]
  %v237 = vld [vmem:[%s2 + $0x590] sm:$0xff]
  %v238 = vld [vmem:[%s2 + $0x598] sm:$0xff]
  %v239 = vld [vmem:[%s2 + $0x5a0] sm:$0xff]
  %v240 = vld [vmem:[%s2 + $0x5a8] sm:$0xff]
  %v241 = vld [vmem:[%s2 + $0x5b0] sm:$0xff]
  %v242 = vld [vmem:[%s2 + $0x5b8] sm:$0xff]
  %v243 = vld [vmem:[%s2 + $0x5c0] sm:$0xff]
  %v244 = vld [vmem:[%s2 + $0x5c8] sm:$0xff]
  %v245 = vld [vmem:[%s2 + $0x5d0] sm:$0xff]
  %v246 = vld [vmem:[%s2 + $0x5d8] sm:$0xff]
  %v247 = vld [vmem:[%s2 + $0x5e0] sm:$0xff]
  %v248 = vld [vmem:[%s2 + $0x5e8] sm:$0xff]
  %v249 = vld [vmem:[%s2 + $0x5f0] sm:$0xff]
  %v250 = vld [vmem:[%s2 + $0x5f8] sm:$0xff]
  %v251 = vld [vmem:[%s2 + $0x600] sm:$0xff]
  %v252 = vld [vmem:[%s2 + $0x608] sm:$0xff]
  %v253 = vld [vmem:[%s2 + $0x610] sm:$0xff]
  %v254 = vld [vmem:[%s2 + $0x618] sm:$0xff]
  %v255 = vld [vmem:[%s3] sm:$0xf]
  %v257 = vlaneseq
  %v258 = vshrl.u32 %v257, 7
  %v259 = vsub.s32 0, %v258
  %v260 = vrot.slane %v255, %v259
  %v261 = vlaneseq
  %v262 = vshrl.u32 %v261, 7
  %v263 = vsub.s32 1, %v262
  %v264 = vrot.slane %v255, %v263
  %v265 = vlaneseq
  %v266 = vshrl.u32 %v265, 7
  %v267 = vsub.s32 2, %v266
  %v268 = vrot.slane %v255, %v267
  %v269 = vlaneseq
  %v270 = vshrl.u32 %v269, 7
  %v271 = vsub.s32 3, %v270
  %v272 = vrot.slane %v255, %v271
  %v473 = vunpack.c.l.b16 %v59
  %v474 = vunpack.c.h.b16 %v59
  %v475 = vunpack.c.l.b16 %v60
  %v476 = vunpack.c.h.b16 %v60
  %v477 = vunpack.c.l.b16 %v61
  %v478 = vunpack.c.h.b16 %v61
  %v479 = vunpack.c.l.b16 %v62
  %v480 = vunpack.c.h.b16 %v62
  %v481 = vunpack.c.l.b16 %v63
  %v482 = vunpack.c.h.b16 %v63
  %v483 = vunpack.c.l.b16 %v64
  %v484 = vunpack.c.h.b16 %v64
  %v485 = vunpack.c.l.b16 %v65
  %v486 = vunpack.c.h.b16 %v65
  %v487 = vunpack.c.l.b16 %v66
  %v488 = vunpack.c.h.b16 %v66
  %v489 = vunpack.c.l.b16 %v67
  %v490 = vunpack.c.h.b16 %v67
  %v491 = vunpack.c.l.b16 %v68
  %v492 = vunpack.c.h.b16 %v68
  %v493 = vunpack.c.l.b16 %v69
  %v494 = vunpack.c.h.b16 %v69
  %v495 = vunpack.c.l.b16 %v70
  %v496 = vunpack.c.h.b16 %v70
  %v497 = vunpack.c.l.b16 %v71
  %v498 = vunpack.c.h.b16 %v71
  %v499 = vunpack.c.l.b16 %v72
  %v500 = vunpack.c.h.b16 %v72
  %v501 = vunpack.c.l.b16 %v73
  %v502 = vunpack.c.h.b16 %v73
  %v503 = vunpack.c.l.b16 %v74
  %v504 = vunpack.c.h.b16 %v74
  %v505 = vunpack.c.l.b16 %v75
  %v506 = vunpack.c.h.b16 %v75
  %v507 = vunpack.c.l.b16 %v76
  %v508 = vunpack.c.h.b16 %v76
  %v509 = vunpack.c.l.b16 %v77
  %v510 = vunpack.c.h.b16 %v77
  %v511 = vunpack.c.l.b16 %v78
  %v512 = vunpack.c.h.b16 %v78
  %v513 = vunpack.c.l.b16 %v79
  %v514 = vunpack.c.h.b16 %v79
  %v515 = vunpack.c.l.b16 %v80
  %v516 = vunpack.c.h.b16 %v80
  %v517 = vunpack.c.l.b16 %v81
  %v518 = vunpack.c.h.b16 %v81
  %v519 = vunpack.c.l.b16 %v82
  %v520 = vunpack.c.h.b16 %v82
  %v521 = vunpack.c.l.b16 %v83
  %v522 = vunpack.c.h.b16 %v83
  %v523 = vunpack.c.l.b16 %v84
  %v524 = vunpack.c.h.b16 %v84
  %v525 = vunpack.c.l.b16 %v85
  %v526 = vunpack.c.h.b16 %v85
  %v527 = vunpack.c.l.b16 %v86
  %v528 = vunpack.c.h.b16 %v86
  %v529 = vunpack.c.l.b16 %v87
  %v530 = vunpack.c.h.b16 %v87
  %v531 = vunpack.c.l.b16 %v88
  %v532 = vunpack.c.h.b16 %v88
  %v533 = vunpack.c.l.b16 %v89
  %v534 = vunpack.c.h.b16 %v89
  %v535 = vunpack.c.l.b16 %v90
  %v536 = vunpack.c.h.b16 %v90
  %v537 = vunpack.c.l.b16 %v91
  %v538 = vunpack.c.h.b16 %v91
  %v539 = vunpack.c.l.b16 %v92
  %v540 = vunpack.c.h.b16 %v92
  %v541 = vunpack.c.l.b16 %v93
  %v542 = vunpack.c.h.b16 %v93
  %v543 = vunpack.c.l.b16 %v94
  %v544 = vunpack.c.h.b16 %v94
  %v545 = vunpack.c.l.b16 %v95
  %v546 = vunpack.c.h.b16 %v95
  %v547 = vunpack.c.l.b16 %v96
  %v548 = vunpack.c.h.b16 %v96
  %v549 = vunpack.c.l.b16 %v97
  %v550 = vunpack.c.h.b16 %v97
  %v551 = vunpack.c.l.b16 %v98
  %v552 = vunpack.c.h.b16 %v98
  %v553 = vunpack.c.l.b16 %v99
  %v554 = vunpack.c.h.b16 %v99
  %v555 = vunpack.c.l.b16 %v100
  %v556 = vunpack.c.h.b16 %v100
  %v557 = vunpack.c.l.b16 %v101
  %v558 = vunpack.c.h.b16 %v101
  %v559 = vunpack.c.l.b16 %v102
  %v560 = vunpack.c.h.b16 %v102
  %v561 = vunpack.c.l.b16 %v103
  %v562 = vunpack.c.h.b16 %v103
  %v563 = vunpack.c.l.b16 %v104
  %v564 = vunpack.c.h.b16 %v104
  %v565 = vunpack.c.l.b16 %v105
  %v566 = vunpack.c.h.b16 %v105
  %v567 = vunpack.c.l.b16 %v106
  %v568 = vunpack.c.h.b16 %v106
  %v569 = vunpack.c.l.b16 %v107
  %v570 = vunpack.c.h.b16 %v107
  %v571 = vunpack.c.l.b16 %v108
  %v572 = vunpack.c.h.b16 %v108
  %v573 = vunpack.c.l.b16 %v109
  %v574 = vunpack.c.h.b16 %v109
  %v575 = vunpack.c.l.b16 %v110
  %v576 = vunpack.c.h.b16 %v110
  %v577 = vunpack.c.l.b16 %v111
  %v578 = vunpack.c.h.b16 %v111
  %v579 = vunpack.c.l.b16 %v112
  %v580 = vunpack.c.h.b16 %v112
  %v581 = vunpack.c.l.b16 %v113
  %v582 = vunpack.c.h.b16 %v113
  %v583 = vunpack.c.l.b16 %v114
  %v584 = vunpack.c.h.b16 %v114
  %v585 = vunpack.c.l.b16 %v115
  %v586 = vunpack.c.h.b16 %v115
  %v587 = vunpack.c.l.b16 %v116
  %v588 = vunpack.c.h.b16 %v116
  %v589 = vunpack.c.l.b16 %v117
  %v590 = vunpack.c.h.b16 %v117
  %v591 = vunpack.c.l.b16 %v118
  %v592 = vunpack.c.h.b16 %v118
  %v593 = vunpack.c.l.b16 %v119
  %v594 = vunpack.c.h.b16 %v119
  %v595 = vunpack.c.l.b16 %v120
  %v596 = vunpack.c.h.b16 %v120
  %v597 = vunpack.c.l.b16 %v121
  %v598 = vunpack.c.h.b16 %v121
  %v599 = vunpack.c.l.b16 %v122
  %v600 = vunpack.c.h.b16 %v122
  %v601 = vunpack.c.l.b16 %v123
  %v602 = vunpack.c.h.b16 %v123
  %v603 = vunpack.c.l.b16 %v124
  %v604 = vunpack.c.h.b16 %v124
  %v605 = vunpack.c.l.b16 %v125
  %v606 = vunpack.c.h.b16 %v125
  %v607 = vunpack.c.l.b16 %v126
  %v608 = vunpack.c.h.b16 %v126
  %v609 = vunpack.c.l.b16 %v127
  %v610 = vunpack.c.h.b16 %v127
  %v611 = vunpack.c.l.b16 %v128
  %v612 = vunpack.c.h.b16 %v128
  %v613 = vunpack.c.l.b16 %v129
  %v614 = vunpack.c.h.b16 %v129
  %v615 = vunpack.c.l.b16 %v130
  %v616 = vunpack.c.h.b16 %v130
  %v617 = vunpack.c.l.b16 %v131
  %v618 = vunpack.c.h.b16 %v131
  %v619 = vunpack.c.l.b16 %v132
  %v620 = vunpack.c.h.b16 %v132
  %v621 = vunpack.c.l.b16 %v133
  %v622 = vunpack.c.h.b16 %v133
  %v623 = vunpack.c.l.b16 %v134
  %v624 = vunpack.c.h.b16 %v134
  %v625 = vunpack.c.l.b16 %v135
  %v626 = vunpack.c.h.b16 %v135
  %v627 = vunpack.c.l.b16 %v136
  %v628 = vunpack.c.h.b16 %v136
  %v629 = vunpack.c.l.b16 %v137
  %v630 = vunpack.c.h.b16 %v137
  %v631 = vunpack.c.l.b16 %v138
  %v632 = vunpack.c.h.b16 %v138
  %v633 = vunpack.c.l.b16 %v139
  %v634 = vunpack.c.h.b16 %v139
  %v635 = vunpack.c.l.b16 %v140
  %v636 = vunpack.c.h.b16 %v140
  %v637 = vunpack.c.l.b16 %v141
  %v638 = vunpack.c.h.b16 %v141
  %v639 = vunpack.c.l.b16 %v142
  %v640 = vunpack.c.h.b16 %v142
  %v641 = vunpack.c.l.b16 %v143
  %v642 = vunpack.c.h.b16 %v143
  %v643 = vunpack.c.l.b16 %v144
  %v644 = vunpack.c.h.b16 %v144
  %v645 = vunpack.c.l.b16 %v145
  %v646 = vunpack.c.h.b16 %v145
  %v647 = vunpack.c.l.b16 %v146
  %v648 = vunpack.c.h.b16 %v146
  %v649 = vunpack.c.l.b16 %v147
  %v650 = vunpack.c.h.b16 %v147
  %v651 = vunpack.c.l.b16 %v148
  %v652 = vunpack.c.h.b16 %v148
  %v653 = vunpack.c.l.b16 %v149
  %v654 = vunpack.c.h.b16 %v149
  %v655 = vunpack.c.l.b16 %v150
  %v656 = vunpack.c.h.b16 %v150
  %v657 = vunpack.c.l.b16 %v151
  %v658 = vunpack.c.h.b16 %v151
  %v659 = vunpack.c.l.b16 %v152
  %v660 = vunpack.c.h.b16 %v152
  %v661 = vunpack.c.l.b16 %v153
  %v662 = vunpack.c.h.b16 %v153
  %v663 = vunpack.c.l.b16 %v154
  %v664 = vunpack.c.h.b16 %v154
  %v665 = vunpack.c.l.b16 %v155
  %v666 = vunpack.c.h.b16 %v155
  %v667 = vunpack.c.l.b16 %v156
  %v668 = vunpack.c.h.b16 %v156
  %v669 = vunpack.c.l.b16 %v157
  %v670 = vunpack.c.h.b16 %v157
  %v671 = vunpack.c.l.b16 %v158
  %v672 = vunpack.c.h.b16 %v158
  %v673 = vunpack.c.l.b16 %v159
  %v674 = vunpack.c.h.b16 %v159
  %v675 = vunpack.c.l.b16 %v160
  %v676 = vunpack.c.h.b16 %v160
  %v677 = vunpack.c.l.b16 %v161
  %v678 = vunpack.c.h.b16 %v161
  %v679 = vunpack.c.l.b16 %v162
  %v680 = vunpack.c.h.b16 %v162
  %v681 = vunpack.c.l.b16 %v163
  %v682 = vunpack.c.h.b16 %v163
  %v683 = vunpack.c.l.b16 %v164
  %v684 = vunpack.c.h.b16 %v164
  %v685 = vunpack.c.l.b16 %v165
  %v686 = vunpack.c.h.b16 %v165
  %v687 = vunpack.c.l.b16 %v166
  %v688 = vunpack.c.h.b16 %v166
  %v689 = vunpack.c.l.b16 %v167
  %v690 = vunpack.c.h.b16 %v167
  %v691 = vunpack.c.l.b16 %v168
  %v692 = vunpack.c.h.b16 %v168
  %v693 = vunpack.c.l.b16 %v169
  %v694 = vunpack.c.h.b16 %v169
  %v695 = vunpack.c.l.b16 %v170
  %v696 = vunpack.c.h.b16 %v170
  %v697 = vunpack.c.l.b16 %v171
  %v698 = vunpack.c.h.b16 %v171
  %v699 = vunpack.c.l.b16 %v172
  %v700 = vunpack.c.h.b16 %v172
  %v701 = vunpack.c.l.b16 %v173
  %v702 = vunpack.c.h.b16 %v173
  %v703 = vunpack.c.l.b16 %v174
  %v704 = vunpack.c.h.b16 %v174
  %v705 = vunpack.c.l.b16 %v175
  %v706 = vunpack.c.h.b16 %v175
  %v707 = vunpack.c.l.b16 %v176
  %v708 = vunpack.c.h.b16 %v176
  %v709 = vunpack.c.l.b16 %v177
  %v710 = vunpack.c.h.b16 %v177
  %v711 = vunpack.c.l.b16 %v178
  %v712 = vunpack.c.h.b16 %v178
  %v713 = vunpack.c.l.b16 %v179
  %v714 = vunpack.c.h.b16 %v179
  %v715 = vunpack.c.l.b16 %v180
  %v716 = vunpack.c.h.b16 %v180
  %v717 = vunpack.c.l.b16 %v181
  %v718 = vunpack.c.h.b16 %v181
  %v719 = vunpack.c.l.b16 %v182
  %v720 = vunpack.c.h.b16 %v182
  %v721 = vunpack.c.l.b16 %v183
  %v722 = vunpack.c.h.b16 %v183
  %v723 = vunpack.c.l.b16 %v184
  %v724 = vunpack.c.h.b16 %v184
  %v725 = vunpack.c.l.b16 %v185
  %v726 = vunpack.c.h.b16 %v185
  %v727 = vunpack.c.l.b16 %v186
  %v728 = vunpack.c.h.b16 %v186
  %v729 = vunpack.c.l.b16 %v187
  %v730 = vunpack.c.h.b16 %v187
  %v731 = vunpack.c.l.b16 %v188
  %v732 = vunpack.c.h.b16 %v188
  %v733 = vunpack.c.l.b16 %v189
  %v734 = vunpack.c.h.b16 %v189
  %v735 = vunpack.c.l.b16 %v190
  %v736 = vunpack.c.h.b16 %v190
  %v737 = vunpack.c.l.b16 %v191
  %v738 = vunpack.c.h.b16 %v191
  %v739 = vunpack.c.l.b16 %v192
  %v740 = vunpack.c.h.b16 %v192
  %v741 = vunpack.c.l.b16 %v193
  %v742 = vunpack.c.h.b16 %v193
  %v743 = vunpack.c.l.b16 %v194
  %v744 = vunpack.c.h.b16 %v194
  %v745 = vunpack.c.l.b16 %v195
  %v746 = vunpack.c.h.b16 %v195
  %v747 = vunpack.c.l.b16 %v196
  %v748 = vunpack.c.h.b16 %v196
  %v749 = vunpack.c.l.b16 %v197
  %v750 = vunpack.c.h.b16 %v197
  %v751 = vunpack.c.l.b16 %v198
  %v752 = vunpack.c.h.b16 %v198
  %v753 = vunpack.c.l.b16 %v199
  %v754 = vunpack.c.h.b16 %v199
  %v755 = vunpack.c.l.b16 %v200
  %v756 = vunpack.c.h.b16 %v200
  %v757 = vunpack.c.l.b16 %v201
  %v758 = vunpack.c.h.b16 %v201
  %v759 = vunpack.c.l.b16 %v202
  %v760 = vunpack.c.h.b16 %v202
  %v761 = vunpack.c.l.b16 %v203
  %v762 = vunpack.c.h.b16 %v203
  %v763 = vunpack.c.l.b16 %v204
  %v764 = vunpack.c.h.b16 %v204
  %v765 = vunpack.c.l.b16 %v205
  %v766 = vunpack.c.h.b16 %v205
  %v767 = vunpack.c.l.b16 %v206
  %v768 = vunpack.c.h.b16 %v206
  %v769 = vunpack.c.l.b16 %v207
  %v770 = vunpack.c.h.b16 %v207
  %v771 = vunpack.c.l.b16 %v208
  %v772 = vunpack.c.h.b16 %v208
  %v773 = vunpack.c.l.b16 %v209
  %v774 = vunpack.c.h.b16 %v209
  %v775 = vunpack.c.l.b16 %v210
  %v776 = vunpack.c.h.b16 %v210
  %v777 = vunpack.c.l.b16 %v211
  %v778 = vunpack.c.h.b16 %v211
  %v779 = vunpack.c.l.b16 %v212
  %v780 = vunpack.c.h.b16 %v212
  %v781 = vunpack.c.l.b16 %v213
  %v782 = vunpack.c.h.b16 %v213
  %v783 = vunpack.c.l.b16 %v214
  %v784 = vunpack.c.h.b16 %v214
  %v785 = vunpack.c.l.b16 %v215
  %v786 = vunpack.c.h.b16 %v215
  %v787 = vunpack.c.l.b16 %v216
  %v788 = vunpack.c.h.b16 %v216
  %v789 = vunpack.c.l.b16 %v217
  %v790 = vunpack.c.h.b16 %v217
  %v791 = vunpack.c.l.b16 %v218
  %v792 = vunpack.c.h.b16 %v218
  %v793 = vunpack.c.l.b16 %v219
  %v794 = vunpack.c.h.b16 %v219
  %v795 = vunpack.c.l.b16 %v220
  %v796 = vunpack.c.h.b16 %v220
  %v797 = vunpack.c.l.b16 %v221
  %v798 = vunpack.c.h.b16 %v221
  %v799 = vunpack.c.l.b16 %v222
  %v800 = vunpack.c.h.b16 %v222
  %v801 = vunpack.c.l.b16 %v223
  %v802 = vunpack.c.h.b16 %v223
  %v803 = vunpack.c.l.b16 %v224
  %v804 = vunpack.c.h.b16 %v224
  %v805 = vunpack.c.l.b16 %v225
  %v806 = vunpack.c.h.b16 %v225
  %v807 = vunpack.c.l.b16 %v226
  %v808 = vunpack.c.h.b16 %v226
  %v809 = vunpack.c.l.b16 %v227
  %v810 = vunpack.c.h.b16 %v227
  %v811 = vunpack.c.l.b16 %v228
  %v812 = vunpack.c.h.b16 %v228
  %v813 = vunpack.c.l.b16 %v229
  %v814 = vunpack.c.h.b16 %v229
  %v815 = vunpack.c.l.b16 %v230
  %v816 = vunpack.c.h.b16 %v230
  %v817 = vunpack.c.l.b16 %v231
  %v818 = vunpack.c.h.b16 %v231
  %v819 = vunpack.c.l.b16 %v232
  %v820 = vunpack.c.h.b16 %v232
  %v821 = vunpack.c.l.b16 %v233
  %v822 = vunpack.c.h.b16 %v233
  %v823 = vunpack.c.l.b16 %v234
  %v824 = vunpack.c.h.b16 %v234
  %v825 = vunpack.c.l.b16 %v235
  %v826 = vunpack.c.h.b16 %v235
  %v827 = vunpack.c.l.b16 %v236
  %v828 = vunpack.c.h.b16 %v236
  %v829 = vunpack.c.l.b16 %v237
  %v830 = vunpack.c.h.b16 %v237
  %v831 = vunpack.c.l.b16 %v238
  %v832 = vunpack.c.h.b16 %v238
  %v833 = vunpack.c.l.b16 %v239
  %v834 = vunpack.c.h.b16 %v239
  %v835 = vunpack.c.l.b16 %v240
  %v836 = vunpack.c.h.b16 %v240
  %v837 = vunpack.c.l.b16 %v241
  %v838 = vunpack.c.h.b16 %v241
  %v839 = vunpack.c.l.b16 %v242
  %v840 = vunpack.c.h.b16 %v242
  %v841 = vunpack.c.l.b16 %v243
  %v842 = vunpack.c.h.b16 %v243
  %v843 = vunpack.c.l.b16 %v244
  %v844 = vunpack.c.h.b16 %v244
  %v845 = vunpack.c.l.b16 %v245
  %v846 = vunpack.c.h.b16 %v245
  %v847 = vunpack.c.l.b16 %v246
  %v848 = vunpack.c.h.b16 %v246
  %v849 = vunpack.c.l.b16 %v247
  %v850 = vunpack.c.h.b16 %v247
  %v851 = vunpack.c.l.b16 %v248
  %v852 = vunpack.c.h.b16 %v248
  %v853 = vunpack.c.l.b16 %v249
  %v854 = vunpack.c.h.b16 %v249
  %v855 = vunpack.c.l.b16 %v250
  %v856 = vunpack.c.h.b16 %v250
  %v857 = vunpack.c.l.b16 %v251
  %v858 = vunpack.c.h.b16 %v251
  %v859 = vunpack.c.l.b16 %v252
  %v860 = vunpack.c.h.b16 %v252
  %v861 = vunpack.c.l.b16 %v253
  %v862 = vunpack.c.h.b16 %v253
  %v863 = vunpack.c.l.b16 %v254
  %v864 = vunpack.c.h.b16 %v254
  %v865 = vpack.c.b16 %v477, %v473
  %v866 = vpack.c.b16 %v478, %v474
  %v867 = vpack.c.b16 %v479, %v475
  %v868 = vpack.c.b16 %v480, %v476
  %v869 = vpack.c.b16 %v485, %v481
  %v870 = vpack.c.b16 %v486, %v482
  %v871 = vpack.c.b16 %v487, %v483
  %v872 = vpack.c.b16 %v488, %v484
  %v873 = vpack.c.b16 %v493, %v489
  %v874 = vpack.c.b16 %v494, %v490
  %v875 = vpack.c.b16 %v495, %v491
  %v876 = vpack.c.b16 %v496, %v492
  %v877 = vpack.c.b16 %v501, %v497
  %v878 = vpack.c.b16 %v502, %v498
  %v879 = vpack.c.b16 %v503, %v499
  %v880 = vpack.c.b16 %v504, %v500
  %v881 = vpack.c.b16 %v509, %v505
  %v882 = vpack.c.b16 %v510, %v506
  %v883 = vpack.c.b16 %v511, %v507
  %v884 = vpack.c.b16 %v512, %v508
  %v885 = vpack.c.b16 %v517, %v513
  %v886 = vpack.c.b16 %v518, %v514
  %v887 = vpack.c.b16 %v519, %v515
  %v888 = vpack.c.b16 %v520, %v516
  %v889 = vpack.c.b16 %v525, %v521
  %v890 = vpack.c.b16 %v526, %v522
  %v891 = vpack.c.b16 %v527, %v523
  %v892 = vpack.c.b16 %v528, %v524
  %v893 = vpack.c.b16 %v533, %v529
  %v894 = vpack.c.b16 %v534, %v530
  %v895 = vpack.c.b16 %v535, %v531
  %v896 = vpack.c.b16 %v536, %v532
  %v897 = vpack.c.b16 %v541, %v537
  %v898 = vpack.c.b16 %v542, %v538
  %v899 = vpack.c.b16 %v543, %v539
  %v900 = vpack.c.b16 %v544, %v540
  %v901 = vpack.c.b16 %v549, %v545
  %v902 = vpack.c.b16 %v550, %v546
  %v903 = vpack.c.b16 %v551, %v547
  %v904 = vpack.c.b16 %v552, %v548
  %v905 = vpack.c.b16 %v557, %v553
  %v906 = vpack.c.b16 %v558, %v554
  %v907 = vpack.c.b16 %v559, %v555
  %v908 = vpack.c.b16 %v560, %v556
  %v909 = vpack.c.b16 %v565, %v561
  %v910 = vpack.c.b16 %v566, %v562
  %v911 = vpack.c.b16 %v567, %v563
  %v912 = vpack.c.b16 %v568, %v564
  %v913 = vpack.c.b16 %v573, %v569
  %v914 = vpack.c.b16 %v574, %v570
  %v915 = vpack.c.b16 %v575, %v571
  %v916 = vpack.c.b16 %v576, %v572
  %v917 = vpack.c.b16 %v581, %v577
  %v918 = vpack.c.b16 %v582, %v578
  %v919 = vpack.c.b16 %v583, %v579
  %v920 = vpack.c.b16 %v584, %v580
  %v921 = vpack.c.b16 %v589, %v585
  %v922 = vpack.c.b16 %v590, %v586
  %v923 = vpack.c.b16 %v591, %v587
  %v924 = vpack.c.b16 %v592, %v588
  %v925 = vpack.c.b16 %v597, %v593
  %v926 = vpack.c.b16 %v598, %v594
  %v927 = vpack.c.b16 %v599, %v595
  %v928 = vpack.c.b16 %v600, %v596
  %v929 = vpack.c.b16 %v605, %v601
  %v930 = vpack.c.b16 %v606, %v602
  %v931 = vpack.c.b16 %v607, %v603
  %v932 = vpack.c.b16 %v608, %v604
  %v933 = vpack.c.b16 %v613, %v609
  %v934 = vpack.c.b16 %v614, %v610
  %v935 = vpack.c.b16 %v615, %v611
  %v936 = vpack.c.b16 %v616, %v612
  %v937 = vpack.c.b16 %v621, %v617
  %v938 = vpack.c.b16 %v622, %v618
  %v939 = vpack.c.b16 %v623, %v619
  %v940 = vpack.c.b16 %v624, %v620
  %v941 = vpack.c.b16 %v629, %v625
  %v942 = vpack.c.b16 %v630, %v626
  %v943 = vpack.c.b16 %v631, %v627
  %v944 = vpack.c.b16 %v632, %v628
  %v945 = vpack.c.b16 %v637, %v633
  %v946 = vpack.c.b16 %v638, %v634
  %v947 = vpack.c.b16 %v639, %v635
  %v948 = vpack.c.b16 %v640, %v636
  %v949 = vpack.c.b16 %v645, %v641
  %v950 = vpack.c.b16 %v646, %v642
  %v951 = vpack.c.b16 %v647, %v643
  %v952 = vpack.c.b16 %v648, %v644
  %v953 = vpack.c.b16 %v653, %v649
  %v954 = vpack.c.b16 %v654, %v650
  %v955 = vpack.c.b16 %v655, %v651
  %v956 = vpack.c.b16 %v656, %v652
  %v957 = vpack.c.b16 %v661, %v657
  %v958 = vpack.c.b16 %v662, %v658
  %v959 = vpack.c.b16 %v663, %v659
  %v960 = vpack.c.b16 %v664, %v660
  %v961 = vpack.c.b16 %v669, %v665
  %v962 = vpack.c.b16 %v670, %v666
  %v963 = vpack.c.b16 %v671, %v667
  %v964 = vpack.c.b16 %v672, %v668
  %v965 = vpack.c.b16 %v677, %v673
  %v966 = vpack.c.b16 %v678, %v674
  %v967 = vpack.c.b16 %v679, %v675
  %v968 = vpack.c.b16 %v680, %v676
  %v969 = vpack.c.b16 %v685, %v681
  %v970 = vpack.c.b16 %v686, %v682
  %v971 = vpack.c.b16 %v687, %v683
  %v972 = vpack.c.b16 %v688, %v684
  %v973 = vpack.c.b16 %v693, %v689
  %v974 = vpack.c.b16 %v694, %v690
  %v975 = vpack.c.b16 %v695, %v691
  %v976 = vpack.c.b16 %v696, %v692
  %v977 = vpack.c.b16 %v701, %v697
  %v978 = vpack.c.b16 %v702, %v698
  %v979 = vpack.c.b16 %v703, %v699
  %v980 = vpack.c.b16 %v704, %v700
  %v981 = vpack.c.b16 %v709, %v705
  %v982 = vpack.c.b16 %v710, %v706
  %v983 = vpack.c.b16 %v711, %v707
  %v984 = vpack.c.b16 %v712, %v708
  %v985 = vpack.c.b16 %v717, %v713
  %v986 = vpack.c.b16 %v718, %v714
  %v987 = vpack.c.b16 %v719, %v715
  %v988 = vpack.c.b16 %v720, %v716
  %v989 = vpack.c.b16 %v725, %v721
  %v990 = vpack.c.b16 %v726, %v722
  %v991 = vpack.c.b16 %v727, %v723
  %v992 = vpack.c.b16 %v728, %v724
  %v993 = vpack.c.b16 %v733, %v729
  %v994 = vpack.c.b16 %v734, %v730
  %v995 = vpack.c.b16 %v735, %v731
  %v996 = vpack.c.b16 %v736, %v732
  %v997 = vpack.c.b16 %v741, %v737
  %v998 = vpack.c.b16 %v742, %v738
  %v999 = vpack.c.b16 %v743, %v739
  %v1000 = vpack.c.b16 %v744, %v740
  %v1001 = vpack.c.b16 %v749, %v745
  %v1002 = vpack.c.b16 %v750, %v746
  %v1003 = vpack.c.b16 %v751, %v747
  %v1004 = vpack.c.b16 %v752, %v748
  %v1005 = vpack.c.b16 %v757, %v753
  %v1006 = vpack.c.b16 %v758, %v754
  %v1007 = vpack.c.b16 %v759, %v755
  %v1008 = vpack.c.b16 %v760, %v756
  %v1009 = vpack.c.b16 %v765, %v761
  %v1010 = vpack.c.b16 %v766, %v762
  %v1011 = vpack.c.b16 %v767, %v763
  %v1012 = vpack.c.b16 %v768, %v764
  %v1013 = vpack.c.b16 %v773, %v769
  %v1014 = vpack.c.b16 %v774, %v770
  %v1015 = vpack.c.b16 %v775, %v771
  %v1016 = vpack.c.b16 %v776, %v772
  %v1017 = vpack.c.b16 %v781, %v777
  %v1018 = vpack.c.b16 %v782, %v778
  %v1019 = vpack.c.b16 %v783, %v779
  %v1020 = vpack.c.b16 %v784, %v780
  %v1021 = vpack.c.b16 %v789, %v785
  %v1022 = vpack.c.b16 %v790, %v786
  %v1023 = vpack.c.b16 %v791, %v787
  %v1024 = vpack.c.b16 %v792, %v788
  %v1025 = vpack.c.b16 %v797, %v793
  %v1026 = vpack.c.b16 %v798, %v794
  %v1027 = vpack.c.b16 %v799, %v795
  %v1028 = vpack.c.b16 %v800, %v796
  %v1029 = vpack.c.b16 %v805, %v801
  %v1030 = vpack.c.b16 %v806, %v802
  %v1031 = vpack.c.b16 %v807, %v803
  %v1032 = vpack.c.b16 %v808, %v804
  %v1033 = vpack.c.b16 %v813, %v809
  %v1034 = vpack.c.b16 %v814, %v810
  %v1035 = vpack.c.b16 %v815, %v811
  %v1036 = vpack.c.b16 %v816, %v812
  %v1037 = vpack.c.b16 %v821, %v817
  %v1038 = vpack.c.b16 %v822, %v818
  %v1039 = vpack.c.b16 %v823, %v819
  %v1040 = vpack.c.b16 %v824, %v820
  %v1041 = vpack.c.b16 %v829, %v825
  %v1042 = vpack.c.b16 %v830, %v826
  %v1043 = vpack.c.b16 %v831, %v827
  %v1044 = vpack.c.b16 %v832, %v828
  %v1045 = vpack.c.b16 %v837, %v833
  %v1046 = vpack.c.b16 %v838, %v834
  %v1047 = vpack.c.b16 %v839, %v835
  %v1048 = vpack.c.b16 %v840, %v836
  %v1049 = vpack.c.b16 %v845, %v841
  %v1050 = vpack.c.b16 %v846, %v842
  %v1051 = vpack.c.b16 %v847, %v843
  %v1052 = vpack.c.b16 %v848, %v844
  %v1053 = vpack.c.b16 %v853, %v849
  %v1054 = vpack.c.b16 %v854, %v850
  %v1055 = vpack.c.b16 %v855, %v851
  %v1056 = vpack.c.b16 %v856, %v852
  %v1057 = vpack.c.b16 %v861, %v857
  %v1058 = vpack.c.b16 %v862, %v858
  %v1059 = vpack.c.b16 %v863, %v859
  %v1060 = vpack.c.b16 %v864, %v860
  %vm1257 = vcmask 130048
  %v1259 = vsel %vm1257, %v58, 0
  %1261 = vmatprep.subr.bf16.mxu0 %v866
  %1262 = vmatpush1.bf16.msra.mxu0 %v865
  %1263 = vmatprep.subr.bf16.mxu0 %v870
  %1264 = vmatpush1.bf16.msra.mxu0 %v869
  %1265 = vmatprep.subr.bf16.mxu0 %v874
  %1266 = vmatpush1.bf16.msra.mxu0 %v873
  %1267 = vmatprep.subr.bf16.mxu0 %v878
  %1268 = vmatpush1.bf16.msra.mxu0 %v877
  %1269 = vmatprep.subr.bf16.mxu0 %v882
  %1270 = vmatpush1.bf16.msra.mxu0 %v881
  %1271 = vmatprep.subr.bf16.mxu0 %v886
  %1272 = vmatpush1.bf16.msra.mxu0 %v885
  %1273 = vmatprep.subr.bf16.mxu0 %v890
  %1274 = vmatpush1.bf16.msra.mxu0 %v889
  %1275 = vmatprep.subr.bf16.mxu0 %v894
  %1276 = vmatpush1.bf16.msra.mxu0 %v893
  %1277 = vmatprep.subr.bf16.mxu0 %v898
  %1278 = vmatpush1.bf16.msra.mxu0 %v897
  %1279 = vmatprep.subr.bf16.mxu0 %v902
  %1280 = vmatpush1.bf16.msra.mxu0 %v901
  %1281 = vmatprep.subr.bf16.mxu0 %v906
  %1282 = vmatpush1.bf16.msra.mxu0 %v905
  %1283 = vmatprep.subr.bf16.mxu0 %v910
  %1284 = vmatpush1.bf16.msra.mxu0 %v909
  %1285 = vmatprep.subr.bf16.mxu0 %v914
  %1286 = vmatpush1.bf16.msra.mxu0 %v913
  %1287 = vmatprep.subr.bf16.mxu0 %v918
  %1288 = vmatpush1.bf16.msra.mxu0 %v917
  %1289 = vmatprep.subr.bf16.mxu0 %v922
  %1290 = vmatpush1.bf16.msra.mxu0 %v921
  %1291 = vmatprep.subr.bf16.mxu0 %v926
  %1292 = vmatpush1.bf16.msra.mxu0 %v925
  %1293 = vmatprep.mubr.bf16.mxu0 %v53
  %1294 = vmatmul.mubr.bf16.gmra.mrb[0].mxu0 %v52
  %v1295 = vpop.f32.mrb[0].mxu0
  %v1296 = vadd.f32 %v260, %v1295
  %v1297 = vpop.f32.mrb[0].mxu0
  %v1298 = vadd.f32 %v264, %v1297
  %v1299 = vpop.f32.mrb[0].mxu0
  %v1300 = vadd.f32 %v260, %v1299
  %v1301 = vpop.f32.mrb[0].mxu0
  %v1302 = vadd.f32 %v264, %v1301
  %1303 = vdwg.mxu0
  %1304 = vmatprep.subr.bf16.mxu0 %v930
  %1305 = vmatpush1.bf16.msra.mxu0 %v929
  %1306 = vmatprep.subr.bf16.mxu0 %v934
  %1307 = vmatpush1.bf16.msra.mxu0 %v933
  %1308 = vmatprep.subr.bf16.mxu0 %v938
  %1309 = vmatpush1.bf16.msra.mxu0 %v937
  %1310 = vmatprep.subr.bf16.mxu0 %v942
  %1311 = vmatpush1.bf16.msra.mxu0 %v941
  %1312 = vmatprep.subr.bf16.mxu0 %v946
  %1313 = vmatpush1.bf16.msra.mxu0 %v945
  %1314 = vmatprep.subr.bf16.mxu0 %v950
  %1315 = vmatpush1.bf16.msra.mxu0 %v949
  %1316 = vmatprep.subr.bf16.mxu0 %v954
  %1317 = vmatpush1.bf16.msra.mxu0 %v953
  %1318 = vmatprep.subr.bf16.mxu0 %v958
  %1319 = vmatpush1.bf16.msra.mxu0 %v957
  %1320 = vmatprep.subr.bf16.mxu0 %v962
  %1321 = vmatpush1.bf16.msra.mxu0 %v961
  %1322 = vmatprep.subr.bf16.mxu0 %v966
  %1323 = vmatpush1.bf16.msra.mxu0 %v965
  %1324 = vmatprep.subr.bf16.mxu0 %v970
  %1325 = vmatpush1.bf16.msra.mxu0 %v969
  %1326 = vmatprep.subr.bf16.mxu0 %v974
  %1327 = vmatpush1.bf16.msra.mxu0 %v973
  %1328 = vmatprep.subr.bf16.mxu0 %v978
  %1329 = vmatpush1.bf16.msra.mxu0 %v977
  %1330 = vmatprep.subr.bf16.mxu0 %v982
  %1331 = vmatpush1.bf16.msra.mxu0 %v981
  %1332 = vmatprep.subr.bf16.mxu0 %v986
  %1333 = vmatpush1.bf16.msra.mxu0 %v985
  %1334 = vmatprep.subr.bf16.mxu0 %v990
  %1335 = vmatpush1.bf16.msra.mxu0 %v989
  %1336 = vmatprep.mubr.bf16.mxu0 %v55
  %1337 = vmatmul.mubr.bf16.gmra.mrb[0].mxu0 %v54
  %v1338 = vpop.f32.mrb[0].mxu0
  %v1339 = vadd.f32 %v1296, %v1338
  %v1340 = vpop.f32.mrb[0].mxu0
  %v1341 = vadd.f32 %v1298, %v1340
  %v1342 = vpop.f32.mrb[0].mxu0
  %v1343 = vadd.f32 %v1300, %v1342
  %v1344 = vpop.f32.mrb[0].mxu0
  %v1345 = vadd.f32 %v1302, %v1344
  %1346 = vdwg.mxu0
  %1347 = vmatprep.subr.bf16.mxu0 %v994
  %1348 = vmatpush1.bf16.msra.mxu0 %v993
  %1349 = vmatprep.subr.bf16.mxu0 %v998
  %1350 = vmatpush1.bf16.msra.mxu0 %v997
  %1351 = vmatprep.subr.bf16.mxu0 %v1002
  %1352 = vmatpush1.bf16.msra.mxu0 %v1001
  %1353 = vmatprep.subr.bf16.mxu0 %v1006
  %1354 = vmatpush1.bf16.msra.mxu0 %v1005
  %1355 = vmatprep.subr.bf16.mxu0 %v1010
  %1356 = vmatpush1.bf16.msra.mxu0 %v1009
  %1357 = vmatprep.subr.bf16.mxu0 %v1014
  %1358 = vmatpush1.bf16.msra.mxu0 %v1013
  %1359 = vmatprep.subr.bf16.mxu0 %v1018
  %1360 = vmatpush1.bf16.msra.mxu0 %v1017
  %1361 = vmatprep.subr.bf16.mxu0 %v1022
  %1362 = vmatpush1.bf16.msra.mxu0 %v1021
  %1363 = vmatprep.subr.bf16.mxu0 %v1026
  %1364 = vmatpush1.bf16.msra.mxu0 %v1025
  %1365 = vmatprep.subr.bf16.mxu0 %v1030
  %1366 = vmatpush1.bf16.msra.mxu0 %v1029
  %1367 = vmatprep.subr.bf16.mxu0 %v1034
  %1368 = vmatpush1.bf16.msra.mxu0 %v1033
  %1369 = vmatprep.subr.bf16.mxu0 %v1038
  %1370 = vmatpush1.bf16.msra.mxu0 %v1037
  %1371 = vmatprep.subr.bf16.mxu0 %v1042
  %1372 = vmatpush1.bf16.msra.mxu0 %v1041
  %1373 = vmatprep.subr.bf16.mxu0 %v1046
  %1374 = vmatpush1.bf16.msra.mxu0 %v1045
  %1375 = vmatprep.subr.bf16.mxu0 %v1050
  %1376 = vmatpush1.bf16.msra.mxu0 %v1049
  %1377 = vmatprep.subr.bf16.mxu0 %v1054
  %1378 = vmatpush1.bf16.msra.mxu0 %v1053
  %1379 = vmatprep.mubr.bf16.mxu0 %v57
  %1380 = vmatmul.mubr.bf16.gmra.mrb[0].mxu0 %v56
  %v1381 = vpop.f32.mrb[0].mxu0
  %v1382 = vadd.f32 %v1339, %v1381
  %v1383 = vpop.f32.mrb[0].mxu0
  %v1384 = vadd.f32 %v1341, %v1383
  %v1385 = vpop.f32.mrb[0].mxu0
  %v1386 = vadd.f32 %v1343, %v1385
  %v1387 = vpop.f32.mrb[0].mxu0
  %v1388 = vadd.f32 %v1345, %v1387
  %1389 = vdwg.mxu0
  %1390 = vmatprep.subr.bf16.mxu0 %v1058
  %1391 = vmatpush1.bf16.msra.mxu0 %v1057
  %1392 = vmatprep.subr.bf16.mxu0 0
  %1393 = vmatpush1.bf16.msra.mxu0 0
  %1394 = vmatprep.subr.bf16.mxu0 0
  %1395 = vmatpush1.bf16.msra.mxu0 0
  %1396 = vmatprep.subr.bf16.mxu0 0
  %1397 = vmatpush1.bf16.msra.mxu0 0
  %1398 = vmatprep.subr.bf16.mxu0 0
  %1399 = vmatpush1.bf16.msra.mxu0 0
  %1400 = vmatprep.subr.bf16.mxu0 0
  %1401 = vmatpush1.bf16.msra.mxu0 0
  %1402 = vmatprep.subr.bf16.mxu0 0
  %1403 = vmatpush1.bf16.msra.mxu0 0
  %1404 = vmatprep.subr.bf16.mxu0 0
  %1405 = vmatpush1.bf16.msra.mxu0 0
  %1406 = vmatprep.subr.bf16.mxu0 0
  %1407 = vmatpush1.bf16.msra.mxu0 0
  %1408 = vmatprep.subr.bf16.mxu0 0
  %1409 = vmatpush1.bf16.msra.mxu0 0
  %1410 = vmatprep.subr.bf16.mxu0 0
  %1411 = vmatpush1.bf16.msra.mxu0 0
  %1412 = vmatprep.subr.bf16.mxu0 0
  %1413 = vmatpush1.bf16.msra.mxu0 0
  %1414 = vmatprep.subr.bf16.mxu0 0
  %1415 = vmatpush1.bf16.msra.mxu0 0
  %1416 = vmatprep.subr.bf16.mxu0 0
  %1417 = vmatpush1.bf16.msra.mxu0 0
  %1418 = vmatprep.subr.bf16.mxu0 0
  %1419 = vmatpush1.bf16.msra.mxu0 0
  %1420 = vmatprep.subr.bf16.mxu0 0
  %1421 = vmatpush1.bf16.msra.mxu0 0
  %1422 = vmatprep.mubr.bf16.mxu0 0
  %1423 = vmatmul.mubr.bf16.gmra.mrb[0].mxu0 %v1259
  %v1424 = vpop.f32.mrb[0].mxu0
  %v1425 = vadd.f32 %v1382, %v1424
  %v1426 = vpop.f32.mrb[0].mxu0
  %v1427 = vadd.f32 %v1384, %v1426
  %v1428 = vpop.f32.mrb[0].mxu0
  %v1429 = vadd.f32 %v1386, %v1428
  %v1430 = vpop.f32.mrb[0].mxu0
  %v1431 = vadd.f32 %v1388, %v1430
  %1432 = vdwg.mxu0
  %1433 = vmatprep.subr.bf16.mxu0 %v868
  %1434 = vmatpush1.bf16.msra.mxu0 %v867
  %1435 = vmatprep.subr.bf16.mxu0 %v872
  %1436 = vmatpush1.bf16.msra.mxu0 %v871
  %1437 = vmatprep.subr.bf16.mxu0 %v876
  %1438 = vmatpush1.bf16.msra.mxu0 %v875
  %1439 = vmatprep.subr.bf16.mxu0 %v880
  %1440 = vmatpush1.bf16.msra.mxu0 %v879
  %1441 = vmatprep.subr.bf16.mxu0 %v884
  %1442 = vmatpush1.bf16.msra.mxu0 %v883
  %1443 = vmatprep.subr.bf16.mxu0 %v888
  %1444 = vmatpush1.bf16.msra.mxu0 %v887
  %1445 = vmatprep.subr.bf16.mxu0 %v892
  %1446 = vmatpush1.bf16.msra.mxu0 %v891
  %1447 = vmatprep.subr.bf16.mxu0 %v896
  %1448 = vmatpush1.bf16.msra.mxu0 %v895
  %1449 = vmatprep.subr.bf16.mxu0 %v900
  %1450 = vmatpush1.bf16.msra.mxu0 %v899
  %1451 = vmatprep.subr.bf16.mxu0 %v904
  %1452 = vmatpush1.bf16.msra.mxu0 %v903
  %1453 = vmatprep.subr.bf16.mxu0 %v908
  %1454 = vmatpush1.bf16.msra.mxu0 %v907
  %1455 = vmatprep.subr.bf16.mxu0 %v912
  %1456 = vmatpush1.bf16.msra.mxu0 %v911
  %1457 = vmatprep.subr.bf16.mxu0 %v916
  %1458 = vmatpush1.bf16.msra.mxu0 %v915
  %1459 = vmatprep.subr.bf16.mxu0 %v920
  %1460 = vmatpush1.bf16.msra.mxu0 %v919
  %1461 = vmatprep.subr.bf16.mxu0 %v924
  %1462 = vmatpush1.bf16.msra.mxu0 %v923
  %1463 = vmatprep.subr.bf16.mxu0 %v928
  %1464 = vmatpush1.bf16.msra.mxu0 %v927
  %1465 = vmatprep.mubr.bf16.mxu0 %v53
  %1466 = vmatmul.mubr.bf16.gmra.mrb[0].mxu0 %v52
  %v1467 = vpop.f32.mrb[0].mxu0
  %v1468 = vadd.f32 %v268, %v1467
  %v1469 = vpop.f32.mrb[0].mxu0
  %v1470 = vadd.f32 %v272, %v1469
  %v1471 = vpop.f32.mrb[0].mxu0
  %v1472 = vadd.f32 %v268, %v1471
  %v1473 = vpop.f32.mrb[0].mxu0
  %v1474 = vadd.f32 %v272, %v1473
  %1475 = vdwg.mxu0
  %1476 = vmatprep.subr.bf16.mxu0 %v932
  %1477 = vmatpush1.bf16.msra.mxu0 %v931
  %1478 = vmatprep.subr.bf16.mxu0 %v936
  %1479 = vmatpush1.bf16.msra.mxu0 %v935
  %1480 = vmatprep.subr.bf16.mxu0 %v940
  %1481 = vmatpush1.bf16.msra.mxu0 %v939
  %1482 = vmatprep.subr.bf16.mxu0 %v944
  %1483 = vmatpush1.bf16.msra.mxu0 %v943
  %1484 = vmatprep.subr.bf16.mxu0 %v948
  %1485 = vmatpush1.bf16.msra.mxu0 %v947
  %1486 = vmatprep.subr.bf16.mxu0 %v952
  %1487 = vmatpush1.bf16.msra.mxu0 %v951
  %1488 = vmatprep.subr.bf16.mxu0 %v956
  %1489 = vmatpush1.bf16.msra.mxu0 %v955
  %1490 = vmatprep.subr.bf16.mxu0 %v960
  %1491 = vmatpush1.bf16.msra.mxu0 %v959
  %1492 = vmatprep.subr.bf16.mxu0 %v964
  %1493 = vmatpush1.bf16.msra.mxu0 %v963
  %1494 = vmatprep.subr.bf16.mxu0 %v968
  %1495 = vmatpush1.bf16.msra.mxu0 %v967
  %1496 = vmatprep.subr.bf16.mxu0 %v972
  %1497 = vmatpush1.bf16.msra.mxu0 %v971
  %1498 = vmatprep.subr.bf16.mxu0 %v976
  %1499 = vmatpush1.bf16.msra.mxu0 %v975
  %1500 = vmatprep.subr.bf16.mxu0 %v980
  %1501 = vmatpush1.bf16.msra.mxu0 %v979
  %1502 = vmatprep.subr.bf16.mxu0 %v984
  %1503 = vmatpush1.bf16.msra.mxu0 %v983
  %1504 = vmatprep.subr.bf16.mxu0 %v988
  %1505 = vmatpush1.bf16.msra.mxu0 %v987
  %1506 = vmatprep.subr.bf16.mxu0 %v992
  %1507 = vmatpush1.bf16.msra.mxu0 %v991
  %1508 = vmatprep.mubr.bf16.mxu0 %v55
  %1509 = vmatmul.mubr.bf16.gmra.mrb[0].mxu0 %v54
  %v1510 = vpop.f32.mrb[0].mxu0
  %v1511 = vadd.f32 %v1468, %v1510
  %v1512 = vpop.f32.mrb[0].mxu0
  %v1513 = vadd.f32 %v1470, %v1512
  %v1514 = vpop.f32.mrb[0].mxu0
  %v1515 = vadd.f32 %v1472, %v1514
  %v1516 = vpop.f32.mrb[0].mxu0
  %v1517 = vadd.f32 %v1474, %v1516
  %1518 = vdwg.mxu0
  %1519 = vmatprep.subr.bf16.mxu0 %v996
  %1520 = vmatpush1.bf16.msra.mxu0 %v995
  %1521 = vmatprep.subr.bf16.mxu0 %v1000
  %1522 = vmatpush1.bf16.msra.mxu0 %v999
  %1523 = vmatprep.subr.bf16.mxu0 %v1004
  %1524 = vmatpush1.bf16.msra.mxu0 %v1003
  %1525 = vmatprep.subr.bf16.mxu0 %v1008
  %1526 = vmatpush1.bf16.msra.mxu0 %v1007
  %1527 = vmatprep.subr.bf16.mxu0 %v1012
  %1528 = vmatpush1.bf16.msra.mxu0 %v1011
  %1529 = vmatprep.subr.bf16.mxu0 %v1016
  %1530 = vmatpush1.bf16.msra.mxu0 %v1015
  %1531 = vmatprep.subr.bf16.mxu0 %v1020
  %1532 = vmatpush1.bf16.msra.mxu0 %v1019
  %1533 = vmatprep.subr.bf16.mxu0 %v1024
  %1534 = vmatpush1.bf16.msra.mxu0 %v1023
  %1535 = vmatprep.subr.bf16.mxu0 %v1028
  %1536 = vmatpush1.bf16.msra.mxu0 %v1027
  %1537 = vmatprep.subr.bf16.mxu0 %v1032
  %1538 = vmatpush1.bf16.msra.mxu0 %v1031
  %1539 = vmatprep.subr.bf16.mxu0 %v1036
  %1540 = vmatpush1.bf16.msra.mxu0 %v1035
  %1541 = vmatprep.subr.bf16.mxu0 %v1040
  %1542 = vmatpush1.bf16.msra.mxu0 %v1039
  %1543 = vmatprep.subr.bf16.mxu0 %v1044
  %1544 = vmatpush1.bf16.msra.mxu0 %v1043
  %1545 = vmatprep.subr.bf16.mxu0 %v1048
  %1546 = vmatpush1.bf16.msra.mxu0 %v1047
  %1547 = vmatprep.subr.bf16.mxu0 %v1052
  %1548 = vmatpush1.bf16.msra.mxu0 %v1051
  %1549 = vmatprep.subr.bf16.mxu0 %v1056
  %1550 = vmatpush1.bf16.msra.mxu0 %v1055
  %1551 = vmatprep.mubr.bf16.mxu0 %v57
  %1552 = vmatmul.mubr.bf16.gmra.mrb[0].mxu0 %v56
  %v1553 = vpop.f32.mrb[0].mxu0
  %v1554 = vadd.f32 %v1511, %v1553
  %v1555 = vpop.f32.mrb[0].mxu0
  %v1556 = vadd.f32 %v1513, %v1555
  %v1557 = vpop.f32.mrb[0].mxu0
  %v1558 = vadd.f32 %v1515, %v1557
  %v1559 = vpop.f32.mrb[0].mxu0
  %v1560 = vadd.f32 %v1517, %v1559
  %1561 = vdwg.mxu0
  %1562 = vmatprep.subr.bf16.mxu0 %v1060
  %1563 = vmatpush1.bf16.msra.mxu0 %v1059
  %1564 = vmatprep.subr.bf16.mxu0 0
  %1565 = vmatpush1.bf16.msra.mxu0 0
  %1566 = vmatprep.subr.bf16.mxu0 0
  %1567 = vmatpush1.bf16.msra.mxu0 0
  %1568 = vmatprep.subr.bf16.mxu0 0
  %1569 = vmatpush1.bf16.msra.mxu0 0
  %1570 = vmatprep.subr.bf16.mxu0 0
  %1571 = vmatpush1.bf16.msra.mxu0 0
  %1572 = vmatprep.subr.bf16.mxu0 0
  %1573 = vmatpush1.bf16.msra.mxu0 0
  %1574 = vmatprep.subr.bf16.mxu0 0
  %1575 = vmatpush1.bf16.msra.mxu0 0
  %1576 = vmatprep.subr.bf16.mxu0 0
  %1577 = vmatpush1.bf16.msra.mxu0 0
  %1578 = vmatprep.subr.bf16.mxu0 0
  %1579 = vmatpush1.bf16.msra.mxu0 0
  %1580 = vmatprep.subr.bf16.mxu0 0
  %1581 = vmatpush1.bf16.msra.mxu0 0
  %1582 = vmatprep.subr.bf16.mxu0 0
  %1583 = vmatpush1.bf16.msra.mxu0 0
  %1584 = vmatprep.subr.bf16.mxu0 0
  %1585 = vmatpush1.bf16.msra.mxu0 0
  %1586 = vmatprep.subr.bf16.mxu0 0
  %1587 = vmatpush1.bf16.msra.mxu0 0
  %1588 = vmatprep.subr.bf16.mxu0 0
  %1589 = vmatpush1.bf16.msra.mxu0 0
  %1590 = vmatprep.subr.bf16.mxu0 0
  %1591 = vmatpush1.bf16.msra.mxu0 0
  %1592 = vmatprep.subr.bf16.mxu0 0
  %1593 = vmatpush1.bf16.msra.mxu0 0
  %1594 = vmatprep.mubr.bf16.mxu0 0
  %1595 = vmatmul.mubr.bf16.gmra.mrb[0].mxu0 %v1259
  %v1596 = vpop.f32.mrb[0].mxu0
  %v1597 = vadd.f32 %v1554, %v1596
  %v1598 = vpop.f32.mrb[0].mxu0
  %v1599 = vadd.f32 %v1556, %v1598
  %v1600 = vpop.f32.mrb[0].mxu0
  %v1601 = vadd.f32 %v1558, %v1600
  %v1602 = vpop.f32.mrb[0].mxu0
  %v1603 = vadd.f32 %v1560, %v1602
  %1604 = vdwg.mxu0
  %v1605 = vmax.f32 %v1425, 0.0
  %v1606 = vmax.f32 %v1427, 0.0
  %v1607 = vmax.f32 %v1597, 0.0
  %v1608 = vmax.f32 %v1599, 0.0
  %v1609 = vmax.f32 %v1429, 0.0
  %v1610 = vmax.f32 %v1431, 0.0
  %v1611 = vmax.f32 %v1601, 0.0
  %v1612 = vmax.f32 %v1603, 0.0
  %v1613 = vpack.c.bf16 %v1609, %v1605
  %v1614 = vpack.c.bf16 %v1610, %v1606
  %v1615 = vpack.c.bf16 %v1611, %v1607
  %v1616 = vpack.c.bf16 %v1612, %v1608
  %v1617 = vld [vmem:[%s4] sm:$0xf]
  %v1618 = vld [vmem:[%s4 + $0x4] sm:$0xf]
  %v1619 = vld [vmem:[%s4 + $0x8] sm:$0xf]
  %v1620 = vld [vmem:[%s4 + $0xc] sm:$0xf]
  %v1621 = vld [vmem:[%s4 + $0x10] sm:$0xf]
  %v1622 = vld [vmem:[%s4 + $0x14] sm:$0xf]
  %v1623 = vld [vmem:[%s4 + $0x18] sm:$0xf]
  %v1624 = vld [vmem:[%s4 + $0x1c] sm:$0xf]
  %v1625 = vld [vmem:[%s4 + $0x20] sm:$0xf]
  %v1626 = vld [vmem:[%s4 + $0x24] sm:$0xf]
  %v1627 = vld [vmem:[%s4 + $0x28] sm:$0xf]
  %v1628 = vld [vmem:[%s4 + $0x2c] sm:$0xf]
  %v1629 = vld [vmem:[%s4 + $0x30] sm:$0xf]
  %v1630 = vld [vmem:[%s4 + $0x34] sm:$0xf]
  %v1631 = vld [vmem:[%s4 + $0x38] sm:$0xf]
  %v1632 = vld [vmem:[%s4 + $0x3c] sm:$0xf]
  %v1633 = vld [vmem:[%s4 + $0x40] sm:$0xf]
  %v1634 = vld [vmem:[%s4 + $0x44] sm:$0xf]
  %v1635 = vld [vmem:[%s4 + $0x48] sm:$0xf]
  %v1636 = vld [vmem:[%s4 + $0x4c] sm:$0xf]
  %v1637 = vld [vmem:[%s4 + $0x50] sm:$0xf]
  %v1638 = vld [vmem:[%s4 + $0x54] sm:$0xf]
  %v1639 = vld [vmem:[%s4 + $0x58] sm:$0xf]
  %v1640 = vld [vmem:[%s4 + $0x5c] sm:$0xf]
  %v1641 = vld [vmem:[%s4 + $0x60] sm:$0xf]
  %v1642 = vld [vmem:[%s4 + $0x64] sm:$0xf]
  %v1643 = vld [vmem:[%s4 + $0x68] sm:$0xf]
  %v1644 = vld [vmem:[%s4 + $0x6c] sm:$0xf]
  %v1645 = vld [vmem:[%s4 + $0x70] sm:$0xf]
  %v1646 = vld [vmem:[%s4 + $0x74] sm:$0xf]
  %v1647 = vld [vmem:[%s4 + $0x78] sm:$0xf]
  %v1648 = vld [vmem:[%s4 + $0x7c] sm:$0xf]
  %v1649 = vld [vmem:[%s4 + $0x80] sm:$0xf]
  %v1650 = vld [vmem:[%s4 + $0x84] sm:$0xf]
  %v1651 = vld [vmem:[%s4 + $0x88] sm:$0xf]
  %v1652 = vld [vmem:[%s4 + $0x8c] sm:$0xf]
  %v1653 = vld [vmem:[%s4 + $0x90] sm:$0xf]
  %v1654 = vld [vmem:[%s4 + $0x94] sm:$0xf]
  %v1655 = vld [vmem:[%s4 + $0x98] sm:$0xf]
  %v1656 = vld [vmem:[%s4 + $0x9c] sm:$0xf]
  %v1657 = vld [vmem:[%s4 + $0xa0] sm:$0xf]
  %v1658 = vld [vmem:[%s4 + $0xa4] sm:$0xf]
  %v1659 = vld [vmem:[%s4 + $0xa8] sm:$0xf]
  %v1660 = vld [vmem:[%s4 + $0xac] sm:$0xf]
  %v1661 = vld [vmem:[%s4 + $0xb0] sm:$0xf]
  %v1662 = vld [vmem:[%s4 + $0xb4] sm:$0xf]
  %v1663 = vld [vmem:[%s4 + $0xb8] sm:$0xf]
  %v1664 = vld [vmem:[%s4 + $0xbc] sm:$0xf]
  %v1665 = vld [vmem:[%s4 + $0xc0] sm:$0xf]
  %v1666 = vld [vmem:[%s4 + $0xc4] sm:$0xf]
  %v1667 = vld [vmem:[%s4 + $0xc8] sm:$0xf]
  %v1668 = vld [vmem:[%s4 + $0xcc] sm:$0xf]
  %v1669 = vld [vmem:[%s4 + $0xd0] sm:$0xf]
  %v1670 = vld [vmem:[%s4 + $0xd4] sm:$0xf]
  %v1671 = vld [vmem:[%s4 + $0xd8] sm:$0xf]
  %v1672 = vld [vmem:[%s4 + $0xdc] sm:$0xf]
  %v1673 = vld [vmem:[%s4 + $0xe0] sm:$0xf]
  %v1674 = vld [vmem:[%s4 + $0xe4] sm:$0xf]
  %v1675 = vld [vmem:[%s4 + $0xe8] sm:$0xf]
  %v1676 = vld [vmem:[%s4 + $0xec] sm:$0xf]
  %v1677 = vld [vmem:[%s4 + $0xf0] sm:$0xf]
  %v1678 = vld [vmem:[%s4 + $0xf4] sm:$0xf]
  %v1679 = vld [vmem:[%s4 + $0xf8] sm:$0xf]
  %v1680 = vld [vmem:[%s4 + $0xfc] sm:$0xf]
  %v1681 = vld [vmem:[%s5] sm:$0x1]
  %v1683 = vlaneseq
  %v1684 = vshrl.u32 %v1683, 7
  %v1685 = vsub.s32 0, %v1684
  %v1686 = vrot.slane %v1681, %v1685
  %v1752 = vunpack.c.l.b16 %v1617
  %v1753 = vunpack.c.l.b16 %v1618
  %v1754 = vunpack.c.l.b16 %v1619
  %v1755 = vunpack.c.l.b16 %v1620
  %v1756 = vunpack.c.l.b16 %v1621
  %v1757 = vunpack.c.l.b16 %v1622
  %v1758 = vunpack.c.l.b16 %v1623
  %v1759 = vunpack.c.l.b16 %v1624
  %v1760 = vunpack.c.l.b16 %v1625
  %v1761 = vunpack.c.l.b16 %v1626
  %v1762 = vunpack.c.l.b16 %v1627
  %v1763 = vunpack.c.l.b16 %v1628
  %v1764 = vunpack.c.l.b16 %v1629
  %v1765 = vunpack.c.l.b16 %v1630
  %v1766 = vunpack.c.l.b16 %v1631
  %v1767 = vunpack.c.l.b16 %v1632
  %v1768 = vunpack.c.l.b16 %v1633
  %v1769 = vunpack.c.l.b16 %v1634
  %v1770 = vunpack.c.l.b16 %v1635
  %v1771 = vunpack.c.l.b16 %v1636
  %v1772 = vunpack.c.l.b16 %v1637
  %v1773 = vunpack.c.l.b16 %v1638
  %v1774 = vunpack.c.l.b16 %v1639
  %v1775 = vunpack.c.l.b16 %v1640
  %v1776 = vunpack.c.l.b16 %v1641
  %v1777 = vunpack.c.l.b16 %v1642
  %v1778 = vunpack.c.l.b16 %v1643
  %v1779 = vunpack.c.l.b16 %v1644
  %v1780 = vunpack.c.l.b16 %v1645
  %v1781 = vunpack.c.l.b16 %v1646
  %v1782 = vunpack.c.l.b16 %v1647
  %v1783 = vunpack.c.l.b16 %v1648
  %v1784 = vunpack.c.l.b16 %v1649
  %v1785 = vunpack.c.l.b16 %v1650
  %v1786 = vunpack.c.l.b16 %v1651
  %v1787 = vunpack.c.l.b16 %v1652
  %v1788 = vunpack.c.l.b16 %v1653
  %v1789 = vunpack.c.l.b16 %v1654
  %v1790 = vunpack.c.l.b16 %v1655
  %v1791 = vunpack.c.l.b16 %v1656
  %v1792 = vunpack.c.l.b16 %v1657
  %v1793 = vunpack.c.l.b16 %v1658
  %v1794 = vunpack.c.l.b16 %v1659
  %v1795 = vunpack.c.l.b16 %v1660
  %v1796 = vunpack.c.l.b16 %v1661
  %v1797 = vunpack.c.l.b16 %v1662
  %v1798 = vunpack.c.l.b16 %v1663
  %v1799 = vunpack.c.l.b16 %v1664
  %v1800 = vunpack.c.l.b16 %v1665
  %v1801 = vunpack.c.l.b16 %v1666
  %v1802 = vunpack.c.l.b16 %v1667
  %v1803 = vunpack.c.l.b16 %v1668
  %v1804 = vunpack.c.l.b16 %v1669
  %v1805 = vunpack.c.l.b16 %v1670
  %v1806 = vunpack.c.l.b16 %v1671
  %v1807 = vunpack.c.l.b16 %v1672
  %v1808 = vunpack.c.l.b16 %v1673
  %v1809 = vunpack.c.l.b16 %v1674
  %v1810 = vunpack.c.l.b16 %v1675
  %v1811 = vunpack.c.l.b16 %v1676
  %v1812 = vunpack.c.l.b16 %v1677
  %v1813 = vunpack.c.l.b16 %v1678
  %v1814 = vunpack.c.l.b16 %v1679
  %v1815 = vunpack.c.l.b16 %v1680
  %v1816 = vpack.c.b16 %v1753, %v1752
  %v1817 = vpack.c.b16 %v1755, %v1754
  %v1818 = vpack.c.b16 %v1757, %v1756
  %v1819 = vpack.c.b16 %v1759, %v1758
  %v1820 = vpack.c.b16 %v1761, %v1760
  %v1821 = vpack.c.b16 %v1763, %v1762
  %v1822 = vpack.c.b16 %v1765, %v1764
  %v1823 = vpack.c.b16 %v1767, %v1766
  %v1824 = vpack.c.b16 %v1769, %v1768
  %v1825 = vpack.c.b16 %v1771, %v1770
  %v1826 = vpack.c.b16 %v1773, %v1772
  %v1827 = vpack.c.b16 %v1775, %v1774
  %v1828 = vpack.c.b16 %v1777, %v1776
  %v1829 = vpack.c.b16 %v1779, %v1778
  %v1830 = vpack.c.b16 %v1781, %v1780
  %v1831 = vpack.c.b16 %v1783, %v1782
  %v1832 = vpack.c.b16 %v1785, %v1784
  %v1833 = vpack.c.b16 %v1787, %v1786
  %v1834 = vpack.c.b16 %v1789, %v1788
  %v1835 = vpack.c.b16 %v1791, %v1790
  %v1836 = vpack.c.b16 %v1793, %v1792
  %v1837 = vpack.c.b16 %v1795, %v1794
  %v1838 = vpack.c.b16 %v1797, %v1796
  %v1839 = vpack.c.b16 %v1799, %v1798
  %v1840 = vpack.c.b16 %v1801, %v1800
  %v1841 = vpack.c.b16 %v1803, %v1802
  %v1842 = vpack.c.b16 %v1805, %v1804
  %v1843 = vpack.c.b16 %v1807, %v1806
  %v1844 = vpack.c.b16 %v1809, %v1808
  %v1845 = vpack.c.b16 %v1811, %v1810
  %v1846 = vpack.c.b16 %v1813, %v1812
  %v1847 = vpack.c.b16 %v1815, %v1814
  %1880 = vmatprep.subr.bf16.mxu0 0
  %1881 = vmatpush1.bf16.msra.mxu0 %v1816
  %1882 = vmatprep.subr.bf16.mxu0 0
  %1883 = vmatpush1.bf16.msra.mxu0 %v1817
  %1884 = vmatprep.subr.bf16.mxu0 0
  %1885 = vmatpush1.bf16.msra.mxu0 %v1818
  %1886 = vmatprep.subr.bf16.mxu0 0
  %1887 = vmatpush1.bf16.msra.mxu0 %v1819
  %1888 = vmatprep.subr.bf16.mxu0 0
  %1889 = vmatpush1.bf16.msra.mxu0 %v1820
  %1890 = vmatprep.subr.bf16.mxu0 0
  %1891 = vmatpush1.bf16.msra.mxu0 %v1821
  %1892 = vmatprep.subr.bf16.mxu0 0
  %1893 = vmatpush1.bf16.msra.mxu0 %v1822
  %1894 = vmatprep.subr.bf16.mxu0 0
  %1895 = vmatpush1.bf16.msra.mxu0 %v1823
  %1896 = vmatprep.subr.bf16.mxu0 0
  %1897 = vmatpush1.bf16.msra.mxu0 %v1824
  %1898 = vmatprep.subr.bf16.mxu0 0
  %1899 = vmatpush1.bf16.msra.mxu0 %v1825
  %1900 = vmatprep.subr.bf16.mxu0 0
  %1901 = vmatpush1.bf16.msra.mxu0 %v1826
  %1902 = vmatprep.subr.bf16.mxu0 0
  %1903 = vmatpush1.bf16.msra.mxu0 %v1827
  %1904 = vmatprep.subr.bf16.mxu0 0
  %1905 = vmatpush1.bf16.msra.mxu0 %v1828
  %1906 = vmatprep.subr.bf16.mxu0 0
  %1907 = vmatpush1.bf16.msra.mxu0 %v1829
  %1908 = vmatprep.subr.bf16.mxu0 0
  %1909 = vmatpush1.bf16.msra.mxu0 %v1830
  %1910 = vmatprep.subr.bf16.mxu0 0
  %1911 = vmatpush1.bf16.msra.mxu0 %v1831
  %1912 = vmatprep.mubr.bf16.mxu0 %v1614
  %1913 = vmatmul.mubr.bf16.gmra.mrb[0].mxu0 %v1613
  %v1914 = vpop.f32.mrb[0].mxu0
  %v1915 = vadd.f32 %v1686, %v1914
  %v1916 = vpop.f32.mrb[0].mxu0
  %v1917 = vpop.f32.mrb[0].mxu0
  %v1918 = vadd.f32 %v1686, %v1917
  %v1919 = vpop.f32.mrb[0].mxu0
  %1920 = vdwg.mxu0
  %1921 = vmatprep.subr.bf16.mxu0 0
  %1922 = vmatpush1.bf16.msra.mxu0 %v1832
  %1923 = vmatprep.subr.bf16.mxu0 0
  %1924 = vmatpush1.bf16.msra.mxu0 %v1833
  %1925 = vmatprep.subr.bf16.mxu0 0
  %1926 = vmatpush1.bf16.msra.mxu0 %v1834
  %1927 = vmatprep.subr.bf16.mxu0 0
  %1928 = vmatpush1.bf16.msra.mxu0 %v1835
  %1929 = vmatprep.subr.bf16.mxu0 0
  %1930 = vmatpush1.bf16.msra.mxu0 %v1836
  %1931 = vmatprep.subr.bf16.mxu0 0
  %1932 = vmatpush1.bf16.msra.mxu0 %v1837
  %1933 = vmatprep.subr.bf16.mxu0 0
  %1934 = vmatpush1.bf16.msra.mxu0 %v1838
  %1935 = vmatprep.subr.bf16.mxu0 0
  %1936 = vmatpush1.bf16.msra.mxu0 %v1839
  %1937 = vmatprep.subr.bf16.mxu0 0
  %1938 = vmatpush1.bf16.msra.mxu0 %v1840
  %1939 = vmatprep.subr.bf16.mxu0 0
  %1940 = vmatpush1.bf16.msra.mxu0 %v1841
  %1941 = vmatprep.subr.bf16.mxu0 0
  %1942 = vmatpush1.bf16.msra.mxu0 %v1842
  %1943 = vmatprep.subr.bf16.mxu0 0
  %1944 = vmatpush1.bf16.msra.mxu0 %v1843
  %1945 = vmatprep.subr.bf16.mxu0 0
  %1946 = vmatpush1.bf16.msra.mxu0 %v1844
  %1947 = vmatprep.subr.bf16.mxu0 0
  %1948 = vmatpush1.bf16.msra.mxu0 %v1845
  %1949 = vmatprep.subr.bf16.mxu0 0
  %1950 = vmatpush1.bf16.msra.mxu0 %v1846
  %1951 = vmatprep.subr.bf16.mxu0 0
  %1952 = vmatpush1.bf16.msra.mxu0 %v1847
  %1953 = vmatprep.mubr.bf16.mxu0 %v1616
  %1954 = vmatmul.mubr.bf16.gmra.mrb[0].mxu0 %v1615
  %v1955 = vpop.f32.mrb[0].mxu0
  %v1956 = vadd.f32 %v1915, %v1955
  %v1957 = vpop.f32.mrb[0].mxu0
  %v1958 = vpop.f32.mrb[0].mxu0
  %v1959 = vadd.f32 %v1918, %v1958
  %v1960 = vpop.f32.mrb[0].mxu0
  %1961 = vdwg.mxu0
  %v1962 = vld [vmem:[%s1] sm:$0xff]
  %v1963 = vld [vmem:[%s1 + $0x8] sm:$0xff]
  %v1964 = vmul.f32 %v1956, 0.5
  %v1965 = vmul.f32 %v1959, 0.5
  %v1966 = vmul.f32 %v1964, 1.442695
  %v1967 = vpow.pop %v1966
  %v1968 = vmul.f32 %v1965, 1.442695
  %v1969 = vpow.pop %v1968
  %1972 = vrot.lane.b32.xlu0 %v1967, 108
  %v1973 = vpop.permute.xlu0 %1972
  %1974 = vrot.lane.b32.xlu0 %v1969, 108
  %v1975 = vpop.permute.xlu0 %1974
  %v1978 = vmul.f32 %v1962, %v1973
  %v1979 = vmul.f32 %v1963, %v1975
  %v1980 = vadd.f32 %v1978, %v1956
  %v1981 = vadd.f32 %v1979, %v1959
  %v1982 = vpack.c.bf16 %v1981, %v1980
  %v1983 = vld [vmem:[%s6] sm:$0xff]
  %v1984 = vld [vmem:[%s6 + $0x8] sm:$0xff]
  %v1985 = vld [vmem:[%s6 + $0x10] sm:$0xff]
  %v1986 = vld [vmem:[%s6 + $0x18] sm:$0xff]
  %v1987 = vld [vmem:[%s6 + $0x20] sm:$0x33]
  %v1988 = vld [vmem:[%s6 + $0x28] sm:$0x33]
  %v1989 = vld [vmem:[%s7] sm:$0xf]
  %v1991 = vlaneseq
  %v1992 = vshrl.u32 %v1991, 7
  %v1993 = vsub.s32 0, %v1992
  %v1994 = vrot.slane %v1989, %v1993
  %v1995 = vlaneseq
  %v1996 = vshrl.u32 %v1995, 7
  %v1997 = vsub.s32 1, %v1996
  %v1998 = vrot.slane %v1989, %v1997
  %v1999 = vlaneseq
  %v2000 = vshrl.u32 %v1999, 7
  %v2001 = vsub.s32 2, %v2000
  %v2002 = vrot.slane %v1989, %v2001
  %v2003 = vlaneseq
  %v2004 = vshrl.u32 %v2003, 7
  %v2005 = vsub.s32 3, %v2004
  %v2006 = vrot.slane %v1989, %v2005
  %v2017 = vunpack.c.l.b16 %v1983
  %v2018 = vunpack.c.h.b16 %v1983
  %v2019 = vunpack.c.l.b16 %v1984
  %v2020 = vunpack.c.h.b16 %v1984
  %v2021 = vunpack.c.l.b16 %v1985
  %v2022 = vunpack.c.h.b16 %v1985
  %v2023 = vunpack.c.l.b16 %v1986
  %v2024 = vunpack.c.h.b16 %v1986
  %v2025 = vunpack.c.l.b16 %v1987
  %v2026 = vunpack.c.h.b16 %v1987
  %v2027 = vunpack.c.l.b16 %v1988
  %v2028 = vunpack.c.h.b16 %v1988
  %v2029 = vpack.c.b16 %v2021, %v2017
  %v2030 = vpack.c.b16 %v2022, %v2018
  %v2031 = vpack.c.b16 %v2023, %v2019
  %v2032 = vpack.c.b16 %v2024, %v2020
  %v2033 = vpack.c.b16 %v2025, %v2025
  %v2034 = vpack.c.b16 %v2026, %v2026
  %v2035 = vpack.c.b16 %v2027, %v2027
  %v2036 = vpack.c.b16 %v2028, %v2028
  %vm2041 = vcmask 162816
  %v2043 = vsel %vm2041, %v1982, 0
  %vm2045 = vcmask 1041408
  %v2047 = vsel %vm2045, %v2033, 0
  %v2050 = vsel %vm2045, %v2034, 0
  %v2053 = vsel %vm2045, %v2035, 0
  %v2056 = vsel %vm2045, %v2036, 0
  %2058 = vmatprep.subr.bf16.mxu0 %v2030
  %2059 = vmatpush1.bf16.msra.mxu0 %v2029
  %2060 = vmatprep.subr.bf16.mxu0 %v2050
  %2061 = vmatpush1.bf16.msra.mxu0 %v2047
  %2062 = vmatprep.subr.bf16.mxu0 0
  %2063 = vmatpush1.bf16.msra.mxu0 0
  %2064 = vmatprep.subr.bf16.mxu0 0
  %2065 = vmatpush1.bf16.msra.mxu0 0
  %2066 = vmatprep.subr.bf16.mxu0 0
  %2067 = vmatpush1.bf16.msra.mxu0 0
  %2068 = vmatprep.subr.bf16.mxu0 0
  %2069 = vmatpush1.bf16.msra.mxu0 0
  %2070 = vmatprep.subr.bf16.mxu0 0
  %2071 = vmatpush1.bf16.msra.mxu0 0
  %2072 = vmatprep.subr.bf16.mxu0 0
  %2073 = vmatpush1.bf16.msra.mxu0 0
  %2074 = vmatprep.subr.bf16.mxu0 0
  %2075 = vmatpush1.bf16.msra.mxu0 0
  %2076 = vmatprep.subr.bf16.mxu0 0
  %2077 = vmatpush1.bf16.msra.mxu0 0
  %2078 = vmatprep.subr.bf16.mxu0 0
  %2079 = vmatpush1.bf16.msra.mxu0 0
  %2080 = vmatprep.subr.bf16.mxu0 0
  %2081 = vmatpush1.bf16.msra.mxu0 0
  %2082 = vmatprep.subr.bf16.mxu0 0
  %2083 = vmatpush1.bf16.msra.mxu0 0
  %2084 = vmatprep.subr.bf16.mxu0 0
  %2085 = vmatpush1.bf16.msra.mxu0 0
  %2086 = vmatprep.subr.bf16.mxu0 0
  %2087 = vmatpush1.bf16.msra.mxu0 0
  %2088 = vmatprep.subr.bf16.mxu0 0
  %2089 = vmatpush1.bf16.msra.mxu0 0
  %2090 = vmatprep.mubr.bf16.mxu0 0
  %2091 = vmatmul.mubr.bf16.gmra.mrb[0].mxu0 %v2043
  %v2092 = vpop.f32.mrb[0].mxu0
  %v2093 = vadd.f32 %v1994, %v2092
  %v2094 = vpop.f32.mrb[0].mxu0
  %v2095 = vadd.f32 %v1998, %v2094
  %v2096 = vpop.f32.mrb[0].mxu0
  %v2097 = vadd.f32 %v1994, %v2096
  %v2098 = vpop.f32.mrb[0].mxu0
  %v2099 = vadd.f32 %v1998, %v2098
  %2100 = vdwg.mxu0
  %2101 = vmatprep.subr.bf16.mxu0 %v2032
  %2102 = vmatpush1.bf16.msra.mxu0 %v2031
  %2103 = vmatprep.subr.bf16.mxu0 %v2056
  %2104 = vmatpush1.bf16.msra.mxu0 %v2053
  %2105 = vmatprep.subr.bf16.mxu0 0
  %2106 = vmatpush1.bf16.msra.mxu0 0
  %2107 = vmatprep.subr.bf16.mxu0 0
  %2108 = vmatpush1.bf16.msra.mxu0 0
  %2109 = vmatprep.subr.bf16.mxu0 0
  %2110 = vmatpush1.bf16.msra.mxu0 0
  %2111 = vmatprep.subr.bf16.mxu0 0
  %2112 = vmatpush1.bf16.msra.mxu0 0
  %2113 = vmatprep.subr.bf16.mxu0 0
  %2114 = vmatpush1.bf16.msra.mxu0 0
  %2115 = vmatprep.subr.bf16.mxu0 0
  %2116 = vmatpush1.bf16.msra.mxu0 0
  %2117 = vmatprep.subr.bf16.mxu0 0
  %2118 = vmatpush1.bf16.msra.mxu0 0
  %2119 = vmatprep.subr.bf16.mxu0 0
  %2120 = vmatpush1.bf16.msra.mxu0 0
  %2121 = vmatprep.subr.bf16.mxu0 0
  %2122 = vmatpush1.bf16.msra.mxu0 0
  %2123 = vmatprep.subr.bf16.mxu0 0
  %2124 = vmatpush1.bf16.msra.mxu0 0
  %2125 = vmatprep.subr.bf16.mxu0 0
  %2126 = vmatpush1.bf16.msra.mxu0 0
  %2127 = vmatprep.subr.bf16.mxu0 0
  %2128 = vmatpush1.bf16.msra.mxu0 0
  %2129 = vmatprep.subr.bf16.mxu0 0
  %2130 = vmatpush1.bf16.msra.mxu0 0
  %2131 = vmatprep.subr.bf16.mxu0 0
  %2132 = vmatpush1.bf16.msra.mxu0 0
  %2133 = vmatprep.mubr.bf16.mxu0 0
  %2134 = vmatmul.mubr.bf16.gmra.mrb[0].mxu0 %v2043
  %v2135 = vpop.f32.mrb[0].mxu0
  %v2136 = vadd.f32 %v2002, %v2135
  %v2137 = vpop.f32.mrb[0].mxu0
  %v2138 = vadd.f32 %v2006, %v2137
  %v2139 = vpop.f32.mrb[0].mxu0
  %v2140 = vadd.f32 %v2002, %v2139
  %v2141 = vpop.f32.mrb[0].mxu0
  %v2142 = vadd.f32 %v2006, %v2141
  %2143 = vdwg.mxu0
  %v2144 = vmax.f32 %v2093, 0.0
  %v2145 = vmax.f32 %v2095, 0.0
  %v2146 = vmax.f32 %v2136, 0.0
  %v2147 = vmax.f32 %v2138, 0.0
  %v2148 = vmax.f32 %v2097, 0.0
  %v2149 = vmax.f32 %v2099, 0.0
  %v2150 = vmax.f32 %v2140, 0.0
  %v2151 = vmax.f32 %v2142, 0.0
  %v2152 = vpack.c.bf16 %v2148, %v2144
  %v2153 = vpack.c.bf16 %v2149, %v2145
  %v2154 = vpack.c.bf16 %v2150, %v2146
  %v2155 = vpack.c.bf16 %v2151, %v2147
  %v2156 = vld [vmem:[%s8] sm:$0xff]
  %v2157 = vld [vmem:[%s8 + $0x8] sm:$0xff]
  %v2158 = vld [vmem:[%s8 + $0x10] sm:$0xff]
  %v2159 = vld [vmem:[%s8 + $0x18] sm:$0xf]
  %v2160 = vld [vmem:[%s8 + $0x1c] sm:$0xff]
  %v2161 = vld [vmem:[%s8 + $0x24] sm:$0xff]
  %v2162 = vld [vmem:[%s8 + $0x2c] sm:$0xff]
  %v2163 = vld [vmem:[%s8 + $0x34] sm:$0xf]
  %v2164 = vld [vmem:[%s8 + $0x38] sm:$0xff]
  %v2165 = vld [vmem:[%s8 + $0x40] sm:$0xff]
  %v2166 = vld [vmem:[%s8 + $0x48] sm:$0xff]
  %v2167 = vld [vmem:[%s8 + $0x50] sm:$0xf]
  %v2168 = vld [vmem:[%s8 + $0x54] sm:$0xff]
  %v2169 = vld [vmem:[%s8 + $0x5c] sm:$0xff]
  %v2170 = vld [vmem:[%s8 + $0x64] sm:$0xff]
  %v2171 = vld [vmem:[%s8 + $0x6c] sm:$0xf]
  %v2172 = vld [vmem:[%s8 + $0x70] sm:$0xff]
  %v2173 = vld [vmem:[%s8 + $0x78] sm:$0xff]
  %v2174 = vld [vmem:[%s8 + $0x80] sm:$0xff]
  %v2175 = vld [vmem:[%s8 + $0x88] sm:$0xf]
  %v2176 = vld [vmem:[%s8 + $0x8c] sm:$0xff]
  %v2177 = vld [vmem:[%s8 + $0x94] sm:$0xff]
  %v2178 = vld [vmem:[%s8 + $0x9c] sm:$0xff]
  %v2179 = vld [vmem:[%s8 + $0xa4] sm:$0xf]
  %v2180 = vld [vmem:[%s8 + $0xa8] sm:$0xff]
  %v2181 = vld [vmem:[%s8 + $0xb0] sm:$0xff]
  %v2182 = vld [vmem:[%s8 + $0xb8] sm:$0xff]
  %v2183 = vld [vmem:[%s8 + $0xc0] sm:$0xf]
  %v2184 = vld [vmem:[%s8 + $0xc4] sm:$0xff]
  %v2185 = vld [vmem:[%s8 + $0xcc] sm:$0xff]
  %v2186 = vld [vmem:[%s8 + $0xd4] sm:$0xff]
  %v2187 = vld [vmem:[%s8 + $0xdc] sm:$0xf]
  %v2188 = vld [vmem:[%s8 + $0xe0] sm:$0xff]
  %v2189 = vld [vmem:[%s8 + $0xe8] sm:$0xff]
  %v2190 = vld [vmem:[%s8 + $0xf0] sm:$0xff]
  %v2191 = vld [vmem:[%s8 + $0xf8] sm:$0xf]
  %v2192 = vld [vmem:[%s8 + $0xfc] sm:$0xff]
  %v2193 = vld [vmem:[%s8 + $0x104] sm:$0xff]
  %v2194 = vld [vmem:[%s8 + $0x10c] sm:$0xff]
  %v2195 = vld [vmem:[%s8 + $0x114] sm:$0xf]
  %v2196 = vld [vmem:[%s8 + $0x118] sm:$0xff]
  %v2197 = vld [vmem:[%s8 + $0x120] sm:$0xff]
  %v2198 = vld [vmem:[%s8 + $0x128] sm:$0xff]
  %v2199 = vld [vmem:[%s8 + $0x130] sm:$0xf]
  %v2200 = vld [vmem:[%s8 + $0x134] sm:$0xff]
  %v2201 = vld [vmem:[%s8 + $0x13c] sm:$0xff]
  %v2202 = vld [vmem:[%s8 + $0x144] sm:$0xff]
  %v2203 = vld [vmem:[%s8 + $0x14c] sm:$0xf]
  %v2204 = vld [vmem:[%s8 + $0x150] sm:$0xff]
  %v2205 = vld [vmem:[%s8 + $0x158] sm:$0xff]
  %v2206 = vld [vmem:[%s8 + $0x160] sm:$0xff]
  %v2207 = vld [vmem:[%s8 + $0x168] sm:$0xf]
  %v2208 = vld [vmem:[%s8 + $0x16c] sm:$0xff]
  %v2209 = vld [vmem:[%s8 + $0x174] sm:$0xff]
  %v2210 = vld [vmem:[%s8 + $0x17c] sm:$0xff]
  %v2211 = vld [vmem:[%s8 + $0x184] sm:$0xf]
  %v2212 = vld [vmem:[%s8 + $0x188] sm:$0xff]
  %v2213 = vld [vmem:[%s8 + $0x190] sm:$0xff]
  %v2214 = vld [vmem:[%s8 + $0x198] sm:$0xff]
  %v2215 = vld [vmem:[%s8 + $0x1a0] sm:$0xf]
  %v2216 = vld [vmem:[%s8 + $0x1a4] sm:$0xff]
  %v2217 = vld [vmem:[%s8 + $0x1ac] sm:$0xff]
  %v2218 = vld [vmem:[%s8 + $0x1b4] sm:$0xff]
  %v2219 = vld [vmem:[%s8 + $0x1bc] sm:$0xf]
  %v2220 = vld [vmem:[%s8 + $0x1c0] sm:$0xff]
  %v2221 = vld [vmem:[%s8 + $0x1c8] sm:$0xff]
  %v2222 = vld [vmem:[%s8 + $0x1d0] sm:$0xff]
  %v2223 = vld [vmem:[%s8 + $0x1d8] sm:$0xf]
  %v2224 = vld [vmem:[%s8 + $0x1dc] sm:$0xff]
  %v2225 = vld [vmem:[%s8 + $0x1e4] sm:$0xff]
  %v2226 = vld [vmem:[%s8 + $0x1ec] sm:$0xff]
  %v2227 = vld [vmem:[%s8 + $0x1f4] sm:$0xf]
  %v2228 = vld [vmem:[%s8 + $0x1f8] sm:$0xff]
  %v2229 = vld [vmem:[%s8 + $0x200] sm:$0xff]
  %v2230 = vld [vmem:[%s8 + $0x208] sm:$0xff]
  %v2231 = vld [vmem:[%s8 + $0x210] sm:$0xf]
  %v2232 = vld [vmem:[%s8 + $0x214] sm:$0xff]
  %v2233 = vld [vmem:[%s8 + $0x21c] sm:$0xff]
  %v2234 = vld [vmem:[%s8 + $0x224] sm:$0xff]
  %v2235 = vld [vmem:[%s8 + $0x22c] sm:$0xf]
  %v2236 = vld [vmem:[%s8 + $0x230] sm:$0xff]
  %v2237 = vld [vmem:[%s8 + $0x238] sm:$0xff]
  %v2238 = vld [vmem:[%s8 + $0x240] sm:$0xff]
  %v2239 = vld [vmem:[%s8 + $0x248] sm:$0xf]
  %v2240 = vld [vmem:[%s8 + $0x24c] sm:$0xff]
  %v2241 = vld [vmem:[%s8 + $0x254] sm:$0xff]
  %v2242 = vld [vmem:[%s8 + $0x25c] sm:$0xff]
  %v2243 = vld [vmem:[%s8 + $0x264] sm:$0xf]
  %v2244 = vld [vmem:[%s8 + $0x268] sm:$0xff]
  %v2245 = vld [vmem:[%s8 + $0x270] sm:$0xff]
  %v2246 = vld [vmem:[%s8 + $0x278] sm:$0xff]
  %v2247 = vld [vmem:[%s8 + $0x280] sm:$0xf]
  %v2248 = vld [vmem:[%s8 + $0x284] sm:$0xff]
  %v2249 = vld [vmem:[%s8 + $0x28c] sm:$0xff]
  %v2250 = vld [vmem:[%s8 + $0x294] sm:$0xff]
  %v2251 = vld [vmem:[%s8 + $0x29c] sm:$0xf]
  %v2252 = vld [vmem:[%s8 + $0x2a0] sm:$0xff]
  %v2253 = vld [vmem:[%s8 + $0x2a8] sm:$0xff]
  %v2254 = vld [vmem:[%s8 + $0x2b0] sm:$0xff]
  %v2255 = vld [vmem:[%s8 + $0x2b8] sm:$0xf]
  %v2256 = vld [vmem:[%s8 + $0x2bc] sm:$0xff]
  %v2257 = vld [vmem:[%s8 + $0x2c4] sm:$0xff]
  %v2258 = vld [vmem:[%s8 + $0x2cc] sm:$0xff]
  %v2259 = vld [vmem:[%s8 + $0x2d4] sm:$0xf]
  %v2260 = vld [vmem:[%s8 + $0x2d8] sm:$0xff]
  %v2261 = vld [vmem:[%s8 + $0x2e0] sm:$0xff]
  %v2262 = vld [vmem:[%s8 + $0x2e8] sm:$0xff]
  %v2263 = vld [vmem:[%s8 + $0x2f0] sm:$0xf]
  %v2264 = vld [vmem:[%s8 + $0x2f4] sm:$0xff]
  %v2265 = vld [vmem:[%s8 + $0x2fc] sm:$0xff]
  %v2266 = vld [vmem:[%s8 + $0x304] sm:$0xff]
  %v2267 = vld [vmem:[%s8 + $0x30c] sm:$0xf]
  %v2268 = vld [vmem:[%s8 + $0x310] sm:$0xff]
  %v2269 = vld [vmem:[%s8 + $0x318] sm:$0xff]
  %v2270 = vld [vmem:[%s8 + $0x320] sm:$0xff]
  %v2271 = vld [vmem:[%s8 + $0x328] sm:$0xf]
  %v2272 = vld [vmem:[%s8 + $0x32c] sm:$0xff]
  %v2273 = vld [vmem:[%s8 + $0x334] sm:$0xff]
  %v2274 = vld [vmem:[%s8 + $0x33c] sm:$0xff]
  %v2275 = vld [vmem:[%s8 + $0x344] sm:$0xf]
  %v2276 = vld [vmem:[%s8 + $0x348] sm:$0xff]
  %v2277 = vld [vmem:[%s8 + $0x350] sm:$0xff]
  %v2278 = vld [vmem:[%s8 + $0x358] sm:$0xff]
  %v2279 = vld [vmem:[%s8 + $0x360] sm:$0xf]
  %v2280 = vld [vmem:[%s8 + $0x364] sm:$0xff]
  %v2281 = vld [vmem:[%s8 + $0x36c] sm:$0xff]
  %v2282 = vld [vmem:[%s8 + $0x374] sm:$0xff]
  %v2283 = vld [vmem:[%s8 + $0x37c] sm:$0xf]
  %v2284 = vld [vmem:[%s8 + $0x380] sm:$0xff]
  %v2285 = vld [vmem:[%s8 + $0x388] sm:$0xff]
  %v2286 = vld [vmem:[%s8 + $0x390] sm:$0xff]
  %v2287 = vld [vmem:[%s8 + $0x398] sm:$0xf]
  %v2288 = vld [vmem:[%s8 + $0x39c] sm:$0xff]
  %v2289 = vld [vmem:[%s8 + $0x3a4] sm:$0xff]
  %v2290 = vld [vmem:[%s8 + $0x3ac] sm:$0xff]
  %v2291 = vld [vmem:[%s8 + $0x3b4] sm:$0xf]
  %v2292 = vld [vmem:[%s8 + $0x3b8] sm:$0xff]
  %v2293 = vld [vmem:[%s8 + $0x3c0] sm:$0xff]
  %v2294 = vld [vmem:[%s8 + $0x3c8] sm:$0xff]
  %v2295 = vld [vmem:[%s8 + $0x3d0] sm:$0xf]
  %v2296 = vld [vmem:[%s8 + $0x3d4] sm:$0xff]
  %v2297 = vld [vmem:[%s8 + $0x3dc] sm:$0xff]
  %v2298 = vld [vmem:[%s8 + $0x3e4] sm:$0xff]
  %v2299 = vld [vmem:[%s8 + $0x3ec] sm:$0xf]
  %v2300 = vld [vmem:[%s8 + $0x3f0] sm:$0xff]
  %v2301 = vld [vmem:[%s8 + $0x3f8] sm:$0xff]
  %v2302 = vld [vmem:[%s8 + $0x400] sm:$0xff]
  %v2303 = vld [vmem:[%s8 + $0x408] sm:$0xf]
  %v2304 = vld [vmem:[%s8 + $0x40c] sm:$0xff]
  %v2305 = vld [vmem:[%s8 + $0x414] sm:$0xff]
  %v2306 = vld [vmem:[%s8 + $0x41c] sm:$0xff]
  %v2307 = vld [vmem:[%s8 + $0x424] sm:$0xf]
  %v2308 = vld [vmem:[%s8 + $0x428] sm:$0xff]
  %v2309 = vld [vmem:[%s8 + $0x430] sm:$0xff]
  %v2310 = vld [vmem:[%s8 + $0x438] sm:$0xff]
  %v2311 = vld [vmem:[%s8 + $0x440] sm:$0xf]
  %v2312 = vld [vmem:[%s8 + $0x444] sm:$0xff]
  %v2313 = vld [vmem:[%s8 + $0x44c] sm:$0xff]
  %v2314 = vld [vmem:[%s8 + $0x454] sm:$0xff]
  %v2315 = vld [vmem:[%s8 + $0x45c] sm:$0xf]
  %v2316 = vld [vmem:[%s8 + $0x460] sm:$0xff]
  %v2317 = vld [vmem:[%s8 + $0x468] sm:$0xff]
  %v2318 = vld [vmem:[%s8 + $0x470] sm:$0xff]
  %v2319 = vld [vmem:[%s8 + $0x478] sm:$0xf]
  %v2320 = vld [vmem:[%s8 + $0x47c] sm:$0xff]
  %v2321 = vld [vmem:[%s8 + $0x484] sm:$0xff]
  %v2322 = vld [vmem:[%s8 + $0x48c] sm:$0xff]
  %v2323 = vld [vmem:[%s8 + $0x494] sm:$0xf]
  %v2324 = vld [vmem:[%s8 + $0x498] sm:$0xff]
  %v2325 = vld [vmem:[%s8 + $0x4a0] sm:$0xff]
  %v2326 = vld [vmem:[%s8 + $0x4a8] sm:$0xff]
  %v2327 = vld [vmem:[%s8 + $0x4b0] sm:$0xf]
  %v2328 = vld [vmem:[%s8 + $0x4b4] sm:$0xff]
  %v2329 = vld [vmem:[%s8 + $0x4bc] sm:$0xff]
  %v2330 = vld [vmem:[%s8 + $0x4c4] sm:$0xff]
  %v2331 = vld [vmem:[%s8 + $0x4cc] sm:$0xf]
  %v2332 = vld [vmem:[%s8 + $0x4d0] sm:$0xff]
  %v2333 = vld [vmem:[%s8 + $0x4d8] sm:$0xff]
  %v2334 = vld [vmem:[%s8 + $0x4e0] sm:$0xff]
  %v2335 = vld [vmem:[%s8 + $0x4e8] sm:$0xf]
  %v2336 = vld [vmem:[%s8 + $0x4ec] sm:$0xff]
  %v2337 = vld [vmem:[%s8 + $0x4f4] sm:$0xff]
  %v2338 = vld [vmem:[%s8 + $0x4fc] sm:$0xff]
  %v2339 = vld [vmem:[%s8 + $0x504] sm:$0xf]
  %v2340 = vld [vmem:[%s8 + $0x508] sm:$0xff]
  %v2341 = vld [vmem:[%s8 + $0x510] sm:$0xff]
  %v2342 = vld [vmem:[%s8 + $0x518] sm:$0xff]
  %v2343 = vld [vmem:[%s8 + $0x520] sm:$0xf]
  %v2344 = vld [vmem:[%s8 + $0x524] sm:$0xff]
  %v2345 = vld [vmem:[%s8 + $0x52c] sm:$0xff]
  %v2346 = vld [vmem:[%s8 + $0x534] sm:$0xff]
  %v2347 = vld [vmem:[%s8 + $0x53c] sm:$0xf]
  %v2348 = vld [vmem:[%s8 + $0x540] sm:$0xff]
  %v2349 = vld [vmem:[%s8 + $0x548] sm:$0xff]
  %v2350 = vld [vmem:[%s8 + $0x550] sm:$0xff]
  %v2351 = vld [vmem:[%s8 + $0x558] sm:$0xf]
  %v2352 = vld [vmem:[%s8 + $0x55c] sm:$0xff]
  %v2353 = vld [vmem:[%s8 + $0x564] sm:$0xff]
  %v2354 = vld [vmem:[%s8 + $0x56c] sm:$0xff]
  %v2355 = vld [vmem:[%s8 + $0x574] sm:$0xf]
  %v2356 = vld [vmem:[%s8 + $0x578] sm:$0xff]
  %v2357 = vld [vmem:[%s8 + $0x580] sm:$0xff]
  %v2358 = vld [vmem:[%s8 + $0x588] sm:$0xff]
  %v2359 = vld [vmem:[%s8 + $0x590] sm:$0xf]
  %v2360 = vld [vmem:[%s8 + $0x594] sm:$0xff]
  %v2361 = vld [vmem:[%s8 + $0x59c] sm:$0xff]
  %v2362 = vld [vmem:[%s8 + $0x5a4] sm:$0xff]
  %v2363 = vld [vmem:[%s8 + $0x5ac] sm:$0xf]
  %v2364 = vld [vmem:[%s8 + $0x5b0] sm:$0xff]
  %v2365 = vld [vmem:[%s8 + $0x5b8] sm:$0xff]
  %v2366 = vld [vmem:[%s8 + $0x5c0] sm:$0xff]
  %v2367 = vld [vmem:[%s8 + $0x5c8] sm:$0xf]
  %v2368 = vld [vmem:[%s8 + $0x5cc] sm:$0xff]
  %v2369 = vld [vmem:[%s8 + $0x5d4] sm:$0xff]
  %v2370 = vld [vmem:[%s8 + $0x5dc] sm:$0xff]
  %v2371 = vld [vmem:[%s8 + $0x5e4] sm:$0xf]
  %v2372 = vld [vmem:[%s8 + $0x5e8] sm:$0xff]
  %v2373 = vld [vmem:[%s8 + $0x5f0] sm:$0xff]
  %v2374 = vld [vmem:[%s8 + $0x5f8] sm:$0xff]
  %v2375 = vld [vmem:[%s8 + $0x600] sm:$0xf]
  %v2376 = vld [vmem:[%s8 + $0x604] sm:$0xff]
  %v2377 = vld [vmem:[%s8 + $0x60c] sm:$0xff]
  %v2378 = vld [vmem:[%s8 + $0x614] sm:$0xff]
  %v2379 = vld [vmem:[%s8 + $0x61c] sm:$0xf]
  %v2380 = vld [vmem:[%s8 + $0x620] sm:$0xff]
  %v2381 = vld [vmem:[%s8 + $0x628] sm:$0xff]
  %v2382 = vld [vmem:[%s8 + $0x630] sm:$0xff]
  %v2383 = vld [vmem:[%s8 + $0x638] sm:$0xf]
  %v2384 = vld [vmem:[%s8 + $0x63c] sm:$0xff]
  %v2385 = vld [vmem:[%s8 + $0x644] sm:$0xff]
  %v2386 = vld [vmem:[%s8 + $0x64c] sm:$0xff]
  %v2387 = vld [vmem:[%s8 + $0x654] sm:$0xf]
  %v2388 = vld [vmem:[%s8 + $0x658] sm:$0xff]
  %v2389 = vld [vmem:[%s8 + $0x660] sm:$0xff]
  %v2390 = vld [vmem:[%s8 + $0x668] sm:$0xff]
  %v2391 = vld [vmem:[%s8 + $0x670] sm:$0xf]
  %v2392 = vld [vmem:[%s8 + $0x674] sm:$0xff]
  %v2393 = vld [vmem:[%s8 + $0x67c] sm:$0xff]
  %v2394 = vld [vmem:[%s8 + $0x684] sm:$0xff]
  %v2395 = vld [vmem:[%s8 + $0x68c] sm:$0xf]
  %v2396 = vld [vmem:[%s8 + $0x690] sm:$0xff]
  %v2397 = vld [vmem:[%s8 + $0x698] sm:$0xff]
  %v2398 = vld [vmem:[%s8 + $0x6a0] sm:$0xff]
  %v2399 = vld [vmem:[%s8 + $0x6a8] sm:$0xf]
  %v2400 = vld [vmem:[%s8 + $0x6ac] sm:$0xff]
  %v2401 = vld [vmem:[%s8 + $0x6b4] sm:$0xff]
  %v2402 = vld [vmem:[%s8 + $0x6bc] sm:$0xff]
  %v2403 = vld [vmem:[%s8 + $0x6c4] sm:$0xf]
  %v2404 = vld [vmem:[%s8 + $0x6c8] sm:$0xff]
  %v2405 = vld [vmem:[%s8 + $0x6d0] sm:$0xff]
  %v2406 = vld [vmem:[%s8 + $0x6d8] sm:$0xff]
  %v2407 = vld [vmem:[%s8 + $0x6e0] sm:$0xf]
  %v2408 = vld [vmem:[%s8 + $0x6e4] sm:$0xff]
  %v2409 = vld [vmem:[%s8 + $0x6ec] sm:$0xff]
  %v2410 = vld [vmem:[%s8 + $0x6f4] sm:$0xff]
  %v2411 = vld [vmem:[%s8 + $0x6fc] sm:$0xf]
  %v2412 = vld [vmem:[%s9] sm:$0x7f]
  %v2414 = vlaneseq
  %v2415 = vshrl.u32 %v2414, 7
  %v2416 = vsub.s32 0, %v2415
  %v2417 = vrot.slane %v2412, %v2416
  %v2418 = vlaneseq
  %v2419 = vshrl.u32 %v2418, 7
  %v2420 = vsub.s32 1, %v2419
  %v2421 = vrot.slane %v2412, %v2420
  %v2422 = vlaneseq
  %v2423 = vshrl.u32 %v2422, 7
  %v2424 = vsub.s32 2, %v2423
  %v2425 = vrot.slane %v2412, %v2424
  %v2426 = vlaneseq
  %v2427 = vshrl.u32 %v2426, 7
  %v2428 = vsub.s32 3, %v2427
  %v2429 = vrot.slane %v2412, %v2428
  %v2430 = vlaneseq
  %v2431 = vshrl.u32 %v2430, 7
  %v2432 = vsub.s32 4, %v2431
  %v2433 = vrot.slane %v2412, %v2432
  %v2434 = vlaneseq
  %v2435 = vshrl.u32 %v2434, 7
  %v2436 = vsub.s32 5, %v2435
  %v2437 = vrot.slane %v2412, %v2436
  %v2438 = vlaneseq
  %v2439 = vshrl.u32 %v2438, 7
  %v2440 = vsub.s32 6, %v2439
  %v2441 = vrot.slane %v2412, %v2440
  %v2705 = vunpack.c.l.b16 %v2156
  %v2706 = vunpack.c.h.b16 %v2156
  %v2707 = vunpack.c.l.b16 %v2157
  %v2708 = vunpack.c.h.b16 %v2157
  %v2709 = vunpack.c.l.b16 %v2158
  %v2710 = vunpack.c.h.b16 %v2158
  %v2711 = vunpack.c.l.b16 %v2159
  %v2712 = vunpack.c.l.b16 %v2160
  %v2713 = vunpack.c.h.b16 %v2160
  %v2714 = vunpack.c.l.b16 %v2161
  %v2715 = vunpack.c.h.b16 %v2161
  %v2716 = vunpack.c.l.b16 %v2162
  %v2717 = vunpack.c.h.b16 %v2162
  %v2718 = vunpack.c.l.b16 %v2163
  %v2719 = vunpack.c.l.b16 %v2164
  %v2720 = vunpack.c.h.b16 %v2164
  %v2721 = vunpack.c.l.b16 %v2165
  %v2722 = vunpack.c.h.b16 %v2165
  %v2723 = vunpack.c.l.b16 %v2166
  %v2724 = vunpack.c.h.b16 %v2166
  %v2725 = vunpack.c.l.b16 %v2167
  %v2726 = vunpack.c.l.b16 %v2168
  %v2727 = vunpack.c.h.b16 %v2168
  %v2728 = vunpack.c.l.b16 %v2169
  %v2729 = vunpack.c.h.b16 %v2169
  %v2730 = vunpack.c.l.b16 %v2170
  %v2731 = vunpack.c.h.b16 %v2170
  %v2732 = vunpack.c.l.b16 %v2171
  %v2733 = vunpack.c.l.b16 %v2172
  %v2734 = vunpack.c.h.b16 %v2172
  %v2735 = vunpack.c.l.b16 %v2173
  %v2736 = vunpack.c.h.b16 %v2173
  %v2737 = vunpack.c.l.b16 %v2174
  %v2738 = vunpack.c.h.b16 %v2174
  %v2739 = vunpack.c.l.b16 %v2175
  %v2740 = vunpack.c.l.b16 %v2176
  %v2741 = vunpack.c.h.b16 %v2176
  %v2742 = vunpack.c.l.b16 %v2177
  %v2743 = vunpack.c.h.b16 %v2177
  %v2744 = vunpack.c.l.b16 %v2178
  %v2745 = vunpack.c.h.b16 %v2178
  %v2746 = vunpack.c.l.b16 %v2179
  %v2747 = vunpack.c.l.b16 %v2180
  %v2748 = vunpack.c.h.b16 %v2180
  %v2749 = vunpack.c.l.b16 %v2181
  %v2750 = vunpack.c.h.b16 %v2181
  %v2751 = vunpack.c.l.b16 %v2182
  %v2752 = vunpack.c.h.b16 %v2182
  %v2753 = vunpack.c.l.b16 %v2183
  %v2754 = vunpack.c.l.b16 %v2184
  %v2755 = vunpack.c.h.b16 %v2184
  %v2756 = vunpack.c.l.b16 %v2185
  %v2757 = vunpack.c.h.b16 %v2185
  %v2758 = vunpack.c.l.b16 %v2186
  %v2759 = vunpack.c.h.b16 %v2186
  %v2760 = vunpack.c.l.b16 %v2187
  %v2761 = vunpack.c.l.b16 %v2188
  %v2762 = vunpack.c.h.b16 %v2188
  %v2763 = vunpack.c.l.b16 %v2189
  %v2764 = vunpack.c.h.b16 %v2189
  %v2765 = vunpack.c.l.b16 %v2190
  %v2766 = vunpack.c.h.b16 %v2190
  %v2767 = vunpack.c.l.b16 %v2191
  %v2768 = vunpack.c.l.b16 %v2192
  %v2769 = vunpack.c.h.b16 %v2192
  %v2770 = vunpack.c.l.b16 %v2193
  %v2771 = vunpack.c.h.b16 %v2193
  %v2772 = vunpack.c.l.b16 %v2194
  %v2773 = vunpack.c.h.b16 %v2194
  %v2774 = vunpack.c.l.b16 %v2195
  %v2775 = vunpack.c.l.b16 %v2196
  %v2776 = vunpack.c.h.b16 %v2196
  %v2777 = vunpack.c.l.b16 %v2197
  %v2778 = vunpack.c.h.b16 %v2197
  %v2779 = vunpack.c.l.b16 %v2198
  %v2780 = vunpack.c.h.b16 %v2198
  %v2781 = vunpack.c.l.b16 %v2199
  %v2782 = vunpack.c.l.b16 %v2200
  %v2783 = vunpack.c.h.b16 %v2200
  %v2784 = vunpack.c.l.b16 %v2201
  %v2785 = vunpack.c.h.b16 %v2201
  %v2786 = vunpack.c.l.b16 %v2202
  %v2787 = vunpack.c.h.b16 %v2202
  %v2788 = vunpack.c.l.b16 %v2203
  %v2789 = vunpack.c.l.b16 %v2204
  %v2790 = vunpack.c.h.b16 %v2204
  %v2791 = vunpack.c.l.b16 %v2205
  %v2792 = vunpack.c.h.b16 %v2205
  %v2793 = vunpack.c.l.b16 %v2206
  %v2794 = vunpack.c.h.b16 %v2206
  %v2795 = vunpack.c.l.b16 %v2207
  %v2796 = vunpack.c.l.b16 %v2208
  %v2797 = vunpack.c.h.b16 %v2208
  %v2798 = vunpack.c.l.b16 %v2209
  %v2799 = vunpack.c.h.b16 %v2209
  %v2800 = vunpack.c.l.b16 %v2210
  %v2801 = vunpack.c.h.b16 %v2210
  %v2802 = vunpack.c.l.b16 %v2211
  %v2803 = vunpack.c.l.b16 %v2212
  %v2804 = vunpack.c.h.b16 %v2212
  %v2805 = vunpack.c.l.b16 %v2213
  %v2806 = vunpack.c.h.b16 %v2213
  %v2807 = vunpack.c.l.b16 %v2214
  %v2808 = vunpack.c.h.b16 %v2214
  %v2809 = vunpack.c.l.b16 %v2215
  %v2810 = vunpack.c.l.b16 %v2216
  %v2811 = vunpack.c.h.b16 %v2216
  %v2812 = vunpack.c.l.b16 %v2217
  %v2813 = vunpack.c.h.b16 %v2217
  %v2814 = vunpack.c.l.b16 %v2218
  %v2815 = vunpack.c.h.b16 %v2218
  %v2816 = vunpack.c.l.b16 %v2219
  %v2817 = vunpack.c.l.b16 %v2220
  %v2818 = vunpack.c.h.b16 %v2220
  %v2819 = vunpack.c.l.b16 %v2221
  %v2820 = vunpack.c.h.b16 %v2221
  %v2821 = vunpack.c.l.b16 %v2222
  %v2822 = vunpack.c.h.b16 %v2222
  %v2823 = vunpack.c.l.b16 %v2223
  %v2824 = vunpack.c.l.b16 %v2224
  %v2825 = vunpack.c.h.b16 %v2224
  %v2826 = vunpack.c.l.b16 %v2225
  %v2827 = vunpack.c.h.b16 %v2225
  %v2828 = vunpack.c.l.b16 %v2226
  %v2829 = vunpack.c.h.b16 %v2226
  %v2830 = vunpack.c.l.b16 %v2227
  %v2831 = vunpack.c.l.b16 %v2228
  %v2832 = vunpack.c.h.b16 %v2228
  %v2833 = vunpack.c.l.b16 %v2229
  %v2834 = vunpack.c.h.b16 %v2229
  %v2835 = vunpack.c.l.b16 %v2230
  %v2836 = vunpack.c.h.b16 %v2230
  %v2837 = vunpack.c.l.b16 %v2231
  %v2838 = vunpack.c.l.b16 %v2232
  %v2839 = vunpack.c.h.b16 %v2232
  %v2840 = vunpack.c.l.b16 %v2233
  %v2841 = vunpack.c.h.b16 %v2233
  %v2842 = vunpack.c.l.b16 %v2234
  %v2843 = vunpack.c.h.b16 %v2234
  %v2844 = vunpack.c.l.b16 %v2235
  %v2845 = vunpack.c.l.b16 %v2236
  %v2846 = vunpack.c.h.b16 %v2236
  %v2847 = vunpack.c.l.b16 %v2237
  %v2848 = vunpack.c.h.b16 %v2237
  %v2849 = vunpack.c.l.b16 %v2238
  %v2850 = vunpack.c.h.b16 %v2238
  %v2851 = vunpack.c.l.b16 %v2239
  %v2852 = vunpack.c.l.b16 %v2240
  %v2853 = vunpack.c.h.b16 %v2240
  %v2854 = vunpack.c.l.b16 %v2241
  %v2855 = vunpack.c.h.b16 %v2241
  %v2856 = vunpack.c.l.b16 %v2242
  %v2857 = vunpack.c.h.b16 %v2242
  %v2858 = vunpack.c.l.b16 %v2243
  %v2859 = vunpack.c.l.b16 %v2244
  %v2860 = vunpack.c.h.b16 %v2244
  %v2861 = vunpack.c.l.b16 %v2245
  %v2862 = vunpack.c.h.b16 %v2245
  %v2863 = vunpack.c.l.b16 %v2246
  %v2864 = vunpack.c.h.b16 %v2246
  %v2865 = vunpack.c.l.b16 %v2247
  %v2866 = vunpack.c.l.b16 %v2248
  %v2867 = vunpack.c.h.b16 %v2248
  %v2868 = vunpack.c.l.b16 %v2249
  %v2869 = vunpack.c.h.b16 %v2249
  %v2870 = vunpack.c.l.b16 %v2250
  %v2871 = vunpack.c.h.b16 %v2250
  %v2872 = vunpack.c.l.b16 %v2251
  %v2873 = vunpack.c.l.b16 %v2252
  %v2874 = vunpack.c.h.b16 %v2252
  %v2875 = vunpack.c.l.b16 %v2253
  %v2876 = vunpack.c.h.b16 %v2253
  %v2877 = vunpack.c.l.b16 %v2254
  %v2878 = vunpack.c.h.b16 %v2254
  %v2879 = vunpack.c.l.b16 %v2255
  %v2880 = vunpack.c.l.b16 %v2256
  %v2881 = vunpack.c.h.b16 %v2256
  %v2882 = vunpack.c.l.b16 %v2257
  %v2883 = vunpack.c.h.b16 %v2257
  %v2884 = vunpack.c.l.b16 %v2258
  %v2885 = vunpack.c.h.b16 %v2258
  %v2886 = vunpack.c.l.b16 %v2259
  %v2887 = vunpack.c.l.b16 %v2260
  %v2888 = vunpack.c.h.b16 %v2260
  %v2889 = vunpack.c.l.b16 %v2261
  %v2890 = vunpack.c.h.b16 %v2261
  %v2891 = vunpack.c.l.b16 %v2262
  %v2892 = vunpack.c.h.b16 %v2262
  %v2893 = vunpack.c.l.b16 %v2263
  %v2894 = vunpack.c.l.b16 %v2264
  %v2895 = vunpack.c.h.b16 %v2264
  %v2896 = vunpack.c.l.b16 %v2265
  %v2897 = vunpack.c.h.b16 %v2265
  %v2898 = vunpack.c.l.b16 %v2266
  %v2899 = vunpack.c.h.b16 %v2266
  %v2900 = vunpack.c.l.b16 %v2267
  %v2901 = vunpack.c.l.b16 %v2268
  %v2902 = vunpack.c.h.b16 %v2268
  %v2903 = vunpack.c.l.b16 %v2269
  %v2904 = vunpack.c.h.b16 %v2269
  %v2905 = vunpack.c.l.b16 %v2270
  %v2906 = vunpack.c.h.b16 %v2270
  %v2907 = vunpack.c.l.b16 %v2271
  %v2908 = vunpack.c.l.b16 %v2272
  %v2909 = vunpack.c.h.b16 %v2272
  %v2910 = vunpack.c.l.b16 %v2273
  %v2911 = vunpack.c.h.b16 %v2273
  %v2912 = vunpack.c.l.b16 %v2274
  %v2913 = vunpack.c.h.b16 %v2274
  %v2914 = vunpack.c.l.b16 %v2275
  %v2915 = vunpack.c.l.b16 %v2276
  %v2916 = vunpack.c.h.b16 %v2276
  %v2917 = vunpack.c.l.b16 %v2277
  %v2918 = vunpack.c.h.b16 %v2277
  %v2919 = vunpack.c.l.b16 %v2278
  %v2920 = vunpack.c.h.b16 %v2278
  %v2921 = vunpack.c.l.b16 %v2279
  %v2922 = vunpack.c.l.b16 %v2280
  %v2923 = vunpack.c.h.b16 %v2280
  %v2924 = vunpack.c.l.b16 %v2281
  %v2925 = vunpack.c.h.b16 %v2281
  %v2926 = vunpack.c.l.b16 %v2282
  %v2927 = vunpack.c.h.b16 %v2282
  %v2928 = vunpack.c.l.b16 %v2283
  %v2929 = vunpack.c.l.b16 %v2284
  %v2930 = vunpack.c.h.b16 %v2284
  %v2931 = vunpack.c.l.b16 %v2285
  %v2932 = vunpack.c.h.b16 %v2285
  %v2933 = vunpack.c.l.b16 %v2286
  %v2934 = vunpack.c.h.b16 %v2286
  %v2935 = vunpack.c.l.b16 %v2287
  %v2936 = vunpack.c.l.b16 %v2288
  %v2937 = vunpack.c.h.b16 %v2288
  %v2938 = vunpack.c.l.b16 %v2289
  %v2939 = vunpack.c.h.b16 %v2289
  %v2940 = vunpack.c.l.b16 %v2290
  %v2941 = vunpack.c.h.b16 %v2290
  %v2942 = vunpack.c.l.b16 %v2291
  %v2943 = vunpack.c.l.b16 %v2292
  %v2944 = vunpack.c.h.b16 %v2292
  %v2945 = vunpack.c.l.b16 %v2293
  %v2946 = vunpack.c.h.b16 %v2293
  %v2947 = vunpack.c.l.b16 %v2294
  %v2948 = vunpack.c.h.b16 %v2294
  %v2949 = vunpack.c.l.b16 %v2295
  %v2950 = vunpack.c.l.b16 %v2296
  %v2951 = vunpack.c.h.b16 %v2296
  %v2952 = vunpack.c.l.b16 %v2297
  %v2953 = vunpack.c.h.b16 %v2297
  %v2954 = vunpack.c.l.b16 %v2298
  %v2955 = vunpack.c.h.b16 %v2298
  %v2956 = vunpack.c.l.b16 %v2299
  %v2957 = vunpack.c.l.b16 %v2300
  %v2958 = vunpack.c.h.b16 %v2300
  %v2959 = vunpack.c.l.b16 %v2301
  %v2960 = vunpack.c.h.b16 %v2301
  %v2961 = vunpack.c.l.b16 %v2302
  %v2962 = vunpack.c.h.b16 %v2302
  %v2963 = vunpack.c.l.b16 %v2303
  %v2964 = vunpack.c.l.b16 %v2304
  %v2965 = vunpack.c.h.b16 %v2304
  %v2966 = vunpack.c.l.b16 %v2305
  %v2967 = vunpack.c.h.b16 %v2305
  %v2968 = vunpack.c.l.b16 %v2306
  %v2969 = vunpack.c.h.b16 %v2306
  %v2970 = vunpack.c.l.b16 %v2307
  %v2971 = vunpack.c.l.b16 %v2308
  %v2972 = vunpack.c.h.b16 %v2308
  %v2973 = vunpack.c.l.b16 %v2309
  %v2974 = vunpack.c.h.b16 %v2309
  %v2975 = vunpack.c.l.b16 %v2310
  %v2976 = vunpack.c.h.b16 %v2310
  %v2977 = vunpack.c.l.b16 %v2311
  %v2978 = vunpack.c.l.b16 %v2312
  %v2979 = vunpack.c.h.b16 %v2312
  %v2980 = vunpack.c.l.b16 %v2313
  %v2981 = vunpack.c.h.b16 %v2313
  %v2982 = vunpack.c.l.b16 %v2314
  %v2983 = vunpack.c.h.b16 %v2314
  %v2984 = vunpack.c.l.b16 %v2315
  %v2985 = vunpack.c.l.b16 %v2316
  %v2986 = vunpack.c.h.b16 %v2316
  %v2987 = vunpack.c.l.b16 %v2317
  %v2988 = vunpack.c.h.b16 %v2317
  %v2989 = vunpack.c.l.b16 %v2318
  %v2990 = vunpack.c.h.b16 %v2318
  %v2991 = vunpack.c.l.b16 %v2319
  %v2992 = vunpack.c.l.b16 %v2320
  %v2993 = vunpack.c.h.b16 %v2320
  %v2994 = vunpack.c.l.b16 %v2321
  %v2995 = vunpack.c.h.b16 %v2321
  %v2996 = vunpack.c.l.b16 %v2322
  %v2997 = vunpack.c.h.b16 %v2322
  %v2998 = vunpack.c.l.b16 %v2323
  %v2999 = vunpack.c.l.b16 %v2324
  %v3000 = vunpack.c.h.b16 %v2324
  %v3001 = vunpack.c.l.b16 %v2325
  %v3002 = vunpack.c.h.b16 %v2325
  %v3003 = vunpack.c.l.b16 %v2326
  %v3004 = vunpack.c.h.b16 %v2326
  %v3005 = vunpack.c.l.b16 %v2327
  %v3006 = vunpack.c.l.b16 %v2328
  %v3007 = vunpack.c.h.b16 %v2328
  %v3008 = vunpack.c.l.b16 %v2329
  %v3009 = vunpack.c.h.b16 %v2329
  %v3010 = vunpack.c.l.b16 %v2330
  %v3011 = vunpack.c.h.b16 %v2330
  %v3012 = vunpack.c.l.b16 %v2331
  %v3013 = vunpack.c.l.b16 %v2332
  %v3014 = vunpack.c.h.b16 %v2332
  %v3015 = vunpack.c.l.b16 %v2333
  %v3016 = vunpack.c.h.b16 %v2333
  %v3017 = vunpack.c.l.b16 %v2334
  %v3018 = vunpack.c.h.b16 %v2334
  %v3019 = vunpack.c.l.b16 %v2335
  %v3020 = vunpack.c.l.b16 %v2336
  %v3021 = vunpack.c.h.b16 %v2336
  %v3022 = vunpack.c.l.b16 %v2337
  %v3023 = vunpack.c.h.b16 %v2337
  %v3024 = vunpack.c.l.b16 %v2338
  %v3025 = vunpack.c.h.b16 %v2338
  %v3026 = vunpack.c.l.b16 %v2339
  %v3027 = vunpack.c.l.b16 %v2340
  %v3028 = vunpack.c.h.b16 %v2340
  %v3029 = vunpack.c.l.b16 %v2341
  %v3030 = vunpack.c.h.b16 %v2341
  %v3031 = vunpack.c.l.b16 %v2342
  %v3032 = vunpack.c.h.b16 %v2342
  %v3033 = vunpack.c.l.b16 %v2343
  %v3034 = vunpack.c.l.b16 %v2344
  %v3035 = vunpack.c.h.b16 %v2344
  %v3036 = vunpack.c.l.b16 %v2345
  %v3037 = vunpack.c.h.b16 %v2345
  %v3038 = vunpack.c.l.b16 %v2346
  %v3039 = vunpack.c.h.b16 %v2346
  %v3040 = vunpack.c.l.b16 %v2347
  %v3041 = vunpack.c.l.b16 %v2348
  %v3042 = vunpack.c.h.b16 %v2348
  %v3043 = vunpack.c.l.b16 %v2349
  %v3044 = vunpack.c.h.b16 %v2349
  %v3045 = vunpack.c.l.b16 %v2350
  %v3046 = vunpack.c.h.b16 %v2350
  %v3047 = vunpack.c.l.b16 %v2351
  %v3048 = vunpack.c.l.b16 %v2352
  %v3049 = vunpack.c.h.b16 %v2352
  %v3050 = vunpack.c.l.b16 %v2353
  %v3051 = vunpack.c.h.b16 %v2353
  %v3052 = vunpack.c.l.b16 %v2354
  %v3053 = vunpack.c.h.b16 %v2354
  %v3054 = vunpack.c.l.b16 %v2355
  %v3055 = vunpack.c.l.b16 %v2356
  %v3056 = vunpack.c.h.b16 %v2356
  %v3057 = vunpack.c.l.b16 %v2357
  %v3058 = vunpack.c.h.b16 %v2357
  %v3059 = vunpack.c.l.b16 %v2358
  %v3060 = vunpack.c.h.b16 %v2358
  %v3061 = vunpack.c.l.b16 %v2359
  %v3062 = vunpack.c.l.b16 %v2360
  %v3063 = vunpack.c.h.b16 %v2360
  %v3064 = vunpack.c.l.b16 %v2361
  %v3065 = vunpack.c.h.b16 %v2361
  %v3066 = vunpack.c.l.b16 %v2362
  %v3067 = vunpack.c.h.b16 %v2362
  %v3068 = vunpack.c.l.b16 %v2363
  %v3069 = vunpack.c.l.b16 %v2364
  %v3070 = vunpack.c.h.b16 %v2364
  %v3071 = vunpack.c.l.b16 %v2365
  %v3072 = vunpack.c.h.b16 %v2365
  %v3073 = vunpack.c.l.b16 %v2366
  %v3074 = vunpack.c.h.b16 %v2366
  %v3075 = vunpack.c.l.b16 %v2367
  %v3076 = vunpack.c.l.b16 %v2368
  %v3077 = vunpack.c.h.b16 %v2368
  %v3078 = vunpack.c.l.b16 %v2369
  %v3079 = vunpack.c.h.b16 %v2369
  %v3080 = vunpack.c.l.b16 %v2370
  %v3081 = vunpack.c.h.b16 %v2370
  %v3082 = vunpack.c.l.b16 %v2371
  %v3083 = vunpack.c.l.b16 %v2372
  %v3084 = vunpack.c.h.b16 %v2372
  %v3085 = vunpack.c.l.b16 %v2373
  %v3086 = vunpack.c.h.b16 %v2373
  %v3087 = vunpack.c.l.b16 %v2374
  %v3088 = vunpack.c.h.b16 %v2374
  %v3089 = vunpack.c.l.b16 %v2375
  %v3090 = vunpack.c.l.b16 %v2376
  %v3091 = vunpack.c.h.b16 %v2376
  %v3092 = vunpack.c.l.b16 %v2377
  %v3093 = vunpack.c.h.b16 %v2377
  %v3094 = vunpack.c.l.b16 %v2378
  %v3095 = vunpack.c.h.b16 %v2378
  %v3096 = vunpack.c.l.b16 %v2379
  %v3097 = vunpack.c.l.b16 %v2380
  %v3098 = vunpack.c.h.b16 %v2380
  %v3099 = vunpack.c.l.b16 %v2381
  %v3100 = vunpack.c.h.b16 %v2381
  %v3101 = vunpack.c.l.b16 %v2382
  %v3102 = vunpack.c.h.b16 %v2382
  %v3103 = vunpack.c.l.b16 %v2383
  %v3104 = vunpack.c.l.b16 %v2384
  %v3105 = vunpack.c.h.b16 %v2384
  %v3106 = vunpack.c.l.b16 %v2385
  %v3107 = vunpack.c.h.b16 %v2385
  %v3108 = vunpack.c.l.b16 %v2386
  %v3109 = vunpack.c.h.b16 %v2386
  %v3110 = vunpack.c.l.b16 %v2387
  %v3111 = vunpack.c.l.b16 %v2388
  %v3112 = vunpack.c.h.b16 %v2388
  %v3113 = vunpack.c.l.b16 %v2389
  %v3114 = vunpack.c.h.b16 %v2389
  %v3115 = vunpack.c.l.b16 %v2390
  %v3116 = vunpack.c.h.b16 %v2390
  %v3117 = vunpack.c.l.b16 %v2391
  %v3118 = vunpack.c.l.b16 %v2392
  %v3119 = vunpack.c.h.b16 %v2392
  %v3120 = vunpack.c.l.b16 %v2393
  %v3121 = vunpack.c.h.b16 %v2393
  %v3122 = vunpack.c.l.b16 %v2394
  %v3123 = vunpack.c.h.b16 %v2394
  %v3124 = vunpack.c.l.b16 %v2395
  %v3125 = vunpack.c.l.b16 %v2396
  %v3126 = vunpack.c.h.b16 %v2396
  %v3127 = vunpack.c.l.b16 %v2397
  %v3128 = vunpack.c.h.b16 %v2397
  %v3129 = vunpack.c.l.b16 %v2398
  %v3130 = vunpack.c.h.b16 %v2398
  %v3131 = vunpack.c.l.b16 %v2399
  %v3132 = vunpack.c.l.b16 %v2400
  %v3133 = vunpack.c.h.b16 %v2400
  %v3134 = vunpack.c.l.b16 %v2401
  %v3135 = vunpack.c.h.b16 %v2401
  %v3136 = vunpack.c.l.b16 %v2402
  %v3137 = vunpack.c.h.b16 %v2402
  %v3138 = vunpack.c.l.b16 %v2403
  %v3139 = vunpack.c.l.b16 %v2404
  %v3140 = vunpack.c.h.b16 %v2404
  %v3141 = vunpack.c.l.b16 %v2405
  %v3142 = vunpack.c.h.b16 %v2405
  %v3143 = vunpack.c.l.b16 %v2406
  %v3144 = vunpack.c.h.b16 %v2406
  %v3145 = vunpack.c.l.b16 %v2407
  %v3146 = vunpack.c.l.b16 %v2408
  %v3147 = vunpack.c.h.b16 %v2408
  %v3148 = vunpack.c.l.b16 %v2409
  %v3149 = vunpack.c.h.b16 %v2409
  %v3150 = vunpack.c.l.b16 %v2410
  %v3151 = vunpack.c.h.b16 %v2410
  %v3152 = vunpack.c.l.b16 %v2411
  %v3153 = vpack.c.b16 %v2712, %v2705
  %v3154 = vpack.c.b16 %v2713, %v2706
  %v3155 = vpack.c.b16 %v2714, %v2707
  %v3156 = vpack.c.b16 %v2715, %v2708
  %v3157 = vpack.c.b16 %v2716, %v2709
  %v3158 = vpack.c.b16 %v2717, %v2710
  %v3159 = vpack.c.b16 %v2718, %v2711
  %v3160 = vpack.c.b16 %v2726, %v2719
  %v3161 = vpack.c.b16 %v2727, %v2720
  %v3162 = vpack.c.b16 %v2728, %v2721
  %v3163 = vpack.c.b16 %v2729, %v2722
  %v3164 = vpack.c.b16 %v2730, %v2723
  %v3165 = vpack.c.b16 %v2731, %v2724
  %v3166 = vpack.c.b16 %v2732, %v2725
  %v3167 = vpack.c.b16 %v2740, %v2733
  %v3168 = vpack.c.b16 %v2741, %v2734
  %v3169 = vpack.c.b16 %v2742, %v2735
  %v3170 = vpack.c.b16 %v2743, %v2736
  %v3171 = vpack.c.b16 %v2744, %v2737
  %v3172 = vpack.c.b16 %v2745, %v2738
  %v3173 = vpack.c.b16 %v2746, %v2739
  %v3174 = vpack.c.b16 %v2754, %v2747
  %v3175 = vpack.c.b16 %v2755, %v2748
  %v3176 = vpack.c.b16 %v2756, %v2749
  %v3177 = vpack.c.b16 %v2757, %v2750
  %v3178 = vpack.c.b16 %v2758, %v2751
  %v3179 = vpack.c.b16 %v2759, %v2752
  %v3180 = vpack.c.b16 %v2760, %v2753
  %v3181 = vpack.c.b16 %v2768, %v2761
  %v3182 = vpack.c.b16 %v2769, %v2762
  %v3183 = vpack.c.b16 %v2770, %v2763
  %v3184 = vpack.c.b16 %v2771, %v2764
  %v3185 = vpack.c.b16 %v2772, %v2765
  %v3186 = vpack.c.b16 %v2773, %v2766
  %v3187 = vpack.c.b16 %v2774, %v2767
  %v3188 = vpack.c.b16 %v2782, %v2775
  %v3189 = vpack.c.b16 %v2783, %v2776
  %v3190 = vpack.c.b16 %v2784, %v2777
  %v3191 = vpack.c.b16 %v2785, %v2778
  %v3192 = vpack.c.b16 %v2786, %v2779
  %v3193 = vpack.c.b16 %v2787, %v2780
  %v3194 = vpack.c.b16 %v2788, %v2781
  %v3195 = vpack.c.b16 %v2796, %v2789
  %v3196 = vpack.c.b16 %v2797, %v2790
  %v3197 = vpack.c.b16 %v2798, %v2791
  %v3198 = vpack.c.b16 %v2799, %v2792
  %v3199 = vpack.c.b16 %v2800, %v2793
  %v3200 = vpack.c.b16 %v2801, %v2794
  %v3201 = vpack.c.b16 %v2802, %v2795
  %v3202 = vpack.c.b16 %v2810, %v2803
  %v3203 = vpack.c.b16 %v2811, %v2804
  %v3204 = vpack.c.b16 %v2812, %v2805
  %v3205 = vpack.c.b16 %v2813, %v2806
  %v3206 = vpack.c.b16 %v2814, %v2807
  %v3207 = vpack.c.b16 %v2815, %v2808
  %v3208 = vpack.c.b16 %v2816, %v2809
  %v3209 = vpack.c.b16 %v2824, %v2817
  %v3210 = vpack.c.b16 %v2825, %v2818
  %v3211 = vpack.c.b16 %v2826, %v2819
  %v3212 = vpack.c.b16 %v2827, %v2820
  %v3213 = vpack.c.b16 %v2828, %v2821
  %v3214 = vpack.c.b16 %v2829, %v2822
  %v3215 = vpack.c.b16 %v2830, %v2823
  %v3216 = vpack.c.b16 %v2838, %v2831
  %v3217 = vpack.c.b16 %v2839, %v2832
  %v3218 = vpack.c.b16 %v2840, %v2833
  %v3219 = vpack.c.b16 %v2841, %v2834
  %v3220 = vpack.c.b16 %v2842, %v2835
  %v3221 = vpack.c.b16 %v2843, %v2836
  %v3222 = vpack.c.b16 %v2844, %v2837
  %v3223 = vpack.c.b16 %v2852, %v2845
  %v3224 = vpack.c.b16 %v2853, %v2846
  %v3225 = vpack.c.b16 %v2854, %v2847
  %v3226 = vpack.c.b16 %v2855, %v2848
  %v3227 = vpack.c.b16 %v2856, %v2849
  %v3228 = vpack.c.b16 %v2857, %v2850
  %v3229 = vpack.c.b16 %v2858, %v2851
  %v3230 = vpack.c.b16 %v2866, %v2859
  %v3231 = vpack.c.b16 %v2867, %v2860
  %v3232 = vpack.c.b16 %v2868, %v2861
  %v3233 = vpack.c.b16 %v2869, %v2862
  %v3234 = vpack.c.b16 %v2870, %v2863
  %v3235 = vpack.c.b16 %v2871, %v2864
  %v3236 = vpack.c.b16 %v2872, %v2865
  %v3237 = vpack.c.b16 %v2880, %v2873
  %v3238 = vpack.c.b16 %v2881, %v2874
  %v3239 = vpack.c.b16 %v2882, %v2875
  %v3240 = vpack.c.b16 %v2883, %v2876
  %v3241 = vpack.c.b16 %v2884, %v2877
  %v3242 = vpack.c.b16 %v2885, %v2878
  %v3243 = vpack.c.b16 %v2886, %v2879
  %v3244 = vpack.c.b16 %v2894, %v2887
  %v3245 = vpack.c.b16 %v2895, %v2888
  %v3246 = vpack.c.b16 %v2896, %v2889
  %v3247 = vpack.c.b16 %v2897, %v2890
  %v3248 = vpack.c.b16 %v2898, %v2891
  %v3249 = vpack.c.b16 %v2899, %v2892
  %v3250 = vpack.c.b16 %v2900, %v2893
  %v3251 = vpack.c.b16 %v2908, %v2901
  %v3252 = vpack.c.b16 %v2909, %v2902
  %v3253 = vpack.c.b16 %v2910, %v2903
  %v3254 = vpack.c.b16 %v2911, %v2904
  %v3255 = vpack.c.b16 %v2912, %v2905
  %v3256 = vpack.c.b16 %v2913, %v2906
  %v3257 = vpack.c.b16 %v2914, %v2907
  %v3258 = vpack.c.b16 %v2922, %v2915
  %v3259 = vpack.c.b16 %v2923, %v2916
  %v3260 = vpack.c.b16 %v2924, %v2917
  %v3261 = vpack.c.b16 %v2925, %v2918
  %v3262 = vpack.c.b16 %v2926, %v2919
  %v3263 = vpack.c.b16 %v2927, %v2920
  %v3264 = vpack.c.b16 %v2928, %v2921
  %v3265 = vpack.c.b16 %v2936, %v2929
  %v3266 = vpack.c.b16 %v2937, %v2930
  %v3267 = vpack.c.b16 %v2938, %v2931
  %v3268 = vpack.c.b16 %v2939, %v2932
  %v3269 = vpack.c.b16 %v2940, %v2933
  %v3270 = vpack.c.b16 %v2941, %v2934
  %v3271 = vpack.c.b16 %v2942, %v2935
  %v3272 = vpack.c.b16 %v2950, %v2943
  %v3273 = vpack.c.b16 %v2951, %v2944
  %v3274 = vpack.c.b16 %v2952, %v2945
  %v3275 = vpack.c.b16 %v2953, %v2946
  %v3276 = vpack.c.b16 %v2954, %v2947
  %v3277 = vpack.c.b16 %v2955, %v2948
  %v3278 = vpack.c.b16 %v2956, %v2949
  %v3279 = vpack.c.b16 %v2964, %v2957
  %v3280 = vpack.c.b16 %v2965, %v2958
  %v3281 = vpack.c.b16 %v2966, %v2959
  %v3282 = vpack.c.b16 %v2967, %v2960
  %v3283 = vpack.c.b16 %v2968, %v2961
  %v3284 = vpack.c.b16 %v2969, %v2962
  %v3285 = vpack.c.b16 %v2970, %v2963
  %v3286 = vpack.c.b16 %v2978, %v2971
  %v3287 = vpack.c.b16 %v2979, %v2972
  %v3288 = vpack.c.b16 %v2980, %v2973
  %v3289 = vpack.c.b16 %v2981, %v2974
  %v3290 = vpack.c.b16 %v2982, %v2975
  %v3291 = vpack.c.b16 %v2983, %v2976
  %v3292 = vpack.c.b16 %v2984, %v2977
  %v3293 = vpack.c.b16 %v2992, %v2985
  %v3294 = vpack.c.b16 %v2993, %v2986
  %v3295 = vpack.c.b16 %v2994, %v2987
  %v3296 = vpack.c.b16 %v2995, %v2988
  %v3297 = vpack.c.b16 %v2996, %v2989
  %v3298 = vpack.c.b16 %v2997, %v2990
  %v3299 = vpack.c.b16 %v2998, %v2991
  %v3300 = vpack.c.b16 %v3006, %v2999
  %v3301 = vpack.c.b16 %v3007, %v3000
  %v3302 = vpack.c.b16 %v3008, %v3001
  %v3303 = vpack.c.b16 %v3009, %v3002
  %v3304 = vpack.c.b16 %v3010, %v3003
  %v3305 = vpack.c.b16 %v3011, %v3004
  %v3306 = vpack.c.b16 %v3012, %v3005
  %v3307 = vpack.c.b16 %v3020, %v3013
  %v3308 = vpack.c.b16 %v3021, %v3014
  %v3309 = vpack.c.b16 %v3022, %v3015
  %v3310 = vpack.c.b16 %v3023, %v3016
  %v3311 = vpack.c.b16 %v3024, %v3017
  %v3312 = vpack.c.b16 %v3025, %v3018
  %v3313 = vpack.c.b16 %v3026, %v3019
  %v3314 = vpack.c.b16 %v3034, %v3027
  %v3315 = vpack.c.b16 %v3035, %v3028
  %v3316 = vpack.c.b16 %v3036, %v3029
  %v3317 = vpack.c.b16 %v3037, %v3030
  %v3318 = vpack.c.b16 %v3038, %v3031
  %v3319 = vpack.c.b16 %v3039, %v3032
  %v3320 = vpack.c.b16 %v3040, %v3033
  %v3321 = vpack.c.b16 %v3048, %v3041
  %v3322 = vpack.c.b16 %v3049, %v3042
  %v3323 = vpack.c.b16 %v3050, %v3043
  %v3324 = vpack.c.b16 %v3051, %v3044
  %v3325 = vpack.c.b16 %v3052, %v3045
  %v3326 = vpack.c.b16 %v3053, %v3046
  %v3327 = vpack.c.b16 %v3054, %v3047
  %v3328 = vpack.c.b16 %v3062, %v3055
  %v3329 = vpack.c.b16 %v3063, %v3056
  %v3330 = vpack.c.b16 %v3064, %v3057
  %v3331 = vpack.c.b16 %v3065, %v3058
  %v3332 = vpack.c.b16 %v3066, %v3059
  %v3333 = vpack.c.b16 %v3067, %v3060
  %v3334 = vpack.c.b16 %v3068, %v3061
  %v3335 = vpack.c.b16 %v3076, %v3069
  %v3336 = vpack.c.b16 %v3077, %v3070
  %v3337 = vpack.c.b16 %v3078, %v3071
  %v3338 = vpack.c.b16 %v3079, %v3072
  %v3339 = vpack.c.b16 %v3080, %v3073
  %v3340 = vpack.c.b16 %v3081, %v3074
  %v3341 = vpack.c.b16 %v3082, %v3075
  %v3342 = vpack.c.b16 %v3090, %v3083
  %v3343 = vpack.c.b16 %v3091, %v3084
  %v3344 = vpack.c.b16 %v3092, %v3085
  %v3345 = vpack.c.b16 %v3093, %v3086
  %v3346 = vpack.c.b16 %v3094, %v3087
  %v3347 = vpack.c.b16 %v3095, %v3088
  %v3348 = vpack.c.b16 %v3096, %v3089
  %v3349 = vpack.c.b16 %v3104, %v3097
  %v3350 = vpack.c.b16 %v3105, %v3098
  %v3351 = vpack.c.b16 %v3106, %v3099
  %v3352 = vpack.c.b16 %v3107, %v3100
  %v3353 = vpack.c.b16 %v3108, %v3101
  %v3354 = vpack.c.b16 %v3109, %v3102
  %v3355 = vpack.c.b16 %v3110, %v3103
  %v3356 = vpack.c.b16 %v3118, %v3111
  %v3357 = vpack.c.b16 %v3119, %v3112
  %v3358 = vpack.c.b16 %v3120, %v3113
  %v3359 = vpack.c.b16 %v3121, %v3114
  %v3360 = vpack.c.b16 %v3122, %v3115
  %v3361 = vpack.c.b16 %v3123, %v3116
  %v3362 = vpack.c.b16 %v3124, %v3117
  %v3363 = vpack.c.b16 %v3132, %v3125
  %v3364 = vpack.c.b16 %v3133, %v3126
  %v3365 = vpack.c.b16 %v3134, %v3127
  %v3366 = vpack.c.b16 %v3135, %v3128
  %v3367 = vpack.c.b16 %v3136, %v3129
  %v3368 = vpack.c.b16 %v3137, %v3130
  %v3369 = vpack.c.b16 %v3138, %v3131
  %v3370 = vpack.c.b16 %v3146, %v3139
  %v3371 = vpack.c.b16 %v3147, %v3140
  %v3372 = vpack.c.b16 %v3148, %v3141
  %v3373 = vpack.c.b16 %v3149, %v3142
  %v3374 = vpack.c.b16 %v3150, %v3143
  %v3375 = vpack.c.b16 %v3151, %v3144
  %v3376 = vpack.c.b16 %v3152, %v3145
  %3601 = vmatprep.subr.bf16.mxu0 %v3154
  %3602 = vmatpush1.bf16.msra.mxu0 %v3153
  %3603 = vmatprep.subr.bf16.mxu0 %v3161
  %3604 = vmatpush1.bf16.msra.mxu0 %v3160
  %3605 = vmatprep.subr.bf16.mxu0 %v3168
  %3606 = vmatpush1.bf16.msra.mxu0 %v3167
  %3607 = vmatprep.subr.bf16.mxu0 %v3175
  %3608 = vmatpush1.bf16.msra.mxu0 %v3174
  %3609 = vmatprep.subr.bf16.mxu0 %v3182
  %3610 = vmatpush1.bf16.msra.mxu0 %v3181
  %3611 = vmatprep.subr.bf16.mxu0 %v3189
  %3612 = vmatpush1.bf16.msra.mxu0 %v3188
  %3613 = vmatprep.subr.bf16.mxu0 %v3196
  %3614 = vmatpush1.bf16.msra.mxu0 %v3195
  %3615 = vmatprep.subr.bf16.mxu0 %v3203
  %3616 = vmatpush1.bf16.msra.mxu0 %v3202
  %3617 = vmatprep.subr.bf16.mxu0 %v3210
  %3618 = vmatpush1.bf16.msra.mxu0 %v3209
  %3619 = vmatprep.subr.bf16.mxu0 %v3217
  %3620 = vmatpush1.bf16.msra.mxu0 %v3216
  %3621 = vmatprep.subr.bf16.mxu0 %v3224
  %3622 = vmatpush1.bf16.msra.mxu0 %v3223
  %3623 = vmatprep.subr.bf16.mxu0 %v3231
  %3624 = vmatpush1.bf16.msra.mxu0 %v3230
  %3625 = vmatprep.subr.bf16.mxu0 %v3238
  %3626 = vmatpush1.bf16.msra.mxu0 %v3237
  %3627 = vmatprep.subr.bf16.mxu0 %v3245
  %3628 = vmatpush1.bf16.msra.mxu0 %v3244
  %3629 = vmatprep.subr.bf16.mxu0 %v3252
  %3630 = vmatpush1.bf16.msra.mxu0 %v3251
  %3631 = vmatprep.subr.bf16.mxu0 %v3259
  %3632 = vmatpush1.bf16.msra.mxu0 %v3258
  %3633 = vmatprep.mubr.bf16.mxu0 %v2153
  %3634 = vmatmul.mubr.bf16.gmra.mrb[0].mxu0 %v2152
  %v3635 = vpop.f32.mrb[0].mxu0
  %v3636 = vadd.f32 %v2417, %v3635
  %v3637 = vpop.f32.mrb[0].mxu0
  %v3638 = vadd.f32 %v2421, %v3637
  %v3639 = vpop.f32.mrb[0].mxu0
  %v3640 = vadd.f32 %v2417, %v3639
  %v3641 = vpop.f32.mrb[0].mxu0
  %v3642 = vadd.f32 %v2421, %v3641
  %3643 = vdwg.mxu0
  %3644 = vmatprep.subr.bf16.mxu0 %v3266
  %3645 = vmatpush1.bf16.msra.mxu0 %v3265
  %3646 = vmatprep.subr.bf16.mxu0 %v3273
  %3647 = vmatpush1.bf16.msra.mxu0 %v3272
  %3648 = vmatprep.subr.bf16.mxu0 %v3280
  %3649 = vmatpush1.bf16.msra.mxu0 %v3279
  %3650 = vmatprep.subr.bf16.mxu0 %v3287
  %3651 = vmatpush1.bf16.msra.mxu0 %v3286
  %3652 = vmatprep.subr.bf16.mxu0 %v3294
  %3653 = vmatpush1.bf16.msra.mxu0 %v3293
  %3654 = vmatprep.subr.bf16.mxu0 %v3301
  %3655 = vmatpush1.bf16.msra.mxu0 %v3300
  %3656 = vmatprep.subr.bf16.mxu0 %v3308
  %3657 = vmatpush1.bf16.msra.mxu0 %v3307
  %3658 = vmatprep.subr.bf16.mxu0 %v3315
  %3659 = vmatpush1.bf16.msra.mxu0 %v3314
  %3660 = vmatprep.subr.bf16.mxu0 %v3322
  %3661 = vmatpush1.bf16.msra.mxu0 %v3321
  %3662 = vmatprep.subr.bf16.mxu0 %v3329
  %3663 = vmatpush1.bf16.msra.mxu0 %v3328
  %3664 = vmatprep.subr.bf16.mxu0 %v3336
  %3665 = vmatpush1.bf16.msra.mxu0 %v3335
  %3666 = vmatprep.subr.bf16.mxu0 %v3343
  %3667 = vmatpush1.bf16.msra.mxu0 %v3342
  %3668 = vmatprep.subr.bf16.mxu0 %v3350
  %3669 = vmatpush1.bf16.msra.mxu0 %v3349
  %3670 = vmatprep.subr.bf16.mxu0 %v3357
  %3671 = vmatpush1.bf16.msra.mxu0 %v3356
  %3672 = vmatprep.subr.bf16.mxu0 %v3364
  %3673 = vmatpush1.bf16.msra.mxu0 %v3363
  %3674 = vmatprep.subr.bf16.mxu0 %v3371
  %3675 = vmatpush1.bf16.msra.mxu0 %v3370
  %3676 = vmatprep.mubr.bf16.mxu0 %v2155
  %3677 = vmatmul.mubr.bf16.gmra.mrb[0].mxu0 %v2154
  %v3678 = vpop.f32.mrb[0].mxu0
  %v3679 = vadd.f32 %v3636, %v3678
  %v3680 = vpop.f32.mrb[0].mxu0
  %v3681 = vadd.f32 %v3638, %v3680
  %v3682 = vpop.f32.mrb[0].mxu0
  %v3683 = vadd.f32 %v3640, %v3682
  %v3684 = vpop.f32.mrb[0].mxu0
  %v3685 = vadd.f32 %v3642, %v3684
  %3686 = vdwg.mxu0
  %3687 = vmatprep.subr.bf16.mxu0 %v3156
  %3688 = vmatpush1.bf16.msra.mxu0 %v3155
  %3689 = vmatprep.subr.bf16.mxu0 %v3163
  %3690 = vmatpush1.bf16.msra.mxu0 %v3162
  %3691 = vmatprep.subr.bf16.mxu0 %v3170
  %3692 = vmatpush1.bf16.msra.mxu0 %v3169
  %3693 = vmatprep.subr.bf16.mxu0 %v3177
  %3694 = vmatpush1.bf16.msra.mxu0 %v3176
  %3695 = vmatprep.subr.bf16.mxu0 %v3184
  %3696 = vmatpush1.bf16.msra.mxu0 %v3183
  %3697 = vmatprep.subr.bf16.mxu0 %v3191
  %3698 = vmatpush1.bf16.msra.mxu0 %v3190
  %3699 = vmatprep.subr.bf16.mxu0 %v3198
  %3700 = vmatpush1.bf16.msra.mxu0 %v3197
  %3701 = vmatprep.subr.bf16.mxu0 %v3205
  %3702 = vmatpush1.bf16.msra.mxu0 %v3204
  %3703 = vmatprep.subr.bf16.mxu0 %v3212
  %3704 = vmatpush1.bf16.msra.mxu0 %v3211
  %3705 = vmatprep.subr.bf16.mxu0 %v3219
  %3706 = vmatpush1.bf16.msra.mxu0 %v3218
  %3707 = vmatprep.subr.bf16.mxu0 %v3226
  %3708 = vmatpush1.bf16.msra.mxu0 %v3225
  %3709 = vmatprep.subr.bf16.mxu0 %v3233
  %3710 = vmatpush1.bf16.msra.mxu0 %v3232
  %3711 = vmatprep.subr.bf16.mxu0 %v3240
  %3712 = vmatpush1.bf16.msra.mxu0 %v3239
  %3713 = vmatprep.subr.bf16.mxu0 %v3247
  %3714 = vmatpush1.bf16.msra.mxu0 %v3246
  %3715 = vmatprep.subr.bf16.mxu0 %v3254
  %3716 = vmatpush1.bf16.msra.mxu0 %v3253
  %3717 = vmatprep.subr.bf16.mxu0 %v3261
  %3718 = vmatpush1.bf16.msra.mxu0 %v3260
  %3719 = vmatprep.mubr.bf16.mxu0 %v2153
  %3720 = vmatmul.mubr.bf16.gmra.mrb[0].mxu0 %v2152
  %v3721 = vpop.f32.mrb[0].mxu0
  %v3722 = vadd.f32 %v2425, %v3721
  %v3723 = vpop.f32.mrb[0].mxu0
  %v3724 = vadd.f32 %v2429, %v3723
  %v3725 = vpop.f32.mrb[0].mxu0
  %v3726 = vadd.f32 %v2425, %v3725
  %v3727 = vpop.f32.mrb[0].mxu0
  %v3728 = vadd.f32 %v2429, %v3727
  %3729 = vdwg.mxu0
  %3730 = vmatprep.subr.bf16.mxu0 %v3268
  %3731 = vmatpush1.bf16.msra.mxu0 %v3267
  %3732 = vmatprep.subr.bf16.mxu0 %v3275
  %3733 = vmatpush1.bf16.msra.mxu0 %v3274
  %3734 = vmatprep.subr.bf16.mxu0 %v3282
  %3735 = vmatpush1.bf16.msra.mxu0 %v3281
  %3736 = vmatprep.subr.bf16.mxu0 %v3289
  %3737 = vmatpush1.bf16.msra.mxu0 %v3288
  %3738 = vmatprep.subr.bf16.mxu0 %v3296
  %3739 = vmatpush1.bf16.msra.mxu0 %v3295
  %3740 = vmatprep.subr.bf16.mxu0 %v3303
  %3741 = vmatpush1.bf16.msra.mxu0 %v3302
  %3742 = vmatprep.subr.bf16.mxu0 %v3310
  %3743 = vmatpush1.bf16.msra.mxu0 %v3309
  %3744 = vmatprep.subr.bf16.mxu0 %v3317
  %3745 = vmatpush1.bf16.msra.mxu0 %v3316
  %3746 = vmatprep.subr.bf16.mxu0 %v3324
  %3747 = vmatpush1.bf16.msra.mxu0 %v3323
  %3748 = vmatprep.subr.bf16.mxu0 %v3331
  %3749 = vmatpush1.bf16.msra.mxu0 %v3330
  %3750 = vmatprep.subr.bf16.mxu0 %v3338
  %3751 = vmatpush1.bf16.msra.mxu0 %v3337
  %3752 = vmatprep.subr.bf16.mxu0 %v3345
  %3753 = vmatpush1.bf16.msra.mxu0 %v3344
  %3754 = vmatprep.subr.bf16.mxu0 %v3352
  %3755 = vmatpush1.bf16.msra.mxu0 %v3351
  %3756 = vmatprep.subr.bf16.mxu0 %v3359
  %3757 = vmatpush1.bf16.msra.mxu0 %v3358
  %3758 = vmatprep.subr.bf16.mxu0 %v3366
  %3759 = vmatpush1.bf16.msra.mxu0 %v3365
  %3760 = vmatprep.subr.bf16.mxu0 %v3373
  %3761 = vmatpush1.bf16.msra.mxu0 %v3372
  %3762 = vmatprep.mubr.bf16.mxu0 %v2155
  %3763 = vmatmul.mubr.bf16.gmra.mrb[0].mxu0 %v2154
  %v3764 = vpop.f32.mrb[0].mxu0
  %v3765 = vadd.f32 %v3722, %v3764
  %v3766 = vpop.f32.mrb[0].mxu0
  %v3767 = vadd.f32 %v3724, %v3766
  %v3768 = vpop.f32.mrb[0].mxu0
  %v3769 = vadd.f32 %v3726, %v3768
  %v3770 = vpop.f32.mrb[0].mxu0
  %v3771 = vadd.f32 %v3728, %v3770
  %3772 = vdwg.mxu0
  %3773 = vmatprep.subr.bf16.mxu0 %v3158
  %3774 = vmatpush1.bf16.msra.mxu0 %v3157
  %3775 = vmatprep.subr.bf16.mxu0 %v3165
  %3776 = vmatpush1.bf16.msra.mxu0 %v3164
  %3777 = vmatprep.subr.bf16.mxu0 %v3172
  %3778 = vmatpush1.bf16.msra.mxu0 %v3171
  %3779 = vmatprep.subr.bf16.mxu0 %v3179
  %3780 = vmatpush1.bf16.msra.mxu0 %v3178
  %3781 = vmatprep.subr.bf16.mxu0 %v3186
  %3782 = vmatpush1.bf16.msra.mxu0 %v3185
  %3783 = vmatprep.subr.bf16.mxu0 %v3193
  %3784 = vmatpush1.bf16.msra.mxu0 %v3192
  %3785 = vmatprep.subr.bf16.mxu0 %v3200
  %3786 = vmatpush1.bf16.msra.mxu0 %v3199
  %3787 = vmatprep.subr.bf16.mxu0 %v3207
  %3788 = vmatpush1.bf16.msra.mxu0 %v3206
  %3789 = vmatprep.subr.bf16.mxu0 %v3214
  %3790 = vmatpush1.bf16.msra.mxu0 %v3213
  %3791 = vmatprep.subr.bf16.mxu0 %v3221
  %3792 = vmatpush1.bf16.msra.mxu0 %v3220
  %3793 = vmatprep.subr.bf16.mxu0 %v3228
  %3794 = vmatpush1.bf16.msra.mxu0 %v3227
  %3795 = vmatprep.subr.bf16.mxu0 %v3235
  %3796 = vmatpush1.bf16.msra.mxu0 %v3234
  %3797 = vmatprep.subr.bf16.mxu0 %v3242
  %3798 = vmatpush1.bf16.msra.mxu0 %v3241
  %3799 = vmatprep.subr.bf16.mxu0 %v3249
  %3800 = vmatpush1.bf16.msra.mxu0 %v3248
  %3801 = vmatprep.subr.bf16.mxu0 %v3256
  %3802 = vmatpush1.bf16.msra.mxu0 %v3255
  %3803 = vmatprep.subr.bf16.mxu0 %v3263
  %3804 = vmatpush1.bf16.msra.mxu0 %v3262
  %3805 = vmatprep.mubr.bf16.mxu0 %v2153
  %3806 = vmatmul.mubr.bf16.gmra.mrb[0].mxu0 %v2152
  %v3807 = vpop.f32.mrb[0].mxu0
  %v3808 = vadd.f32 %v2433, %v3807
  %v3809 = vpop.f32.mrb[0].mxu0
  %v3810 = vadd.f32 %v2437, %v3809
  %v3811 = vpop.f32.mrb[0].mxu0
  %v3812 = vadd.f32 %v2433, %v3811
  %v3813 = vpop.f32.mrb[0].mxu0
  %v3814 = vadd.f32 %v2437, %v3813
  %3815 = vdwg.mxu0
  %3816 = vmatprep.subr.bf16.mxu0 %v3270
  %3817 = vmatpush1.bf16.msra.mxu0 %v3269
  %3818 = vmatprep.subr.bf16.mxu0 %v3277
  %3819 = vmatpush1.bf16.msra.mxu0 %v3276
  %3820 = vmatprep.subr.bf16.mxu0 %v3284
  %3821 = vmatpush1.bf16.msra.mxu0 %v3283
  %3822 = vmatprep.subr.bf16.mxu0 %v3291
  %3823 = vmatpush1.bf16.msra.mxu0 %v3290
  %3824 = vmatprep.subr.bf16.mxu0 %v3298
  %3825 = vmatpush1.bf16.msra.mxu0 %v3297
  %3826 = vmatprep.subr.bf16.mxu0 %v3305
  %3827 = vmatpush1.bf16.msra.mxu0 %v3304
  %3828 = vmatprep.subr.bf16.mxu0 %v3312
  %3829 = vmatpush1.bf16.msra.mxu0 %v3311
  %3830 = vmatprep.subr.bf16.mxu0 %v3319
  %3831 = vmatpush1.bf16.msra.mxu0 %v3318
  %3832 = vmatprep.subr.bf16.mxu0 %v3326
  %3833 = vmatpush1.bf16.msra.mxu0 %v3325
  %3834 = vmatprep.subr.bf16.mxu0 %v3333
  %3835 = vmatpush1.bf16.msra.mxu0 %v3332
  %3836 = vmatprep.subr.bf16.mxu0 %v3340
  %3837 = vmatpush1.bf16.msra.mxu0 %v3339
  %3838 = vmatprep.subr.bf16.mxu0 %v3347
  %3839 = vmatpush1.bf16.msra.mxu0 %v3346
  %3840 = vmatprep.subr.bf16.mxu0 %v3354
  %3841 = vmatpush1.bf16.msra.mxu0 %v3353
  %3842 = vmatprep.subr.bf16.mxu0 %v3361
  %3843 = vmatpush1.bf16.msra.mxu0 %v3360
  %3844 = vmatprep.subr.bf16.mxu0 %v3368
  %3845 = vmatpush1.bf16.msra.mxu0 %v3367
  %3846 = vmatprep.subr.bf16.mxu0 %v3375
  %3847 = vmatpush1.bf16.msra.mxu0 %v3374
  %3848 = vmatprep.mubr.bf16.mxu0 %v2155
  %3849 = vmatmul.mubr.bf16.gmra.mrb[0].mxu0 %v2154
  %v3850 = vpop.f32.mrb[0].mxu0
  %v3851 = vadd.f32 %v3808, %v3850
  %v3852 = vpop.f32.mrb[0].mxu0
  %v3853 = vadd.f32 %v3810, %v3852
  %v3854 = vpop.f32.mrb[0].mxu0
  %v3855 = vadd.f32 %v3812, %v3854
  %v3856 = vpop.f32.mrb[0].mxu0
  %v3857 = vadd.f32 %v3814, %v3856
  %3858 = vdwg.mxu0
  %3859 = vmatprep.subr.bf16.mxu0 0
  %3860 = vmatpush1.bf16.msra.mxu0 %v3159
  %3861 = vmatprep.subr.bf16.mxu0 0
  %3862 = vmatpush1.bf16.msra.mxu0 %v3166
  %3863 = vmatprep.subr.bf16.mxu0 0
  %3864 = vmatpush1.bf16.msra.mxu0 %v3173
  %3865 = vmatprep.subr.bf16.mxu0 0
  %3866 = vmatpush1.bf16.msra.mxu0 %v3180
  %3867 = vmatprep.subr.bf16.mxu0 0
  %3868 = vmatpush1.bf16.msra.mxu0 %v3187
  %3869 = vmatprep.subr.bf16.mxu0 0
  %3870 = vmatpush1.bf16.msra.mxu0 %v3194
  %3871 = vmatprep.subr.bf16.mxu0 0
  %3872 = vmatpush1.bf16.msra.mxu0 %v3201
  %3873 = vmatprep.subr.bf16.mxu0 0
  %3874 = vmatpush1.bf16.msra.mxu0 %v3208
  %3875 = vmatprep.subr.bf16.mxu0 0
  %3876 = vmatpush1.bf16.msra.mxu0 %v3215
  %3877 = vmatprep.subr.bf16.mxu0 0
  %3878 = vmatpush1.bf16.msra.mxu0 %v3222
  %3879 = vmatprep.subr.bf16.mxu0 0
  %3880 = vmatpush1.bf16.msra.mxu0 %v3229
  %3881 = vmatprep.subr.bf16.mxu0 0
  %3882 = vmatpush1.bf16.msra.mxu0 %v3236
  %3883 = vmatprep.subr.bf16.mxu0 0
  %3884 = vmatpush1.bf16.msra.mxu0 %v3243
  %3885 = vmatprep.subr.bf16.mxu0 0
  %3886 = vmatpush1.bf16.msra.mxu0 %v3250
  %3887 = vmatprep.subr.bf16.mxu0 0
  %3888 = vmatpush1.bf16.msra.mxu0 %v3257
  %3889 = vmatprep.subr.bf16.mxu0 0
  %3890 = vmatpush1.bf16.msra.mxu0 %v3264
  %3891 = vmatprep.mubr.bf16.mxu0 %v2153
  %3892 = vmatmul.mubr.bf16.gmra.mrb[0].mxu0 %v2152
  %v3893 = vpop.f32.mrb[0].mxu0
  %v3894 = vadd.f32 %v2441, %v3893
  %v3895 = vpop.f32.mrb[0].mxu0
  %v3896 = vpop.f32.mrb[0].mxu0
  %v3897 = vadd.f32 %v2441, %v3896
  %v3898 = vpop.f32.mrb[0].mxu0
  %3899 = vdwg.mxu0
  %3900 = vmatprep.subr.bf16.mxu0 0
  %3901 = vmatpush1.bf16.msra.mxu0 %v3271
  %3902 = vmatprep.subr.bf16.mxu0 0
  %3903 = vmatpush1.bf16.msra.mxu0 %v3278
  %3904 = vmatprep.subr.bf16.mxu0 0
  %3905 = vmatpush1.bf16.msra.mxu0 %v3285
  %3906 = vmatprep.subr.bf16.mxu0 0
  %3907 = vmatpush1.bf16.msra.mxu0 %v3292
  %3908 = vmatprep.subr.bf16.mxu0 0
  %3909 = vmatpush1.bf16.msra.mxu0 %v3299
  %3910 = vmatprep.subr.bf16.mxu0 0
  %3911 = vmatpush1.bf16.msra.mxu0 %v3306
  %3912 = vmatprep.subr.bf16.mxu0 0
  %3913 = vmatpush1.bf16.msra.mxu0 %v3313
  %3914 = vmatprep.subr.bf16.mxu0 0
  %3915 = vmatpush1.bf16.msra.mxu0 %v3320
  %3916 = vmatprep.subr.bf16.mxu0 0
  %3917 = vmatpush1.bf16.msra.mxu0 %v3327
  %3918 = vmatprep.subr.bf16.mxu0 0
  %3919 = vmatpush1.bf16.msra.mxu0 %v3334
  %3920 = vmatprep.subr.bf16.mxu0 0
  %3921 = vmatpush1.bf16.msra.mxu0 %v3341
  %3922 = vmatprep.subr.bf16.mxu0 0
  %3923 = vmatpush1.bf16.msra.mxu0 %v3348
  %3924 = vmatprep.subr.bf16.mxu0 0
  %3925 = vmatpush1.bf16.msra.mxu0 %v3355
  %3926 = vmatprep.subr.bf16.mxu0 0
  %3927 = vmatpush1.bf16.msra.mxu0 %v3362
  %3928 = vmatprep.subr.bf16.mxu0 0
  %3929 = vmatpush1.bf16.msra.mxu0 %v3369
  %3930 = vmatprep.subr.bf16.mxu0 0
  %3931 = vmatpush1.bf16.msra.mxu0 %v3376
  %3932 = vmatprep.mubr.bf16.mxu0 %v2155
  %3933 = vmatmul.mubr.bf16.gmra.mrb[0].mxu0 %v2154
  %v3934 = vpop.f32.mrb[0].mxu0
  %v3935 = vadd.f32 %v3894, %v3934
  %v3936 = vpop.f32.mrb[0].mxu0
  %v3937 = vpop.f32.mrb[0].mxu0
  %v3938 = vadd.f32 %v3897, %v3937
  %v3939 = vpop.f32.mrb[0].mxu0
  %3940 = vdwg.mxu0
  %v3941 = vsub.f32 0.0, %v3679
  %v3942 = vsub.f32 0.0, %v3681
  %v3943 = vsub.f32 0.0, %v3765
  %v3944 = vsub.f32 0.0, %v3767
  %v3945 = vsub.f32 0.0, %v3851
  %v3946 = vsub.f32 0.0, %v3853
  %v3947 = vsub.f32 0.0, %v3935
  %v3948 = vsub.f32 0.0, %v3683
  %v3949 = vsub.f32 0.0, %v3685
  %v3950 = vsub.f32 0.0, %v3769
  %v3951 = vsub.f32 0.0, %v3771
  %v3952 = vsub.f32 0.0, %v3855
  %v3953 = vsub.f32 0.0, %v3857
  %v3954 = vsub.f32 0.0, %v3938
  %v3955 = vmul.f32 %v3941, 1.442695
  %v3956 = vpow.pop %v3955
  %v3957 = vmul.f32 %v3942, 1.442695
  %v3958 = vpow.pop %v3957
  %v3959 = vmul.f32 %v3943, 1.442695
  %v3960 = vpow.pop %v3959
  %v3961 = vmul.f32 %v3944, 1.442695
  %v3962 = vpow.pop %v3961
  %v3963 = vmul.f32 %v3945, 1.442695
  %v3964 = vpow.pop %v3963
  %v3965 = vmul.f32 %v3946, 1.442695
  %v3966 = vpow.pop %v3965
  %v3967 = vmul.f32 %v3947, 1.442695
  %v3968 = vpow.pop %v3967
  %v3969 = vmul.f32 %v3948, 1.442695
  %v3970 = vpow.pop %v3969
  %v3971 = vmul.f32 %v3949, 1.442695
  %v3972 = vpow.pop %v3971
  %v3973 = vmul.f32 %v3950, 1.442695
  %v3974 = vpow.pop %v3973
  %v3975 = vmul.f32 %v3951, 1.442695
  %v3976 = vpow.pop %v3975
  %v3977 = vmul.f32 %v3952, 1.442695
  %v3978 = vpow.pop %v3977
  %v3979 = vmul.f32 %v3953, 1.442695
  %v3980 = vpow.pop %v3979
  %v3981 = vmul.f32 %v3954, 1.442695
  %v3982 = vpow.pop %v3981
  %v3983 = vadd.f32 %v3956, 1.0
  %v3984 = vadd.f32 %v3958, 1.0
  %v3985 = vadd.f32 %v3960, 1.0
  %v3986 = vadd.f32 %v3962, 1.0
  %v3987 = vadd.f32 %v3964, 1.0
  %v3988 = vadd.f32 %v3966, 1.0
  %v3989 = vadd.f32 %v3968, 1.0
  %v3990 = vadd.f32 %v3970, 1.0
  %v3991 = vadd.f32 %v3972, 1.0
  %v3992 = vadd.f32 %v3974, 1.0
  %v3993 = vadd.f32 %v3976, 1.0
  %v3994 = vadd.f32 %v3978, 1.0
  %v3995 = vadd.f32 %v3980, 1.0
  %v3996 = vadd.f32 %v3982, 1.0
  %v3997 = vrcp.pop %v3983
  %v3998 = vrcp.pop %v3984
  %v3999 = vrcp.pop %v3985
  %v4000 = vrcp.pop %v3986
  %v4001 = vrcp.pop %v3987
  %v4002 = vrcp.pop %v3988
  %v4003 = vrcp.pop %v3989
  %v4004 = vrcp.pop %v3990
  %v4005 = vrcp.pop %v3991
  %v4006 = vrcp.pop %v3992
  %v4007 = vrcp.pop %v3993
  %v4008 = vrcp.pop %v3994
  %v4009 = vrcp.pop %v3995
  %v4010 = vrcp.pop %v3996
  %4011 = vst [vmem:[%s10] sm:$0xff] %v3997
  %4012 = vst [vmem:[%s10 + $0x8] sm:$0xff] %v3998
  %4013 = vst [vmem:[%s10 + $0x10] sm:$0xff] %v3999
  %4014 = vst [vmem:[%s10 + $0x18] sm:$0xff] %v4000
  %4015 = vst [vmem:[%s10 + $0x20] sm:$0xff] %v4001
  %4016 = vst [vmem:[%s10 + $0x28] sm:$0xff] %v4002
  %4017 = vst.msk [vmem:[%s10 + $0x30] sm:$0xff] %vm1257, %v4003
  %4018 = vst [vmem:[%s10 + $0x38] sm:$0xff] %v4004
  %4019 = vst [vmem:[%s10 + $0x40] sm:$0xff] %v4005
  %4020 = vst [vmem:[%s10 + $0x48] sm:$0xff] %v4006
  %4021 = vst [vmem:[%s10 + $0x50] sm:$0xff] %v4007
  %4022 = vst [vmem:[%s10 + $0x58] sm:$0xff] %v4008
  %4023 = vst [vmem:[%s10 + $0x60] sm:$0xff] %v4009
  %4024 = vst.msk [vmem:[%s10 + $0x68] sm:$0xff] %vm1257, %v4010
  %4025 = vst [vmem:[%s11] sm:$0xff] %v1956
  %4026 = vst [vmem:[%s11 + $0x8] sm:$0xff] %v1959
  // Predicated region
  $region42: #{vae_forward.1} parent=0 // pred_check
    _
  $region43: #{vae_forward.1} parent=0 // pred_check_branch
    %4028 = sbr.rel (0) target = $region45
  $region44: #{vae_forward.1} parent=0 // pred_region
    _
  $region45: #{vae_forward.1} parent=0 // pred_fallthru
    _
  // Predicated region
  $region46: #{vae_forward.1} parent=0 // pred_check
    _
  $region47: #{vae_forward.1} parent=0 // pred_check_branch
    %4030 = sbr.rel (0) target = $region49
  $region48: #{vae_forward.1} parent=0 // pred_region
    _
  $region49: #{vae_forward.1} parent=0 // pred_fallthru
    _
  // Predicated region
  $region50: #{vae_forward.1} parent=0 // pred_check
    _
  $region51: #{vae_forward.1} parent=0 // pred_check_branch
    %4032 = sbr.rel (0) target = $region53
  $region52: #{vae_forward.1} parent=0 // pred_region
    _
  $region53: #{vae_forward.1} parent=0 // pred_fallthru
    _
  // Predicated region
  $region54: #{vae_forward.1} parent=0 // pred_check
    _
  $region55: #{vae_forward.1} parent=0 // pred_check_branch
    %4034 = sbr.rel (0) target = $region57
  $region56: #{vae_forward.1} parent=0 // pred_region
    _
  $region57: #{vae_forward.1} parent=0 // pred_fallthru
    _

</llo_original>
